<compile_context>
chip_gen: v7x
topology: tpu7x:2x2x1
jax: 0.10.0
libtpu: 0.0.40
codegen_flags: <defaults>
</compile_context>

<pallas_src>
import functools

import jax
import jax.numpy as jnp
from jax.experimental import pallas as pl
from jax.experimental.pallas import tpu as pltpu

_LANE = 128
_EPS = 1e-5


def _round_up(v, m):
    return ((v + m - 1) // m) * m


def _choose_tiles(M, tile_m):
    """Pick (tm, nt, Mp). nt even when possible so v7x's 2 TCs split evenly."""
    if M <= 8:
        tm = _round_up(max(M, 1), 8)
        return tm, 1, tm
    nt = max(2, -(-M // tile_m))          # ceil-div, at least 2 tiles
    if nt % 2:
        nt += 1                           # even split across two TensorCores
    tm = _round_up(-(-M // nt), 8)
    return tm, nt, nt * tm


# ----------------------------------------------------------------------------
# Pass 1: per-tile partial BN statistics of the bias-free 1x1-conv
# pre-activations.  stats[i] = [sum(zg), sum(zg^2), sum(zx), sum(zx^2)] (4,Ci)
# Padded rows of g/x are zero, so (with no bias added here) they contribute
# exactly zero -- no masking needed.
# ----------------------------------------------------------------------------
def _stats_kernel(g_ref, x_ref, wg_ref, wx_ref, stats_ref):
    zg = jnp.dot(g_ref[...], wg_ref[...], preferred_element_type=jnp.float32)
    zx = jnp.dot(x_ref[...], wx_ref[...], preferred_element_type=jnp.float32)
    stats_ref[0] = jnp.concatenate(
        [jnp.sum(zg, axis=0, keepdims=True),
         jnp.sum(zg * zg, axis=0, keepdims=True),
         jnp.sum(zx, axis=0, keepdims=True),
         jnp.sum(zx * zx, axis=0, keepdims=True)], axis=0)


# ----------------------------------------------------------------------------
# Pass 2: fused BN_g + BN_x + add + ReLU + psi 1x1 conv (bias-free) with
# folded weights:  a = relu(g @ wg2 + x @ wx2 + shift_tot);  q = a . wpsi
#   aff rows: 0 = shift_tot, 1 = wpsi
# Outputs q (tm,1) and per-tile [sum(q), sum(q^2)].
# ----------------------------------------------------------------------------
def _fused_psi_kernel(g_ref, x_ref, wg_ref, wx_ref, aff_ref, psi_ref, psum_ref):
    acc = jnp.dot(g_ref[...], wg_ref[...], preferred_element_type=jnp.float32)
    acc = acc + jnp.dot(x_ref[...], wx_ref[...],
                        preferred_element_type=jnp.float32)
    a = jnp.maximum(acc + aff_ref[0:1, :], 0.0)
    q = jnp.sum(a * aff_ref[1:2, :], axis=1, keepdims=True)
    psi_ref[...] = q
    psum_ref[0] = jnp.concatenate(
        [jnp.sum(q, axis=0, keepdims=True),
         jnp.sum(q * q, axis=0, keepdims=True)], axis=0)


# ----------------------------------------------------------------------------
# Pass 3: psi BN (precomputed scalar scale / effective shift) + sigmoid +
# x * psi gating.  x and the output stay f32 (exact in x).
# ----------------------------------------------------------------------------
def _gate_kernel(x_ref, psi_ref, sc_ref, o_ref):
    p = jax.nn.sigmoid(psi_ref[...] * sc_ref[0] + sc_ref[1])
    o_ref[...] = x_ref[...] * p


# ----------------------------------------------------------------------------
# Wrapper: NCHW in / NCHW out, PyTorch-layout parameters.
# ----------------------------------------------------------------------------
def attention_block_forward(params, g_nchw, x_nchw, *, tile_m=1024,
                            in_dtype=jnp.bfloat16):
    N, Fg, H, W = g_nchw.shape
    Nx, Fl, Hx, Wx = x_nchw.shape
    assert (N, H, W) == (Nx, Hx, Wx)
    Fint = params["wg"].shape[0]

    f32 = jnp.float32
    stream_f32 = jnp.dtype(in_dtype) == jnp.dtype(f32)

    M = N * H * W
    Ci = _round_up(Fint, _LANE)           # MXU N dim only; never streamed/row
    tm, nt, Mp = _choose_tiles(M, tile_m)

    # ---- layout: NCHW -> (rows, channels); only row padding (often none) ----
    g2d = jnp.pad(jnp.transpose(g_nchw, (0, 2, 3, 1)).reshape(M, Fg),
                  ((0, Mp - M), (0, 0))).astype(in_dtype)
    x2d_f32 = jnp.pad(jnp.transpose(x_nchw, (0, 2, 3, 1)).reshape(M, Fl),
                      ((0, Mp - M), (0, 0))).astype(f32)
    x2d = x2d_f32 if stream_f32 else x2d_f32.astype(in_dtype)

    # ---- tiny VMEM-resident parameter tensors (only Ci padded to 128) -------
    wg_f = jnp.pad(params["wg"][:, :, 0, 0].T.astype(f32),
                   ((0, 0), (0, Ci - Fint)))               # (Fg, Ci)
    wx_f = jnp.pad(params["wx"][:, :, 0, 0].T.astype(f32),
                   ((0, 0), (0, Ci - Fint)))               # (Fl, Ci)
    bg_vec = jnp.pad(params["bg"].astype(f32), (0, Ci - Fint))
    bx_vec = jnp.pad(params["bx"].astype(f32), (0, Ci - Fint))
    # zero padding of gamma/beta/wpsi is what keeps padded channels inert
    gamma_g = jnp.pad(params["gamma_g"].astype(f32), (0, Ci - Fint))
    beta_g = jnp.pad(params["beta_g"].astype(f32), (0, Ci - Fint))
    gamma_x = jnp.pad(params["gamma_x"].astype(f32), (0, Ci - Fint))
    beta_x = jnp.pad(params["beta_x"].astype(f32), (0, Ci - Fint))
    wpsi_vec = jnp.pad(params["wpsi"][:, :, 0, 0].reshape(Fint).astype(f32),
                       (0, Ci - Fint))
    bpsi = params["bpsi"].astype(f32)[0]
    gamma_psi = params["gamma_psi"].astype(f32)[0]
    beta_psi = params["beta_psi"].astype(f32)[0]

    cparams = pltpu.CompilerParams(
        dimension_semantics=("parallel",),
        vmem_limit_bytes=32 * 1024 * 1024)   # explicit (v5e default is 16 MiB)

    # ---- pass 1: partial statistics of the bias-free pre-activations --------
    stats = pl.pallas_call(
        _stats_kernel,
        out_shape=jax.ShapeDtypeStruct((nt, 4, Ci), f32),
        grid=(nt,),
        in_specs=[
            pl.BlockSpec((tm, Fg), lambda i: (i, 0)),
            pl.BlockSpec((tm, Fl), lambda i: (i, 0)),
            pl.BlockSpec((Fg, Ci), lambda i: (0, 0)),   # grid-invariant
            pl.BlockSpec((Fl, Ci), lambda i: (0, 0)),
        ],
        out_specs=pl.BlockSpec((1, 4, Ci), lambda i: (i, 0, 0)),
        compiler_params=cparams,
    )(g2d, x2d, wg_f.astype(in_dtype), wx_f.astype(in_dtype))

    # tiny XLA combine: global mean/var -> BN folded into pass-2 weights
    s = jnp.sum(stats, axis=0)                         # (4, Ci)
    inv_m = 1.0 / M
    zg_mean = s[0] * inv_m
    var_g = jnp.maximum(s[1] * inv_m - zg_mean * zg_mean, 0.0)
    scale_g = gamma_g * jax.lax.rsqrt(var_g + _EPS)
    shift_g = beta_g - (zg_mean + bg_vec) * scale_g
    zx_mean = s[2] * inv_m
    var_x = jnp.maximum(s[3] * inv_m - zx_mean * zx_mean, 0.0)
    scale_x = gamma_x * jax.lax.rsqrt(var_x + _EPS)
    shift_x = beta_x - (zx_mean + bx_vec) * scale_x

    wg2 = (wg_f * scale_g[None, :]).astype(in_dtype)
    wx2 = (wx_f * scale_x[None, :]).astype(in_dtype)
    shift_tot = shift_g + scale_g * bg_vec + shift_x + scale_x * bx_vec
    aff = jnp.stack([shift_tot, wpsi_vec], axis=0)     # (2, Ci) f32

    # ---- pass 2: BN_g + BN_x + add + ReLU + psi conv (+ psi partial stats) --
    psi_pre, psum = pl.pallas_call(
        _fused_psi_kernel,
        out_shape=(jax.ShapeDtypeStruct((Mp, 1), f32),
                   jax.ShapeDtypeStruct((nt, 2, 1), f32)),
        grid=(nt,),
        in_specs=[
            pl.BlockSpec((tm, Fg), lambda i: (i, 0)),
            pl.BlockSpec((tm, Fl), lambda i: (i, 0)),
            pl.BlockSpec((Fg, Ci), lambda i: (0, 0)),
            pl.BlockSpec((Fl, Ci), lambda i: (0, 0)),
            pl.BlockSpec((2, Ci), lambda i: (0, 0)),
        ],
        out_specs=(pl.BlockSpec((tm, 1), lambda i: (i, 0)),
                   pl.BlockSpec((1, 2, 1), lambda i: (i, 0, 0))),
        compiler_params=cparams,
    )(g2d, x2d, wg2, wx2, aff)

    ps = jnp.sum(psum, axis=0)                         # (2, 1)
    sum_q, sum_q2 = ps[0, 0], ps[1, 0]
    if Mp > M:                                          # analytic pad removal
        q_pad = jnp.sum(jnp.maximum(shift_tot, 0.0) * wpsi_vec)
        n_pad = float(Mp - M)
        sum_q = sum_q - n_pad * q_pad
        sum_q2 = sum_q2 - n_pad * q_pad * q_pad
    mean_q = sum_q * inv_m
    var_p = jnp.maximum(sum_q2 * inv_m - mean_q * mean_q, 0.0)
    scale_p = gamma_psi * jax.lax.rsqrt(var_p + _EPS)
    shift_p = beta_psi - (mean_q + bpsi) * scale_p
    # pre-sigmoid(row) = scale_p * q + (shift_p + scale_p * bpsi)
    psi_scalars = jnp.stack([scale_p, shift_p + scale_p * bpsi]).astype(f32)

    # ---- pass 3: psi BN + sigmoid + x * psi gating ---------------------------
    out2d = pl.pallas_call(
        _gate_kernel,
        out_shape=jax.ShapeDtypeStruct((Mp, Fl), f32),
        grid=(nt,),
        in_specs=[
            pl.BlockSpec((tm, Fl), lambda i: (i, 0)),
            pl.BlockSpec((tm, 1), lambda i: (i, 0)),
            pl.BlockSpec(memory_space=pltpu.MemorySpace.SMEM),
        ],
        out_specs=pl.BlockSpec((tm, Fl), lambda i: (i, 0)),
        compiler_params=cparams,
    )(x2d_f32, psi_pre, psi_scalars)

    out = out2d[:M].reshape(N, H, W, Fl)
    return jnp.transpose(out, (0, 3, 1, 2))            # back to NCHW


# ----------------------------------------------------------------------------
# Pure-JAX reference (PyTorch semantics, training-mode BN) for self-check.
# ----------------------------------------------------------------------------
def attention_block_ref(params, g_nchw, x_nchw):
    hp = jax.lax.Precision.HIGHEST

    def conv1x1(x, w, b):
        y = jnp.einsum("nchw,oc->nohw", x, w[:, :, 0, 0], precision=hp)
        return y + b[None, :, None, None]

    def bn_train(y, gamma, beta):
        m = jnp.mean(y, axis=(0, 2, 3), keepdims=True)
        v = jnp.mean((y - m) ** 2, axis=(0, 2, 3), keepdims=True)
        y_hat = (y - m) * jax.lax.rsqrt(v + _EPS)
        return y_hat * gamma[None, :, None, None] + beta[None, :, None, None]

    g1 = bn_train(conv1x1(g_nchw, params["wg"], params["bg"]),
                  params["gamma_g"], params["beta_g"])
    x1 = bn_train(conv1x1(x_nchw, params["wx"], params["bx"]),
                  params["gamma_x"], params["beta_x"])
    a = jnp.maximum(g1 + x1, 0.0)
    p = bn_train(conv1x1(a, params["wpsi"], params["bpsi"]),
                 params["gamma_psi"], params["beta_psi"])
    return x_nchw * jax.nn.sigmoid(p)


if __name__ == "__main__":
    N, Fg, Fl, Fint = 2, 32, 32, 16
    H = W = 24            # M = 2*24*24 = 1152 -> 2 tiles of 576, no padding

    key = jax.random.PRNGKey(0)
    ks = jax.random.split(key, 14)
    nrm = lambda k, shape: jax.random.normal(k, shape, jnp.float32)

    g = nrm(ks[0], (N, Fg, H, W))
    x = nrm(ks[1], (N, Fl, H, W))

    params = {
        "wg": 0.2 * nrm(ks[2], (Fint, Fg, 1, 1)),
        "bg": 0.1 * nrm(ks[3], (Fint,)),
        "gamma_g": 1.0 + 0.1 * nrm(ks[4], (Fint,)),
        "beta_g": 0.1 * nrm(ks[5], (Fint,)),
        "wx": 0.2 * nrm(ks[6], (Fint, Fl, 1, 1)),
        "bx": 0.1 * nrm(ks[7], (Fint,)),
        "gamma_x": 1.0 + 0.1 * nrm(ks[8], (Fint,)),
        "beta_x": 0.1 * nrm(ks[9], (Fint,)),
        "wpsi": 0.2 * nrm(ks[10], (1, Fint, 1, 1)),
        "bpsi": 0.1 * nrm(ks[11], (1,)),
        "gamma_psi": 1.0 + 0.1 * nrm(ks[12], (1,)),
        "beta_psi": 0.1 * nrm(ks[13], (1,)),
    }

    ref = attention_block_ref(params, g, x)

    # exact f32 streaming path: tight tolerance
    fwd_f32 = jax.jit(functools.partial(attention_block_forward,
                                        in_dtype=jnp.float32))
    out_f32 = jax.block_until_ready(fwd_f32(params, g, x))
    assert out_f32.shape == (N, Fl, H, W), out_f32.shape
    err_f32 = float(jnp.max(jnp.abs(out_f32 - ref)))
    assert jnp.allclose(out_f32, ref, rtol=5e-3, atol=5e-3), err_f32

    # default bf16-streamed fast path: slightly looser tolerance
    fwd_bf16 = jax.jit(attention_block_forward)
    out_bf16 = jax.block_until_ready(fwd_bf16(params, g, x))
    assert out_bf16.shape == (N, Fl, H, W), out_bf16.shape
    err_bf16 = float(jnp.max(jnp.abs(out_bf16 - ref)))
    assert jnp.allclose(out_bf16, ref, rtol=1e-2, atol=1e-2), err_bf16

    print("KERNEL_OK")
</pallas_src>

<mosaic_0001>
module attributes {stable_mosaic.version = 11 : i64} {
  func.func @_stats_kernel(%arg0: i32, %arg1: memref<576x32xf32, #tpu.memory_space<vmem>>, %arg2: memref<576x32xf32, #tpu.memory_space<vmem>>, %arg3: memref<32x128xf32, #tpu.memory_space<vmem>>, %arg4: memref<32x128xf32, #tpu.memory_space<vmem>>, %arg5: memref<1x4x128xf32, #tpu.memory_space<vmem>>) attributes {dimension_semantics = [#tpu.dimension_semantics<parallel>], iteration_bounds = array<i64: 2>, scalar_prefetch = 0 : i64, scratch_operands = 0 : i64, tpu.core_type = #tpu.core_type<tc>, window_params = [{transform_indices = @transform_0, window_bounds = array<i64: 576, 32>}, {transform_indices = @transform_1, window_bounds = array<i64: 576, 32>}, {pipeline_mode = #tpu.pipeline_mode<synchronous>, transform_indices = @transform_2, window_bounds = array<i64: 32, 128>}, {pipeline_mode = #tpu.pipeline_mode<synchronous>, transform_indices = @transform_3, window_bounds = array<i64: 32, 128>}, {transform_indices = @transform_4, window_bounds = array<i64: 1, 4, 128>}]} {
    %c0 = arith.constant 0 : index
    %c0_0 = arith.constant 0 : index
    %0 = vector.load %arg1[%c0, %c0_0] : memref<576x32xf32, #tpu.memory_space<vmem>>, vector<576x32xf32>
    %c0_1 = arith.constant 0 : index
    %c0_2 = arith.constant 0 : index
    %1 = vector.load %arg3[%c0_1, %c0_2] : memref<32x128xf32, #tpu.memory_space<vmem>>, vector<32x128xf32>
    %cst = arith.constant dense<0.000000e+00> : vector<576x128xf32>
    %2 = tpu.matmul %0, %1, %cst {dimension_numbers = #tpu.dot_dimension_numbers<[1], [0], [0], [1], [0, 0, 1, 1], [], []>} : vector<576x32xf32>, vector<32x128xf32>, vector<576x128xf32> -> vector<576x128xf32>
    %c0_3 = arith.constant 0 : index
    %c0_4 = arith.constant 0 : index
    %3 = vector.load %arg2[%c0_3, %c0_4] : memref<576x32xf32, #tpu.memory_space<vmem>>, vector<576x32xf32>
    %c0_5 = arith.constant 0 : index
    %c0_6 = arith.constant 0 : index
    %4 = vector.load %arg4[%c0_5, %c0_6] : memref<32x128xf32, #tpu.memory_space<vmem>>, vector<32x128xf32>
    %cst_7 = arith.constant dense<0.000000e+00> : vector<576x128xf32>
    %5 = tpu.matmul %3, %4, %cst_7 {dimension_numbers = #tpu.dot_dimension_numbers<[1], [0], [0], [1], [0, 0, 1, 1], [], []>} : vector<576x32xf32>, vector<32x128xf32>, vector<576x128xf32> -> vector<576x128xf32>
    %cst_8 = arith.constant dense<0.000000e+00> : vector<128xf32>
    %6 = vector.multi_reduction <add>, %2, %cst_8 [0] : vector<576x128xf32> to vector<128xf32>
    %7 = vector.shape_cast %6 : vector<128xf32> to vector<1x128xf32>
    %8 = arith.mulf %2, %2 : vector<576x128xf32>
    %cst_9 = arith.constant dense<0.000000e+00> : vector<128xf32>
    %9 = vector.multi_reduction <add>, %8, %cst_9 [0] : vector<576x128xf32> to vector<128xf32>
    %10 = vector.shape_cast %9 : vector<128xf32> to vector<1x128xf32>
    %cst_10 = arith.constant dense<0.000000e+00> : vector<128xf32>
    %11 = vector.multi_reduction <add>, %5, %cst_10 [0] : vector<576x128xf32> to vector<128xf32>
    %12 = vector.shape_cast %11 : vector<128xf32> to vector<1x128xf32>
    %13 = arith.mulf %5, %5 : vector<576x128xf32>
    %cst_11 = arith.constant dense<0.000000e+00> : vector<128xf32>
    %14 = vector.multi_reduction <add>, %13, %cst_11 [0] : vector<576x128xf32> to vector<128xf32>
    %15 = vector.shape_cast %14 : vector<128xf32> to vector<1x128xf32>
    %16 = tpu.concatenate %7, %10, %12, %15 in 0 : vector<1x128xf32>, vector<1x128xf32>, vector<1x128xf32>, vector<1x128xf32> -> vector<4x128xf32>
    %c0_12 = arith.constant 0 : index
    %c0_13 = arith.constant 0 : index
    %c0_14 = arith.constant 0 : index
    %17 = vector.load %arg5[%c0_12, %c0_13, %c0_14] : memref<1x4x128xf32, #tpu.memory_space<vmem>>, vector<1x4x128xf32>
    %18 = vector.shape_cast %17 : vector<1x4x128xf32> to vector<4x128xf32>
    %19 = vector.shape_cast %16 : vector<4x128xf32> to vector<1x4x128xf32>
    tpu.vector_store %arg5[%c0_12, %c0_13, %c0_14], %19 {strides = array<i32>} : memref<1x4x128xf32, #tpu.memory_space<vmem>>, vector<1x4x128xf32>,
    return
  }
  func.func @transform_0(%arg0: i32) -> (i32, i32) {
    %c0_i32 = arith.constant 0 : i32
    %c0_i32_0 = arith.constant 0 : i32
    return %arg0, %c0_i32 : i32, i32
  }
  func.func @transform_1(%arg0: i32) -> (i32, i32) {
    %c0_i32 = arith.constant 0 : i32
    %c0_i32_0 = arith.constant 0 : i32
    return %arg0, %c0_i32 : i32, i32
  }
  func.func @transform_2(%arg0: i32) -> (i32, i32) {
    %c0_i32 = arith.constant 0 : i32
    %c0_i32_0 = arith.constant 0 : i32
    %c0_i32_1 = arith.constant 0 : i32
    return %c0_i32, %c0_i32_0 : i32, i32
  }
  func.func @transform_3(%arg0: i32) -> (i32, i32) {
    %c0_i32 = arith.constant 0 : i32
    %c0_i32_0 = arith.constant 0 : i32
    %c0_i32_1 = arith.constant 0 : i32
    return %c0_i32, %c0_i32_0 : i32, i32
  }
  func.func @transform_4(%arg0: i32) -> (i32, i32, i32) {
    %c0_i32 = arith.constant 0 : i32
    %c0_i32_0 = arith.constant 0 : i32
    %c0_i32_1 = arith.constant 0 : i32
    return %arg0, %c0_i32, %c0_i32_0 : i32, i32, i32
  }
}

module attributes {stable_mosaic.version = 11 : i64} {
  func.func @_fused_psi_kernel(%arg0: i32, %arg1: memref<576x32xf32, #tpu.memory_space<vmem>>, %arg2: memref<576x32xf32, #tpu.memory_space<vmem>>, %arg3: memref<32x128xf32, #tpu.memory_space<vmem>>, %arg4: memref<32x128xf32, #tpu.memory_space<vmem>>, %arg5: memref<2x128xf32, #tpu.memory_space<vmem>>, %arg6: memref<576x1xf32, #tpu.memory_space<vmem>>, %arg7: memref<1x2x1xf32, #tpu.memory_space<vmem>>) attributes {dimension_semantics = [#tpu.dimension_semantics<parallel>], iteration_bounds = array<i64: 2>, scalar_prefetch = 0 : i64, scratch_operands = 0 : i64, tpu.core_type = #tpu.core_type<tc>, window_params = [{transform_indices = @transform_0, window_bounds = array<i64: 576, 32>}, {transform_indices = @transform_1, window_bounds = array<i64: 576, 32>}, {pipeline_mode = #tpu.pipeline_mode<synchronous>, transform_indices = @transform_2, window_bounds = array<i64: 32, 128>}, {pipeline_mode = #tpu.pipeline_mode<synchronous>, transform_indices = @transform_3, window_bounds = array<i64: 32, 128>}, {pipeline_mode = #tpu.pipeline_mode<synchronous>, transform_indices = @transform_4, window_bounds = array<i64: 2, 128>}, {transform_indices = @transform_5, window_bounds = array<i64: 576, 1>}, {transform_indices = @transform_6, window_bounds = array<i64: 1, 2, 1>}]} {
    %c0 = arith.constant 0 : index
    %c0_0 = arith.constant 0 : index
    %0 = vector.load %arg1[%c0, %c0_0] : memref<576x32xf32, #tpu.memory_space<vmem>>, vector<576x32xf32>
    %c0_1 = arith.constant 0 : index
    %c0_2 = arith.constant 0 : index
    %1 = vector.load %arg3[%c0_1, %c0_2] : memref<32x128xf32, #tpu.memory_space<vmem>>, vector<32x128xf32>
    %cst = arith.constant dense<0.000000e+00> : vector<576x128xf32>
    %2 = tpu.matmul %0, %1, %cst {dimension_numbers = #tpu.dot_dimension_numbers<[1], [0], [0], [1], [0, 0, 1, 1], [], []>} : vector<576x32xf32>, vector<32x128xf32>, vector<576x128xf32> -> vector<576x128xf32>
    %c0_3 = arith.constant 0 : index
    %c0_4 = arith.constant 0 : index
    %3 = vector.load %arg2[%c0_3, %c0_4] : memref<576x32xf32, #tpu.memory_space<vmem>>, vector<576x32xf32>
    %c0_5 = arith.constant 0 : index
    %c0_6 = arith.constant 0 : index
    %4 = vector.load %arg4[%c0_5, %c0_6] : memref<32x128xf32, #tpu.memory_space<vmem>>, vector<32x128xf32>
    %cst_7 = arith.constant dense<0.000000e+00> : vector<576x128xf32>
    %5 = tpu.matmul %3, %4, %cst_7 {dimension_numbers = #tpu.dot_dimension_numbers<[1], [0], [0], [1], [0, 0, 1, 1], [], []>} : vector<576x32xf32>, vector<32x128xf32>, vector<576x128xf32> -> vector<576x128xf32>
    %6 = arith.addf %2, %5 : vector<576x128xf32>
    %c0_8 = arith.constant 0 : index
    %c0_9 = arith.constant 0 : index
    %7 = vector.load %arg5[%c0_8, %c0_9] : memref<2x128xf32, #tpu.memory_space<vmem>>, vector<1x128xf32>
    %8 = vector.broadcast %7 : vector<1x128xf32> to vector<576x128xf32>
    %9 = arith.addf %6, %8 : vector<576x128xf32>
    %cst_10 = arith.constant 0.000000e+00 : f32
    %10 = vector.broadcast %cst_10 : f32 to vector<576x128xf32>
    %11 = arith.maximumf %9, %10 : vector<576x128xf32>
    %c1 = arith.constant 1 : index
    %c0_11 = arith.constant 0 : index
    %12 = vector.load %arg5[%c1, %c0_11] : memref<2x128xf32, #tpu.memory_space<vmem>>, vector<1x128xf32>
    %13 = vector.broadcast %12 : vector<1x128xf32> to vector<576x128xf32>
    %14 = arith.mulf %11, %13 : vector<576x128xf32>
    %cst_12 = arith.constant dense<0.000000e+00> : vector<576xf32>
    %15 = vector.multi_reduction <add>, %14, %cst_12 [1] : vector<576x128xf32> to vector<576xf32>
    %16 = vector.shape_cast %15 : vector<576xf32> to vector<576x1xf32>
    %c0_13 = arith.constant 0 : index
    %c0_14 = arith.constant 0 : index
    %17 = vector.load %arg6[%c0_13, %c0_14] : memref<576x1xf32, #tpu.memory_space<vmem>>, vector<576x1xf32>
    tpu.vector_store %arg6[%c0_13, %c0_14], %16 {strides = array<i32>} : memref<576x1xf32, #tpu.memory_space<vmem>>, vector<576x1xf32>,
    %cst_15 = arith.constant dense<0.000000e+00> : vector<1xf32>
    %18 = vector.multi_reduction <add>, %16, %cst_15 [0] : vector<576x1xf32> to vector<1xf32>
    %19 = vector.shape_cast %18 : vector<1xf32> to vector<1x1xf32>
    %20 = arith.mulf %16, %16 : vector<576x1xf32>
    %cst_16 = arith.constant dense<0.000000e+00> : vector<1xf32>
    %21 = vector.multi_reduction <add>, %20, %cst_16 [0] : vector<576x1xf32> to vector<1xf32>
    %22 = vector.shape_cast %21 : vector<1xf32> to vector<1x1xf32>
    %23 = tpu.concatenate %19, %22 in 0 : vector<1x1xf32>, vector<1x1xf32> -> vector<2x1xf32>
    %c0_17 = arith.constant 0 : index
    %c0_18 = arith.constant 0 : index
    %c0_19 = arith.constant 0 : index
    %24 = vector.load %arg7[%c0_17, %c0_18, %c0_19] : memref<1x2x1xf32, #tpu.memory_space<vmem>>, vector<1x2x1xf32>
    %25 = vector.shape_cast %24 : vector<1x2x1xf32> to vector<2x1xf32>
    %26 = vector.shape_cast %23 : vector<2x1xf32> to vector<1x2x1xf32>
    tpu.vector_store %arg7[%c0_17, %c0_18, %c0_19], %26 {strides = array<i32>} : memref<1x2x1xf32, #tpu.memory_space<vmem>>, vector<1x2x1xf32>,
    return
  }
  func.func @transform_0(%arg0: i32) -> (i32, i32) {
    %c0_i32 = arith.constant 0 : i32
    %c0_i32_0 = arith.constant 0 : i32
    return %arg0, %c0_i32 : i32, i32
  }
  func.func @transform_1(%arg0: i32) -> (i32, i32) {
    %c0_i32 = arith.constant 0 : i32
    %c0_i32_0 = arith.constant 0 : i32
    return %arg0, %c0_i32 : i32, i32
  }
  func.func @transform_2(%arg0: i32) -> (i32, i32) {
    %c0_i32 = arith.constant 0 : i32
    %c0_i32_0 = arith.constant 0 : i32
    %c0_i32_1 = arith.constant 0 : i32
    return %c0_i32, %c0_i32_0 : i32, i32
  }
  func.func @transform_3(%arg0: i32) -> (i32, i32) {
    %c0_i32 = arith.constant 0 : i32
    %c0_i32_0 = arith.constant 0 : i32
    %c0_i32_1 = arith.constant 0 : i32
    return %c0_i32, %c0_i32_0 : i32, i32
  }
  func.func @transform_4(%arg0: i32) -> (i32, i32) {
    %c0_i32 = arith.constant 0 : i32
    %c0_i32_0 = arith.constant 0 : i32
    %c0_i32_1 = arith.constant 0 : i32
    return %c0_i32, %c0_i32_0 : i32, i32
  }
  func.func @transform_5(%arg0: i32) -> (i32, i32) {
    %c0_i32 = arith.constant 0 : i32
    %c0_i32_0 = arith.constant 0 : i32
    return %arg0, %c0_i32 : i32, i32
  }
  func.func @transform_6(%arg0: i32) -> (i32, i32, i32) {
    %c0_i32 = arith.constant 0 : i32
    %c0_i32_0 = arith.constant 0 : i32
    %c0_i32_1 = arith.constant 0 : i32
    return %arg0, %c0_i32, %c0_i32_0 : i32, i32, i32
  }
}

module attributes {stable_mosaic.version = 11 : i64} {
  func.func @_gate_kernel(%arg0: i32, %arg1: memref<576x32xf32, #tpu.memory_space<vmem>>, %arg2: memref<576x1xf32, #tpu.memory_space<vmem>>, %arg3: memref<2xf32, #tpu.memory_space<smem>>, %arg4: memref<576x32xf32, #tpu.memory_space<vmem>>) attributes {dimension_semantics = [#tpu.dimension_semantics<parallel>], iteration_bounds = array<i64: 2>, scalar_prefetch = 0 : i64, scratch_operands = 0 : i64, tpu.core_type = #tpu.core_type<tc>, window_params = [{transform_indices = @transform_0, window_bounds = array<i64: 576, 32>}, {transform_indices = @transform_1, window_bounds = array<i64: 576, 1>}, {transform_indices = @transform_2, window_bounds = array<i64: 2>}, {transform_indices = @transform_3, window_bounds = array<i64: 576, 32>}]} {
    %c0 = arith.constant 0 : index
    %c0_0 = arith.constant 0 : index
    %0 = vector.load %arg2[%c0, %c0_0] : memref<576x1xf32, #tpu.memory_space<vmem>>, vector<576x1xf32>
    %c0_1 = arith.constant 0 : index
    %1 = memref.load %arg3[%c0_1] : memref<2xf32, #tpu.memory_space<smem>>
    %2 = vector.broadcast %1 : f32 to vector<576x1xf32>
    %3 = arith.mulf %0, %2 : vector<576x1xf32>
    %c1 = arith.constant 1 : index
    %4 = memref.load %arg3[%c1] : memref<2xf32, #tpu.memory_space<smem>>
    %5 = vector.broadcast %4 : f32 to vector<576x1xf32>
    %6 = arith.addf %3, %5 : vector<576x1xf32>
    %7 = arith.negf %6 : vector<576x1xf32>
    %8 = math.exp %7 : vector<576x1xf32>
    %cst = arith.constant 1.000000e+00 : f32
    %9 = vector.broadcast %cst : f32 to vector<576x1xf32>
    %10 = arith.addf %9, %8 : vector<576x1xf32>
    %11 = arith.divf %9, %10 : vector<576x1xf32>
    %c0_2 = arith.constant 0 : index
    %c0_3 = arith.constant 0 : index
    %12 = vector.load %arg1[%c0_2, %c0_3] : memref<576x32xf32, #tpu.memory_space<vmem>>, vector<576x32xf32>
    %13 = vector.broadcast %11 : vector<576x1xf32> to vector<576x32xf32>
    %14 = arith.mulf %12, %13 : vector<576x32xf32>
    %c0_4 = arith.constant 0 : index
    %c0_5 = arith.constant 0 : index
    %15 = vector.load %arg4[%c0_4, %c0_5] : memref<576x32xf32, #tpu.memory_space<vmem>>, vector<576x32xf32>
    tpu.vector_store %arg4[%c0_4, %c0_5], %14 {strides = array<i32>} : memref<576x32xf32, #tpu.memory_space<vmem>>, vector<576x32xf32>,
    return
  }
  func.func @transform_0(%arg0: i32) -> (i32, i32) {
    %c0_i32 = arith.constant 0 : i32
    %c0_i32_0 = arith.constant 0 : i32
    return %arg0, %c0_i32 : i32, i32
  }
  func.func @transform_1(%arg0: i32) -> (i32, i32) {
    %c0_i32 = arith.constant 0 : i32
    %c0_i32_0 = arith.constant 0 : i32
    return %arg0, %c0_i32 : i32, i32
  }
  func.func @transform_2(%arg0: i32) -> i32 {
    %c0_i32 = arith.constant 0 : i32
    %c0_i32_0 = arith.constant 0 : i32
    return %c0_i32 : i32
  }
  func.func @transform_3(%arg0: i32) -> (i32, i32) {
    %c0_i32 = arith.constant 0 : i32
    %c0_i32_0 = arith.constant 0 : i32
    return %arg0, %c0_i32 : i32, i32
  }
}

</mosaic_0001>

<llo_original>
// kernel: attention_block_forward.3
$region0: #{attention_block_forward.3}
  #allocation0 [shape = 'u32[]', space=smem, size = 0x4, offset = 0x4, fixed_abs, tag = 'smem constant byte address 0x4 - core index']
  #allocation1 [shape = 'u32[144,128]{1,0:T(1,128)}', space=vmem, size = 0x12000, scoped, tag = 'internal scratch']
  %s0 = inlined_call_operand.hbm [shape: f32[1152,32], index: 0, kind: input, shape index: {}]
  %s1 = inlined_call_operand.hbm [shape: f32[1152,32], index: 1, kind: input, shape index: {}]
  %s2 = inlined_call_operand.vmem [shape: f32[32,128], index: 2, kind: input, shape index: {}]
  %s3 = inlined_call_operand.vmem [shape: f32[32,128], index: 3, kind: input, shape index: {}]
  %s4 = inlined_call_operand.vmem [shape: f32[2,4,128], index: 4, kind: output, shape index: {}]
  %s5 = sld [smem:[#allocation0]]
  $region57: #{attention_block_forward.3} parent=0
    _
  %s7 = ssub.s32 1, %s5
  %s8 = scalar_select 0, %s7, %s5
  $region1: #{attention_block_forward.3} parent=0
    #allocation2 [shape = 'u8[589824]{0}', space=vmem, size = 0x90000, scoped, tag = 'input window, operand 0']
    #allocation3 [shape = 's32[2]{0}', space=sflag, size = 0x8, scoped, tag = 'scoped memory for attention_block_forward.3']
    #allocation4 [shape = 'u8[589824]{0}', space=vmem, size = 0x90000, scoped, tag = 'input window, operand 1']
    #allocation5 [shape = 's32[2]{0}', space=sflag, size = 0x8, scoped, tag = 'scoped memory for attention_block_forward.3']
    %9 = vsyncpa [#allocation3], 0
    %s10 = scalar_lea.sflag [#allocation3], 1
    %11 = vsyncpa %s10, 0
    %12 = vsyncpa [#allocation5], 0
    %s13 = scalar_lea.sflag [#allocation5], 1
    %14 = vsyncpa %s13, 0
    loop: start=0, step=1, limit=4
    $region2: #{attention_block_forward.3} parent=1 // loop_pre_header
      _
    $region3: #{attention_block_forward.3} parent=1 // loop_header
      %s16 = sphi 0, %s20
      %p17 = scmp.ge.s32.totalorder %s16, 4
      %s26 = sphi 0, %s28
      %s29 = sphi 0, %s26
      %s30 = sphi 0, %s29
      %s46 = sphi 0, %s30
      %s52 = sphi 0, %s54
      %s55 = sphi 0, %s52
      %s56 = sphi 0, %s55
      %s72 = sphi 0, %s56
      %s76 = sphi 0, %s76
      %s78 = sphi 0, %s76
      %s79 = sphi 0, %s78
      %s93 = sphi 0, %s79
      %s97 = sphi 0, %s97
      %s99 = sphi 0, %s97
      %s100 = sphi 0, %s99
      %s114 = sphi 0, %s100
      %s120 = sphi 0, %s122
      %s123 = sphi 0, %s120
      %s124 = sphi 0, %s123
      %s140 = sphi 0, %s124
    $region4: #{attention_block_forward.3} parent=1 // loop_header_branch
      %19 = sbr.rel (%p17) target = $region8
    $region5: #{attention_block_forward.3} parent=1 // loop_body
      %s21 = ssub.s32 %s16, 1
      %s22 = ssub.s32 %s16, 2
      %s23 = sadd.s32 %s16, 1
      %s24 = ssub.s32 %s16, %s23
      %p25 = scmp.eq.s32.totalorder %s24, 0
      %s27 = sadd.s32 %s26, 1
      %s28 = scalar_select %p25, %s26, %s27
      %p31 = pneg %p25
      %p32 = scmp.eq.s32.totalorder %s16, 1
      %p33 = por %p31, %p32
      %p34 = scmp.ne.s32.totalorder %s26, %s29
      %p35 = scmp.eq.s32.totalorder %s16, 0
      %p36 = por %p34, %p35
      %p37 = scmp.ne.s32.totalorder %s26, %s29
      %p38 = scmp.eq.s32.totalorder %s21, 1
      %p39 = por %p37, %p38
      %p40 = scmp.ne.s32.totalorder %s29, %s30
      %p41 = scmp.eq.s32.totalorder %s21, 0
      %p42 = por %p40, %p41
      %p43 = scmp.ne.s32.totalorder %s29, %s30
      %p44 = scmp.eq.s32.totalorder %s22, 1
      %p45 = por %p43, %p44
      %p47 = scmp.ne.s32.totalorder %s30, %s46
      %p48 = scmp.eq.s32.totalorder %s22, 0
      %p49 = por %p47, %p48
      %s50 = ssub.s32 %s16, %s23
      %p51 = scmp.eq.s32.totalorder %s50, 0
      %s53 = sadd.s32 %s52, 1
      %s54 = scalar_select %p51, %s52, %s53
      %p57 = pneg %p51
      %p58 = scmp.eq.s32.totalorder %s16, 1
      %p59 = por %p57, %p58
      %p60 = scmp.ne.s32.totalorder %s52, %s55
      %p61 = scmp.eq.s32.totalorder %s16, 0
      %p62 = por %p60, %p61
      %p63 = scmp.ne.s32.totalorder %s52, %s55
      %p64 = scmp.eq.s32.totalorder %s21, 1
      %p65 = por %p63, %p64
      %p66 = scmp.ne.s32.totalorder %s55, %s56
      %p67 = scmp.eq.s32.totalorder %s21, 0
      %p68 = por %p66, %p67
      %p69 = scmp.ne.s32.totalorder %s55, %s56
      %p70 = scmp.eq.s32.totalorder %s22, 1
      %p71 = por %p69, %p70
      %p73 = scmp.ne.s32.totalorder %s56, %s72
      %p74 = scmp.eq.s32.totalorder %s22, 0
      %p75 = por %p73, %p74
      %s77 = sadd.s32 %s76, 1
      %p80 = scmp.eq.s32.totalorder %s16, 1
      %p81 = scmp.ne.s32.totalorder %s76, %s78
      %p82 = scmp.eq.s32.totalorder %s16, 0
      %p83 = por %p81, %p82
      %p84 = scmp.ne.s32.totalorder %s76, %s78
      %p85 = scmp.eq.s32.totalorder %s21, 1
      %p86 = por %p84, %p85
      %p87 = scmp.ne.s32.totalorder %s78, %s79
      %p88 = scmp.eq.s32.totalorder %s21, 0
      %p89 = por %p87, %p88
      %p90 = scmp.ne.s32.totalorder %s78, %s79
      %p91 = scmp.eq.s32.totalorder %s22, 1
      %p92 = por %p90, %p91
      %p94 = scmp.ne.s32.totalorder %s79, %s93
      %p95 = scmp.eq.s32.totalorder %s22, 0
      %p96 = por %p94, %p95
      %s98 = sadd.s32 %s97, 1
      %p101 = scmp.eq.s32.totalorder %s16, 1
      %p102 = scmp.ne.s32.totalorder %s97, %s99
      %p103 = scmp.eq.s32.totalorder %s16, 0
      %p104 = por %p102, %p103
      %p105 = scmp.ne.s32.totalorder %s97, %s99
      %p106 = scmp.eq.s32.totalorder %s21, 1
      %p107 = por %p105, %p106
      %p108 = scmp.ne.s32.totalorder %s99, %s100
      %p109 = scmp.eq.s32.totalorder %s21, 0
      %p110 = por %p108, %p109
      %p111 = scmp.ne.s32.totalorder %s99, %s100
      %p112 = scmp.eq.s32.totalorder %s22, 1
      %p113 = por %p111, %p112
      %p115 = scmp.ne.s32.totalorder %s100, %s114
      %p116 = scmp.eq.s32.totalorder %s22, 0
      %p117 = por %p115, %p116
      %s118 = ssub.s32 %s16, %s23
      %p119 = scmp.eq.s32.totalorder %s118, 0
      %s121 = sadd.s32 %s120, 1
      %s122 = scalar_select %p119, %s120, %s121
      %p125 = pneg %p119
      %p126 = scmp.eq.s32.totalorder %s16, 1
      %p127 = por %p125, %p126
      %p128 = scmp.ne.s32.totalorder %s120, %s123
      %p129 = scmp.eq.s32.totalorder %s16, 0
      %p130 = por %p128, %p129
      %p131 = scmp.ne.s32.totalorder %s120, %s123
      %p132 = scmp.eq.s32.totalorder %s21, 1
      %p133 = por %p131, %p132
      %p134 = scmp.ne.s32.totalorder %s123, %s124
      %p135 = scmp.eq.s32.totalorder %s21, 0
      %p136 = por %p134, %p135
      %p137 = scmp.ne.s32.totalorder %s123, %s124
      %p138 = scmp.eq.s32.totalorder %s22, 1
      %p139 = por %p137, %p138
      %p141 = scmp.ne.s32.totalorder %s124, %s140
      %p142 = scmp.eq.s32.totalorder %s22, 0
      %p143 = por %p141, %p142
      %p144 = scmp.le.s32.totalorder 1, %s16
      %p145 = scmp.lt.s32.totalorder %s16, 3
      %p146 = pnand %p144, %p145
      %p147 = pneg %p146
      // Predicated region
      $region9: #{attention_block_forward.3} parent=5 // pred_check
        _
      $region10: #{attention_block_forward.3} parent=5 // pred_check_branch
        %149 = sbr.rel (%p146) target = $region12
      $region11: #{attention_block_forward.3} parent=5 // pred_region
        %s150 = ssub.s32 %s16, 1
        // Predicated region
        $region13: #{attention_block_forward.3} parent=11 // pred_check
          %p151 = pneg %p89
        $region14: #{attention_block_forward.3} parent=11 // pred_check_branch
          %153 = sbr.rel (%p151) target = $region16
        $region15: #{attention_block_forward.3} parent=11 // pred_region
          _
        $region16: #{attention_block_forward.3} parent=11 // pred_fallthru
          _
        // Predicated region
        $region17: #{attention_block_forward.3} parent=11 // pred_check
          %p154 = pneg %p110
        $region18: #{attention_block_forward.3} parent=11 // pred_check_branch
          %156 = sbr.rel (%p154) target = $region20
        $region19: #{attention_block_forward.3} parent=11 // pred_region
          _
        $region20: #{attention_block_forward.3} parent=11 // pred_fallthru
          _
      $region12: #{attention_block_forward.3} parent=5 // pred_fallthru
        _
      %p157 = scmp.lt.s32.totalorder %s16, 2
      // Predicated region
      $region21: #{attention_block_forward.3} parent=5 // pred_check
        %p158 = pneg %p157
      $region22: #{attention_block_forward.3} parent=5 // pred_check_branch
        %160 = sbr.rel (%p158) target = $region24
      $region23: #{attention_block_forward.3} parent=5 // pred_region
        // Predicated region
        $region25: #{attention_block_forward.3} parent=23 // pred_check
          %p161 = pneg %p36
        $region26: #{attention_block_forward.3} parent=23 // pred_check_branch
          %163 = sbr.rel (%p161) target = $region28
        $region27: #{attention_block_forward.3} parent=23 // pred_region
          %s164 = sand.u32 %s26, 1
          %s165 = scalar_lea.sflag [#allocation3], %s164
          %s166 = sand.u32 %s26, 1
          %s167 = smul.addr %s166, 576
          %s168 = scalar_lea.vmem [#allocation2], %s167
          %s169 = smul.u32 72, %s16
          %s171 = ssub.s32 9216, 9216
          %172 = vsyncadd %s165, %s171
          %s173 = smul.addr %s169, 128
          %s174 = scalar_lea.hbm %s0, %s173
          %s175 = sshll.u32 %s168, 4
          %s176 = int_to_ptr.vmem [resolvable:$true] %s175
          %181 = dma.hbm_to_vmem [thread:$0]  %s174, 9216, %s176, %s165, 128, 128, 8
        $region28: #{attention_block_forward.3} parent=23 // pred_fallthru
          _
        // Predicated region
        $region29: #{attention_block_forward.3} parent=23 // pred_check
          %p182 = pneg %p62
        $region30: #{attention_block_forward.3} parent=23 // pred_check_branch
          %184 = sbr.rel (%p182) target = $region32
        $region31: #{attention_block_forward.3} parent=23 // pred_region
          %s185 = sand.u32 %s52, 1
          %s186 = scalar_lea.sflag [#allocation5], %s185
          %s187 = sand.u32 %s52, 1
          %s188 = smul.addr %s187, 576
          %s189 = scalar_lea.vmem [#allocation4], %s188
          %s190 = smul.u32 72, %s16
          %s192 = ssub.s32 9216, 9216
          %193 = vsyncadd %s186, %s192
          %s194 = smul.addr %s190, 128
          %s195 = scalar_lea.hbm %s1, %s194
          %s196 = sshll.u32 %s189, 4
          %s197 = int_to_ptr.vmem [resolvable:$true] %s196
          %202 = dma.hbm_to_vmem [thread:$0]  %s195, 9216, %s197, %s186, 128, 128, 8
        $region32: #{attention_block_forward.3} parent=23 // pred_fallthru
          _
      $region24: #{attention_block_forward.3} parent=5 // pred_fallthru
        _
      %p203 = scmp.le.s32.totalorder 1, %s16
      %p204 = scmp.lt.s32.totalorder %s16, 3
      %p205 = pnand %p203, %p204
      %p206 = pneg %p205
      // Predicated region
      $region33: #{attention_block_forward.3} parent=5 // pred_check
        _
      $region34: #{attention_block_forward.3} parent=5 // pred_check_branch
        %208 = sbr.rel (%p205) target = $region36
      $region35: #{attention_block_forward.3} parent=5 // pred_region
        %s209 = ssub.s32 %s16, 1
        %s210 = sand.u32 %s29, 1
        %s211 = scalar_lea.sflag [#allocation3], %s210
        %s212 = sand.u32 %s29, 1
        %s213 = smul.addr %s212, 576
        %s214 = scalar_lea.vmem [#allocation2], %s213
        // Predicated region
        $region37: #{attention_block_forward.3} parent=35 // pred_check
          %p215 = pneg %p42
        $region38: #{attention_block_forward.3} parent=35 // pred_check_branch
          %217 = sbr.rel (%p215) target = $region40
        $region39: #{attention_block_forward.3} parent=35 // pred_region
          %218 = dma.done %s211, 9216
        $region40: #{attention_block_forward.3} parent=35 // pred_fallthru
          _
        %s219 = sand.u32 %s55, 1
        %s220 = scalar_lea.sflag [#allocation5], %s219
        %s221 = sand.u32 %s55, 1
        %s222 = smul.addr %s221, 576
        %s223 = scalar_lea.vmem [#allocation4], %s222
        // Predicated region
        $region41: #{attention_block_forward.3} parent=35 // pred_check
          %p224 = pneg %p68
        $region42: #{attention_block_forward.3} parent=35 // pred_check_branch
          %226 = sbr.rel (%p224) target = $region44
        $region43: #{attention_block_forward.3} parent=35 // pred_region
          %227 = dma.done %s220, 9216
        $region44: #{attention_block_forward.3} parent=35 // pred_fallthru
          _
        %s228 = sand.u32 %s29, 1
        %s229 = scalar_lea.sflag [#allocation3], %s228
        %s230 = sand.u32 %s29, 1
        %s231 = smul.addr %s230, 576
        %s232 = scalar_lea.vmem [#allocation2], %s231
        %p233 = pneg %p42
        %p234 = pneg %p39
        %s235 = sand.u32 %s55, 1
        %s236 = scalar_lea.sflag [#allocation5], %s235
        %s237 = sand.u32 %s55, 1
        %s238 = smul.addr %s237, 576
        %s239 = scalar_lea.vmem [#allocation4], %s238
        %p240 = pneg %p68
        %p241 = pneg %p65
        %p242 = pneg %p89
        %p243 = pneg %p86
        %p244 = pneg %p110
        %p245 = pneg %p107
        %p246 = pneg %p136
        %p247 = pneg %p133
        %p248 = scmp.lt.s32.totalorder %s21, 1
        %s249 = scalar_select %p248, %s21, 1
        %s250 = smul.addr %s249, 4
        %s251 = scalar_lea.vmem %s4, %s250
        %s252 = smul.u32 72, %s21
        %s253 = smul.u32 72, %s21
        %p254 = scmp.lt.s32.totalorder %s21, 1
        %s255 = scalar_select %p254, %s21, 1
        %s256 = smul.addr %s255, 4
        %s257 = scalar_lea.vmem %s4, %s256
        %v258 = vld [vmem:[%s214] sm:$0xff]
        %v259 = vld [vmem:[%s214 + $0x8] sm:$0xff]
        %v260 = vld [vmem:[%s214 + $0x10] sm:$0xff]
        %v261 = vld [vmem:[%s214 + $0x18] sm:$0xff]
        %v262 = vld [vmem:[%s214 + $0x20] sm:$0xff]
        %v263 = vld [vmem:[%s214 + $0x28] sm:$0xff]
        %v264 = vld [vmem:[%s214 + $0x30] sm:$0xff]
        %v265 = vld [vmem:[%s214 + $0x38] sm:$0xff]
        %v266 = vld [vmem:[%s214 + $0x40] sm:$0xff]
        %v267 = vld [vmem:[%s214 + $0x48] sm:$0xff]
        %v268 = vld [vmem:[%s214 + $0x50] sm:$0xff]
        %v269 = vld [vmem:[%s214 + $0x58] sm:$0xff]
        %v270 = vld [vmem:[%s214 + $0x60] sm:$0xff]
        %v271 = vld [vmem:[%s214 + $0x68] sm:$0xff]
        %v272 = vld [vmem:[%s214 + $0x70] sm:$0xff]
        %v273 = vld [vmem:[%s214 + $0x78] sm:$0xff]
        %v274 = vld [vmem:[%s214 + $0x80] sm:$0xff]
        %v275 = vld [vmem:[%s214 + $0x88] sm:$0xff]
        %v276 = vld [vmem:[%s214 + $0x90] sm:$0xff]
        %v277 = vld [vmem:[%s214 + $0x98] sm:$0xff]
        %v278 = vld [vmem:[%s214 + $0xa0] sm:$0xff]
        %v279 = vld [vmem:[%s214 + $0xa8] sm:$0xff]
        %v280 = vld [vmem:[%s214 + $0xb0] sm:$0xff]
        %v281 = vld [vmem:[%s214 + $0xb8] sm:$0xff]
        %v282 = vld [vmem:[%s214 + $0xc0] sm:$0xff]
        %v283 = vld [vmem:[%s214 + $0xc8] sm:$0xff]
        %v284 = vld [vmem:[%s214 + $0xd0] sm:$0xff]
        %v285 = vld [vmem:[%s214 + $0xd8] sm:$0xff]
        %v286 = vld [vmem:[%s214 + $0xe0] sm:$0xff]
        %v287 = vld [vmem:[%s214 + $0xe8] sm:$0xff]
        %v288 = vld [vmem:[%s214 + $0xf0] sm:$0xff]
        %v289 = vld [vmem:[%s214 + $0xf8] sm:$0xff]
        %v290 = vld [vmem:[%s214 + $0x100] sm:$0xff]
        %v291 = vld [vmem:[%s214 + $0x108] sm:$0xff]
        %v292 = vld [vmem:[%s214 + $0x110] sm:$0xff]
        %v293 = vld [vmem:[%s214 + $0x118] sm:$0xff]
        %v294 = vld [vmem:[%s214 + $0x120] sm:$0xff]
        %v295 = vld [vmem:[%s214 + $0x128] sm:$0xff]
        %v296 = vld [vmem:[%s214 + $0x130] sm:$0xff]
        %v297 = vld [vmem:[%s214 + $0x138] sm:$0xff]
        %v298 = vld [vmem:[%s214 + $0x140] sm:$0xff]
        %v299 = vld [vmem:[%s214 + $0x148] sm:$0xff]
        %v300 = vld [vmem:[%s214 + $0x150] sm:$0xff]
        %v301 = vld [vmem:[%s214 + $0x158] sm:$0xff]
        %v302 = vld [vmem:[%s214 + $0x160] sm:$0xff]
        %v303 = vld [vmem:[%s214 + $0x168] sm:$0xff]
        %v304 = vld [vmem:[%s214 + $0x170] sm:$0xff]
        %v305 = vld [vmem:[%s214 + $0x178] sm:$0xff]
        %v306 = vld [vmem:[%s214 + $0x180] sm:$0xff]
        %v307 = vld [vmem:[%s214 + $0x188] sm:$0xff]
        %v308 = vld [vmem:[%s214 + $0x190] sm:$0xff]
        %v309 = vld [vmem:[%s214 + $0x198] sm:$0xff]
        %v310 = vld [vmem:[%s214 + $0x1a0] sm:$0xff]
        %v311 = vld [vmem:[%s214 + $0x1a8] sm:$0xff]
        %v312 = vld [vmem:[%s214 + $0x1b0] sm:$0xff]
        %v313 = vld [vmem:[%s214 + $0x1b8] sm:$0xff]
        %v314 = vld [vmem:[%s214 + $0x1c0] sm:$0xff]
        %v315 = vld [vmem:[%s214 + $0x1c8] sm:$0xff]
        %v316 = vld [vmem:[%s214 + $0x1d0] sm:$0xff]
        %v317 = vld [vmem:[%s214 + $0x1d8] sm:$0xff]
        %v318 = vld [vmem:[%s214 + $0x1e0] sm:$0xff]
        %v319 = vld [vmem:[%s214 + $0x1e8] sm:$0xff]
        %v320 = vld [vmem:[%s214 + $0x1f0] sm:$0xff]
        %v321 = vld [vmem:[%s214 + $0x1f8] sm:$0xff]
        %v322 = vld [vmem:[%s214 + $0x200] sm:$0xff]
        %v323 = vld [vmem:[%s214 + $0x208] sm:$0xff]
        %v324 = vld [vmem:[%s214 + $0x210] sm:$0xff]
        %v325 = vld [vmem:[%s214 + $0x218] sm:$0xff]
        %v326 = vld [vmem:[%s214 + $0x220] sm:$0xff]
        %v327 = vld [vmem:[%s214 + $0x228] sm:$0xff]
        %v328 = vld [vmem:[%s214 + $0x230] sm:$0xff]
        %v329 = vld [vmem:[%s214 + $0x238] sm:$0xff]
        %v330 = vld [vmem:[%s2] sm:$0xff]
        %v331 = vld [vmem:[%s2 + $0x8] sm:$0xff]
        %v332 = vld [vmem:[%s2 + $0x10] sm:$0xff]
        %v333 = vld [vmem:[%s2 + $0x18] sm:$0xff]
        %vm334 = vcmask 261120
        %v336 = vsel %vm334, %v258, 0
        %v339 = vsel %vm334, %v259, 0
        %v342 = vsel %vm334, %v260, 0
        %v345 = vsel %vm334, %v261, 0
        %v348 = vsel %vm334, %v262, 0
        %v351 = vsel %vm334, %v263, 0
        %v354 = vsel %vm334, %v264, 0
        %v357 = vsel %vm334, %v265, 0
        %v360 = vsel %vm334, %v266, 0
        %v363 = vsel %vm334, %v267, 0
        %v366 = vsel %vm334, %v268, 0
        %v369 = vsel %vm334, %v269, 0
        %v372 = vsel %vm334, %v270, 0
        %v375 = vsel %vm334, %v271, 0
        %v378 = vsel %vm334, %v272, 0
        %v381 = vsel %vm334, %v273, 0
        %v384 = vsel %vm334, %v274, 0
        %v387 = vsel %vm334, %v275, 0
        %v390 = vsel %vm334, %v276, 0
        %v393 = vsel %vm334, %v277, 0
        %v396 = vsel %vm334, %v278, 0
        %v399 = vsel %vm334, %v279, 0
        %v402 = vsel %vm334, %v280, 0
        %v405 = vsel %vm334, %v281, 0
        %v408 = vsel %vm334, %v282, 0
        %v411 = vsel %vm334, %v283, 0
        %v414 = vsel %vm334, %v284, 0
        %v417 = vsel %vm334, %v285, 0
        %v420 = vsel %vm334, %v286, 0
        %v423 = vsel %vm334, %v287, 0
        %v426 = vsel %vm334, %v288, 0
        %v429 = vsel %vm334, %v289, 0
        %v432 = vsel %vm334, %v290, 0
        %v435 = vsel %vm334, %v291, 0
        %v438 = vsel %vm334, %v292, 0
        %v441 = vsel %vm334, %v293, 0
        %v444 = vsel %vm334, %v294, 0
        %v447 = vsel %vm334, %v295, 0
        %v450 = vsel %vm334, %v296, 0
        %v453 = vsel %vm334, %v297, 0
        %v456 = vsel %vm334, %v298, 0
        %v459 = vsel %vm334, %v299, 0
        %v462 = vsel %vm334, %v300, 0
        %v465 = vsel %vm334, %v301, 0
        %v468 = vsel %vm334, %v302, 0
        %v471 = vsel %vm334, %v303, 0
        %v474 = vsel %vm334, %v304, 0
        %v477 = vsel %vm334, %v305, 0
        %v480 = vsel %vm334, %v306, 0
        %v483 = vsel %vm334, %v307, 0
        %v486 = vsel %vm334, %v308, 0
        %v489 = vsel %vm334, %v309, 0
        %v492 = vsel %vm334, %v310, 0
        %v495 = vsel %vm334, %v311, 0
        %v498 = vsel %vm334, %v312, 0
        %v501 = vsel %vm334, %v313, 0
        %v504 = vsel %vm334, %v314, 0
        %v507 = vsel %vm334, %v315, 0
        %v510 = vsel %vm334, %v316, 0
        %v513 = vsel %vm334, %v317, 0
        %v516 = vsel %vm334, %v318, 0
        %v519 = vsel %vm334, %v319, 0
        %v522 = vsel %vm334, %v320, 0
        %v525 = vsel %vm334, %v321, 0
        %v528 = vsel %vm334, %v322, 0
        %v531 = vsel %vm334, %v323, 0
        %v534 = vsel %vm334, %v324, 0
        %v537 = vsel %vm334, %v325, 0
        %v540 = vsel %vm334, %v326, 0
        %v543 = vsel %vm334, %v327, 0
        %v546 = vsel %vm334, %v328, 0
        %v549 = vsel %vm334, %v329, 0
        %551 = vmatprep.subr.mxu0 0.0
        %552 = vmatpush1.msra.mxu0 %v330
        %553 = vmatprep.subr.mxu0 0.0
        %554 = vmatpush1.msra.mxu0 %v331
        %555 = vmatprep.subr.mxu0 0.0
        %556 = vmatpush1.msra.mxu0 %v332
        %557 = vmatprep.subr.mxu0 0.0
        %558 = vmatpush1.msra.mxu0 %v333
        %559 = vmatprep.subr.mxu0 0.0
        %560 = vmatpush1.msra.mxu0 0.0
        %561 = vmatprep.subr.mxu0 0.0
        %562 = vmatpush1.msra.mxu0 0.0
        %563 = vmatprep.subr.mxu0 0.0
        %564 = vmatpush1.msra.mxu0 0.0
        %565 = vmatprep.subr.mxu0 0.0
        %566 = vmatpush1.msra.mxu0 0.0
        %567 = vmatprep.subr.mxu0 0.0
        %568 = vmatpush1.msra.mxu0 0.0
        %569 = vmatprep.subr.mxu0 0.0
        %570 = vmatpush1.msra.mxu0 0.0
        %571 = vmatprep.subr.mxu0 0.0
        %572 = vmatpush1.msra.mxu0 0.0
        %573 = vmatprep.subr.mxu0 0.0
        %574 = vmatpush1.msra.mxu0 0.0
        %575 = vmatprep.subr.mxu0 0.0
        %576 = vmatpush1.msra.mxu0 0.0
        %577 = vmatprep.subr.mxu0 0.0
        %578 = vmatpush1.msra.mxu0 0.0
        %579 = vmatprep.subr.mxu0 0.0
        %580 = vmatpush1.msra.mxu0 0.0
        %581 = vmatprep.subr.mxu0 0.0
        %582 = vmatpush1.msra.mxu0 0.0
        %583 = vmatprep.subr.mxu0 0.0
        %584 = vmatpush1.msra.mxu0 0.0
        %585 = vmatprep.subr.mxu0 0.0
        %586 = vmatpush1.msra.mxu0 0.0
        %587 = vmatprep.subr.mxu0 0.0
        %588 = vmatpush1.msra.mxu0 0.0
        %589 = vmatprep.subr.mxu0 0.0
        %590 = vmatpush1.msra.mxu0 0.0
        %591 = vmatprep.subr.mxu0 0.0
        %592 = vmatpush1.msra.mxu0 0.0
        %593 = vmatprep.subr.mxu0 0.0
        %594 = vmatpush1.msra.mxu0 0.0
        %595 = vmatprep.subr.mxu0 0.0
        %596 = vmatpush1.msra.mxu0 0.0
        %597 = vmatprep.subr.mxu0 0.0
        %598 = vmatpush1.msra.mxu0 0.0
        %599 = vmatprep.subr.mxu0 0.0
        %600 = vmatpush1.msra.mxu0 0.0
        %601 = vmatprep.subr.mxu0 0.0
        %602 = vmatpush1.msra.mxu0 0.0
        %603 = vmatprep.subr.mxu0 0.0
        %604 = vmatpush1.msra.mxu0 0.0
        %605 = vmatprep.subr.mxu0 0.0
        %606 = vmatpush1.msra.mxu0 0.0
        %607 = vmatprep.subr.mxu0 0.0
        %608 = vmatpush1.msra.mxu0 0.0
        %609 = vmatprep.subr.mxu0 0.0
        %610 = vmatpush1.msra.mxu0 0.0
        %611 = vmatprep.subr.mxu0 0.0
        %612 = vmatpush1.msra.mxu0 0.0
        %613 = vmatprep.subr.mxu0 0.0
        %614 = vmatpush1.msra.mxu0 0.0
        %615 = vmatprep.mubr.f32.mxu0 0.0
        %616 = vmatmul.mubr.f32.gmra.mrb[0].mxu0 %v336
        %v617 = vpop.f32.mrb[0].mxu0
        %v618 = vadd.f32 0.0, %v617
        %v619 = vpop.f32.mrb[0].mxu0
        %620 = vmatprep.mubr.f32.mxu0 0.0
        %621 = vmatmul.mubr.f32.gmra.mrb[0].mxu0 %v339
        %v622 = vpop.f32.mrb[0].mxu0
        %v623 = vadd.f32 0.0, %v622
        %v624 = vpop.f32.mrb[0].mxu0
        %625 = vmatprep.mubr.f32.mxu0 0.0
        %626 = vmatmul.mubr.f32.gmra.mrb[0].mxu0 %v342
        %v627 = vpop.f32.mrb[0].mxu0
        %v628 = vadd.f32 0.0, %v627
        %v629 = vpop.f32.mrb[0].mxu0
        %630 = vmatprep.mubr.f32.mxu0 0.0
        %631 = vmatmul.mubr.f32.gmra.mrb[0].mxu0 %v345
        %v632 = vpop.f32.mrb[0].mxu0
        %v633 = vadd.f32 0.0, %v632
        %v634 = vpop.f32.mrb[0].mxu0
        %635 = vmatprep.mubr.f32.mxu0 0.0
        %636 = vmatmul.mubr.f32.gmra.mrb[0].mxu0 %v348
        %v637 = vpop.f32.mrb[0].mxu0
        %v638 = vadd.f32 0.0, %v637
        %v639 = vpop.f32.mrb[0].mxu0
        %640 = vmatprep.mubr.f32.mxu0 0.0
        %641 = vmatmul.mubr.f32.gmra.mrb[0].mxu0 %v351
        %v642 = vpop.f32.mrb[0].mxu0
        %v643 = vadd.f32 0.0, %v642
        %v644 = vpop.f32.mrb[0].mxu0
        %645 = vmatprep.mubr.f32.mxu0 0.0
        %646 = vmatmul.mubr.f32.gmra.mrb[0].mxu0 %v354
        %v647 = vpop.f32.mrb[0].mxu0
        %v648 = vadd.f32 0.0, %v647
        %v649 = vpop.f32.mrb[0].mxu0
        %650 = vmatprep.mubr.f32.mxu0 0.0
        %651 = vmatmul.mubr.f32.gmra.mrb[0].mxu0 %v357
        %v652 = vpop.f32.mrb[0].mxu0
        %v653 = vadd.f32 0.0, %v652
        %v654 = vpop.f32.mrb[0].mxu0
        %655 = vmatprep.mubr.f32.mxu0 0.0
        %656 = vmatmul.mubr.f32.gmra.mrb[0].mxu0 %v360
        %v657 = vpop.f32.mrb[0].mxu0
        %v658 = vadd.f32 0.0, %v657
        %v659 = vpop.f32.mrb[0].mxu0
        %660 = vmatprep.mubr.f32.mxu0 0.0
        %661 = vmatmul.mubr.f32.gmra.mrb[0].mxu0 %v363
        %v662 = vpop.f32.mrb[0].mxu0
        %v663 = vadd.f32 0.0, %v662
        %v664 = vpop.f32.mrb[0].mxu0
        %665 = vmatprep.mubr.f32.mxu0 0.0
        %666 = vmatmul.mubr.f32.gmra.mrb[0].mxu0 %v366
        %v667 = vpop.f32.mrb[0].mxu0
        %v668 = vadd.f32 0.0, %v667
        %v669 = vpop.f32.mrb[0].mxu0
        %670 = vmatprep.mubr.f32.mxu0 0.0
        %671 = vmatmul.mubr.f32.gmra.mrb[0].mxu0 %v369
        %v672 = vpop.f32.mrb[0].mxu0
        %v673 = vadd.f32 0.0, %v672
        %v674 = vpop.f32.mrb[0].mxu0
        %675 = vmatprep.mubr.f32.mxu0 0.0
        %676 = vmatmul.mubr.f32.gmra.mrb[0].mxu0 %v372
        %v677 = vpop.f32.mrb[0].mxu0
        %v678 = vadd.f32 0.0, %v677
        %v679 = vpop.f32.mrb[0].mxu0
        %680 = vmatprep.mubr.f32.mxu0 0.0
        %681 = vmatmul.mubr.f32.gmra.mrb[0].mxu0 %v375
        %v682 = vpop.f32.mrb[0].mxu0
        %v683 = vadd.f32 0.0, %v682
        %v684 = vpop.f32.mrb[0].mxu0
        %685 = vmatprep.mubr.f32.mxu0 0.0
        %686 = vmatmul.mubr.f32.gmra.mrb[0].mxu0 %v378
        %v687 = vpop.f32.mrb[0].mxu0
        %v688 = vadd.f32 0.0, %v687
        %v689 = vpop.f32.mrb[0].mxu0
        %690 = vmatprep.mubr.f32.mxu0 0.0
        %691 = vmatmul.mubr.f32.gmra.mrb[0].mxu0 %v381
        %v692 = vpop.f32.mrb[0].mxu0
        %v693 = vadd.f32 0.0, %v692
        %v694 = vpop.f32.mrb[0].mxu0
        %695 = vmatprep.mubr.f32.mxu0 0.0
        %696 = vmatmul.mubr.f32.gmra.mrb[0].mxu0 %v384
        %v697 = vpop.f32.mrb[0].mxu0
        %v698 = vadd.f32 0.0, %v697
        %v699 = vpop.f32.mrb[0].mxu0
        %700 = vmatprep.mubr.f32.mxu0 0.0
        %701 = vmatmul.mubr.f32.gmra.mrb[0].mxu0 %v387
        %v702 = vpop.f32.mrb[0].mxu0
        %v703 = vadd.f32 0.0, %v702
        %v704 = vpop.f32.mrb[0].mxu0
        %705 = vmatprep.mubr.f32.mxu0 0.0
        %706 = vmatmul.mubr.f32.gmra.mrb[0].mxu0 %v390
        %v707 = vpop.f32.mrb[0].mxu0
        %v708 = vadd.f32 0.0, %v707
        %v709 = vpop.f32.mrb[0].mxu0
        %710 = vmatprep.mubr.f32.mxu0 0.0
        %711 = vmatmul.mubr.f32.gmra.mrb[0].mxu0 %v393
        %v712 = vpop.f32.mrb[0].mxu0
        %v713 = vadd.f32 0.0, %v712
        %v714 = vpop.f32.mrb[0].mxu0
        %715 = vmatprep.mubr.f32.mxu0 0.0
        %716 = vmatmul.mubr.f32.gmra.mrb[0].mxu0 %v396
        %v717 = vpop.f32.mrb[0].mxu0
        %v718 = vadd.f32 0.0, %v717
        %v719 = vpop.f32.mrb[0].mxu0
        %720 = vmatprep.mubr.f32.mxu0 0.0
        %721 = vmatmul.mubr.f32.gmra.mrb[0].mxu0 %v399
        %v722 = vpop.f32.mrb[0].mxu0
        %v723 = vadd.f32 0.0, %v722
        %v724 = vpop.f32.mrb[0].mxu0
        %725 = vmatprep.mubr.f32.mxu0 0.0
        %726 = vmatmul.mubr.f32.gmra.mrb[0].mxu0 %v402
        %v727 = vpop.f32.mrb[0].mxu0
        %v728 = vadd.f32 0.0, %v727
        %v729 = vpop.f32.mrb[0].mxu0
        %730 = vmatprep.mubr.f32.mxu0 0.0
        %731 = vmatmul.mubr.f32.gmra.mrb[0].mxu0 %v405
        %v732 = vpop.f32.mrb[0].mxu0
        %v733 = vadd.f32 0.0, %v732
        %v734 = vpop.f32.mrb[0].mxu0
        %735 = vmatprep.mubr.f32.mxu0 0.0
        %736 = vmatmul.mubr.f32.gmra.mrb[0].mxu0 %v408
        %v737 = vpop.f32.mrb[0].mxu0
        %v738 = vadd.f32 0.0, %v737
        %v739 = vpop.f32.mrb[0].mxu0
        %740 = vmatprep.mubr.f32.mxu0 0.0
        %741 = vmatmul.mubr.f32.gmra.mrb[0].mxu0 %v411
        %v742 = vpop.f32.mrb[0].mxu0
        %v743 = vadd.f32 0.0, %v742
        %v744 = vpop.f32.mrb[0].mxu0
        %745 = vmatprep.mubr.f32.mxu0 0.0
        %746 = vmatmul.mubr.f32.gmra.mrb[0].mxu0 %v414
        %v747 = vpop.f32.mrb[0].mxu0
        %v748 = vadd.f32 0.0, %v747
        %v749 = vpop.f32.mrb[0].mxu0
        %750 = vmatprep.mubr.f32.mxu0 0.0
        %751 = vmatmul.mubr.f32.gmra.mrb[0].mxu0 %v417
        %v752 = vpop.f32.mrb[0].mxu0
        %v753 = vadd.f32 0.0, %v752
        %v754 = vpop.f32.mrb[0].mxu0
        %755 = vmatprep.mubr.f32.mxu0 0.0
        %756 = vmatmul.mubr.f32.gmra.mrb[0].mxu0 %v420
        %v757 = vpop.f32.mrb[0].mxu0
        %v758 = vadd.f32 0.0, %v757
        %v759 = vpop.f32.mrb[0].mxu0
        %760 = vmatprep.mubr.f32.mxu0 0.0
        %761 = vmatmul.mubr.f32.gmra.mrb[0].mxu0 %v423
        %v762 = vpop.f32.mrb[0].mxu0
        %v763 = vadd.f32 0.0, %v762
        %v764 = vpop.f32.mrb[0].mxu0
        %765 = vmatprep.mubr.f32.mxu0 0.0
        %766 = vmatmul.mubr.f32.gmra.mrb[0].mxu0 %v426
        %v767 = vpop.f32.mrb[0].mxu0
        %v768 = vadd.f32 0.0, %v767
        %v769 = vpop.f32.mrb[0].mxu0
        %770 = vmatprep.mubr.f32.mxu0 0.0
        %771 = vmatmul.mubr.f32.gmra.mrb[0].mxu0 %v429
        %v772 = vpop.f32.mrb[0].mxu0
        %v773 = vadd.f32 0.0, %v772
        %v774 = vpop.f32.mrb[0].mxu0
        %775 = vmatprep.mubr.f32.mxu0 0.0
        %776 = vmatmul.mubr.f32.gmra.mrb[0].mxu0 %v432
        %v777 = vpop.f32.mrb[0].mxu0
        %v778 = vadd.f32 0.0, %v777
        %v779 = vpop.f32.mrb[0].mxu0
        %780 = vmatprep.mubr.f32.mxu0 0.0
        %781 = vmatmul.mubr.f32.gmra.mrb[0].mxu0 %v435
        %v782 = vpop.f32.mrb[0].mxu0
        %v783 = vadd.f32 0.0, %v782
        %v784 = vpop.f32.mrb[0].mxu0
        %785 = vmatprep.mubr.f32.mxu0 0.0
        %786 = vmatmul.mubr.f32.gmra.mrb[0].mxu0 %v438
        %v787 = vpop.f32.mrb[0].mxu0
        %v788 = vadd.f32 0.0, %v787
        %v789 = vpop.f32.mrb[0].mxu0
        %790 = vmatprep.mubr.f32.mxu0 0.0
        %791 = vmatmul.mubr.f32.gmra.mrb[0].mxu0 %v441
        %v792 = vpop.f32.mrb[0].mxu0
        %v793 = vadd.f32 0.0, %v792
        %v794 = vpop.f32.mrb[0].mxu0
        %795 = vmatprep.mubr.f32.mxu0 0.0
        %796 = vmatmul.mubr.f32.gmra.mrb[0].mxu0 %v444
        %v797 = vpop.f32.mrb[0].mxu0
        %v798 = vadd.f32 0.0, %v797
        %v799 = vpop.f32.mrb[0].mxu0
        %800 = vmatprep.mubr.f32.mxu0 0.0
        %801 = vmatmul.mubr.f32.gmra.mrb[0].mxu0 %v447
        %v802 = vpop.f32.mrb[0].mxu0
        %v803 = vadd.f32 0.0, %v802
        %v804 = vpop.f32.mrb[0].mxu0
        %805 = vmatprep.mubr.f32.mxu0 0.0
        %806 = vmatmul.mubr.f32.gmra.mrb[0].mxu0 %v450
        %v807 = vpop.f32.mrb[0].mxu0
        %v808 = vadd.f32 0.0, %v807
        %v809 = vpop.f32.mrb[0].mxu0
        %810 = vmatprep.mubr.f32.mxu0 0.0
        %811 = vmatmul.mubr.f32.gmra.mrb[0].mxu0 %v453
        %v812 = vpop.f32.mrb[0].mxu0
        %v813 = vadd.f32 0.0, %v812
        %v814 = vpop.f32.mrb[0].mxu0
        %815 = vmatprep.mubr.f32.mxu0 0.0
        %816 = vmatmul.mubr.f32.gmra.mrb[0].mxu0 %v456
        %v817 = vpop.f32.mrb[0].mxu0
        %v818 = vadd.f32 0.0, %v817
        %v819 = vpop.f32.mrb[0].mxu0
        %820 = vmatprep.mubr.f32.mxu0 0.0
        %821 = vmatmul.mubr.f32.gmra.mrb[0].mxu0 %v459
        %v822 = vpop.f32.mrb[0].mxu0
        %v823 = vadd.f32 0.0, %v822
        %v824 = vpop.f32.mrb[0].mxu0
        %825 = vmatprep.mubr.f32.mxu0 0.0
        %826 = vmatmul.mubr.f32.gmra.mrb[0].mxu0 %v462
        %v827 = vpop.f32.mrb[0].mxu0
        %v828 = vadd.f32 0.0, %v827
        %v829 = vpop.f32.mrb[0].mxu0
        %830 = vmatprep.mubr.f32.mxu0 0.0
        %831 = vmatmul.mubr.f32.gmra.mrb[0].mxu0 %v465
        %v832 = vpop.f32.mrb[0].mxu0
        %v833 = vadd.f32 0.0, %v832
        %v834 = vpop.f32.mrb[0].mxu0
        %835 = vmatprep.mubr.f32.mxu0 0.0
        %836 = vmatmul.mubr.f32.gmra.mrb[0].mxu0 %v468
        %v837 = vpop.f32.mrb[0].mxu0
        %v838 = vadd.f32 0.0, %v837
        %v839 = vpop.f32.mrb[0].mxu0
        %840 = vmatprep.mubr.f32.mxu0 0.0
        %841 = vmatmul.mubr.f32.gmra.mrb[0].mxu0 %v471
        %v842 = vpop.f32.mrb[0].mxu0
        %v843 = vadd.f32 0.0, %v842
        %v844 = vpop.f32.mrb[0].mxu0
        %845 = vmatprep.mubr.f32.mxu0 0.0
        %846 = vmatmul.mubr.f32.gmra.mrb[0].mxu0 %v474
        %v847 = vpop.f32.mrb[0].mxu0
        %v848 = vadd.f32 0.0, %v847
        %v849 = vpop.f32.mrb[0].mxu0
        %850 = vmatprep.mubr.f32.mxu0 0.0
        %851 = vmatmul.mubr.f32.gmra.mrb[0].mxu0 %v477
        %v852 = vpop.f32.mrb[0].mxu0
        %v853 = vadd.f32 0.0, %v852
        %v854 = vpop.f32.mrb[0].mxu0
        %855 = vmatprep.mubr.f32.mxu0 0.0
        %856 = vmatmul.mubr.f32.gmra.mrb[0].mxu0 %v480
        %v857 = vpop.f32.mrb[0].mxu0
        %v858 = vadd.f32 0.0, %v857
        %v859 = vpop.f32.mrb[0].mxu0
        %860 = vmatprep.mubr.f32.mxu0 0.0
        %861 = vmatmul.mubr.f32.gmra.mrb[0].mxu0 %v483
        %v862 = vpop.f32.mrb[0].mxu0
        %v863 = vadd.f32 0.0, %v862
        %v864 = vpop.f32.mrb[0].mxu0
        %865 = vmatprep.mubr.f32.mxu0 0.0
        %866 = vmatmul.mubr.f32.gmra.mrb[0].mxu0 %v486
        %v867 = vpop.f32.mrb[0].mxu0
        %v868 = vadd.f32 0.0, %v867
        %v869 = vpop.f32.mrb[0].mxu0
        %870 = vmatprep.mubr.f32.mxu0 0.0
        %871 = vmatmul.mubr.f32.gmra.mrb[0].mxu0 %v489
        %v872 = vpop.f32.mrb[0].mxu0
        %v873 = vadd.f32 0.0, %v872
        %v874 = vpop.f32.mrb[0].mxu0
        %875 = vmatprep.mubr.f32.mxu0 0.0
        %876 = vmatmul.mubr.f32.gmra.mrb[0].mxu0 %v492
        %v877 = vpop.f32.mrb[0].mxu0
        %v878 = vadd.f32 0.0, %v877
        %v879 = vpop.f32.mrb[0].mxu0
        %880 = vmatprep.mubr.f32.mxu0 0.0
        %881 = vmatmul.mubr.f32.gmra.mrb[0].mxu0 %v495
        %v882 = vpop.f32.mrb[0].mxu0
        %v883 = vadd.f32 0.0, %v882
        %v884 = vpop.f32.mrb[0].mxu0
        %885 = vmatprep.mubr.f32.mxu0 0.0
        %886 = vmatmul.mubr.f32.gmra.mrb[0].mxu0 %v498
        %v887 = vpop.f32.mrb[0].mxu0
        %v888 = vadd.f32 0.0, %v887
        %v889 = vpop.f32.mrb[0].mxu0
        %890 = vmatprep.mubr.f32.mxu0 0.0
        %891 = vmatmul.mubr.f32.gmra.mrb[0].mxu0 %v501
        %v892 = vpop.f32.mrb[0].mxu0
        %v893 = vadd.f32 0.0, %v892
        %v894 = vpop.f32.mrb[0].mxu0
        %895 = vmatprep.mubr.f32.mxu0 0.0
        %896 = vmatmul.mubr.f32.gmra.mrb[0].mxu0 %v504
        %v897 = vpop.f32.mrb[0].mxu0
        %v898 = vadd.f32 0.0, %v897
        %v899 = vpop.f32.mrb[0].mxu0
        %900 = vmatprep.mubr.f32.mxu0 0.0
        %901 = vmatmul.mubr.f32.gmra.mrb[0].mxu0 %v507
        %v902 = vpop.f32.mrb[0].mxu0
        %v903 = vadd.f32 0.0, %v902
        %v904 = vpop.f32.mrb[0].mxu0
        %905 = vmatprep.mubr.f32.mxu0 0.0
        %906 = vmatmul.mubr.f32.gmra.mrb[0].mxu0 %v510
        %v907 = vpop.f32.mrb[0].mxu0
        %v908 = vadd.f32 0.0, %v907
        %v909 = vpop.f32.mrb[0].mxu0
        %910 = vmatprep.mubr.f32.mxu0 0.0
        %911 = vmatmul.mubr.f32.gmra.mrb[0].mxu0 %v513
        %v912 = vpop.f32.mrb[0].mxu0
        %v913 = vadd.f32 0.0, %v912
        %v914 = vpop.f32.mrb[0].mxu0
        %915 = vmatprep.mubr.f32.mxu0 0.0
        %916 = vmatmul.mubr.f32.gmra.mrb[0].mxu0 %v516
        %v917 = vpop.f32.mrb[0].mxu0
        %v918 = vadd.f32 0.0, %v917
        %v919 = vpop.f32.mrb[0].mxu0
        %920 = vmatprep.mubr.f32.mxu0 0.0
        %921 = vmatmul.mubr.f32.gmra.mrb[0].mxu0 %v519
        %v922 = vpop.f32.mrb[0].mxu0
        %v923 = vadd.f32 0.0, %v922
        %v924 = vpop.f32.mrb[0].mxu0
        %925 = vmatprep.mubr.f32.mxu0 0.0
        %926 = vmatmul.mubr.f32.gmra.mrb[0].mxu0 %v522
        %v927 = vpop.f32.mrb[0].mxu0
        %v928 = vadd.f32 0.0, %v927
        %v929 = vpop.f32.mrb[0].mxu0
        %930 = vmatprep.mubr.f32.mxu0 0.0
        %931 = vmatmul.mubr.f32.gmra.mrb[0].mxu0 %v525
        %v932 = vpop.f32.mrb[0].mxu0
        %v933 = vadd.f32 0.0, %v932
        %v934 = vpop.f32.mrb[0].mxu0
        %935 = vmatprep.mubr.f32.mxu0 0.0
        %936 = vmatmul.mubr.f32.gmra.mrb[0].mxu0 %v528
        %v937 = vpop.f32.mrb[0].mxu0
        %v938 = vadd.f32 0.0, %v937
        %v939 = vpop.f32.mrb[0].mxu0
        %940 = vmatprep.mubr.f32.mxu0 0.0
        %941 = vmatmul.mubr.f32.gmra.mrb[0].mxu0 %v531
        %v942 = vpop.f32.mrb[0].mxu0
        %v943 = vadd.f32 0.0, %v942
        %v944 = vpop.f32.mrb[0].mxu0
        %945 = vmatprep.mubr.f32.mxu0 0.0
        %946 = vmatmul.mubr.f32.gmra.mrb[0].mxu0 %v534
        %v947 = vpop.f32.mrb[0].mxu0
        %v948 = vadd.f32 0.0, %v947
        %v949 = vpop.f32.mrb[0].mxu0
        %950 = vmatprep.mubr.f32.mxu0 0.0
        %951 = vmatmul.mubr.f32.gmra.mrb[0].mxu0 %v537
        %v952 = vpop.f32.mrb[0].mxu0
        %v953 = vadd.f32 0.0, %v952
        %v954 = vpop.f32.mrb[0].mxu0
        %955 = vmatprep.mubr.f32.mxu0 0.0
        %956 = vmatmul.mubr.f32.gmra.mrb[0].mxu0 %v540
        %v957 = vpop.f32.mrb[0].mxu0
        %v958 = vadd.f32 0.0, %v957
        %v959 = vpop.f32.mrb[0].mxu0
        %960 = vmatprep.mubr.f32.mxu0 0.0
        %961 = vmatmul.mubr.f32.gmra.mrb[0].mxu0 %v543
        %v962 = vpop.f32.mrb[0].mxu0
        %v963 = vadd.f32 0.0, %v962
        %v964 = vpop.f32.mrb[0].mxu0
        %965 = vmatprep.mubr.f32.mxu0 0.0
        %966 = vmatmul.mubr.f32.gmra.mrb[0].mxu0 %v546
        %v967 = vpop.f32.mrb[0].mxu0
        %v968 = vadd.f32 0.0, %v967
        %v969 = vpop.f32.mrb[0].mxu0
        %970 = vmatprep.mubr.f32.mxu0 0.0
        %971 = vmatmul.mubr.f32.gmra.mrb[0].mxu0 %v549
        %v972 = vpop.f32.mrb[0].mxu0
        %v973 = vadd.f32 0.0, %v972
        %v974 = vpop.f32.mrb[0].mxu0
        %975 = vdwg.mxu0
        %v976 = vld [vmem:[%s223] sm:$0xff]
        %v977 = vld [vmem:[%s223 + $0x8] sm:$0xff]
        %v978 = vld [vmem:[%s223 + $0x10] sm:$0xff]
        %v979 = vld [vmem:[%s223 + $0x18] sm:$0xff]
        %v980 = vld [vmem:[%s223 + $0x20] sm:$0xff]
        %v981 = vld [vmem:[%s223 + $0x28] sm:$0xff]
        %v982 = vld [vmem:[%s223 + $0x30] sm:$0xff]
        %v983 = vld [vmem:[%s223 + $0x38] sm:$0xff]
        %v984 = vld [vmem:[%s223 + $0x40] sm:$0xff]
        %v985 = vld [vmem:[%s223 + $0x48] sm:$0xff]
        %v986 = vld [vmem:[%s223 + $0x50] sm:$0xff]
        %v987 = vld [vmem:[%s223 + $0x58] sm:$0xff]
        %v988 = vld [vmem:[%s223 + $0x60] sm:$0xff]
        %v989 = vld [vmem:[%s223 + $0x68] sm:$0xff]
        %v990 = vld [vmem:[%s223 + $0x70] sm:$0xff]
        %v991 = vld [vmem:[%s223 + $0x78] sm:$0xff]
        %v992 = vld [vmem:[%s223 + $0x80] sm:$0xff]
        %v993 = vld [vmem:[%s223 + $0x88] sm:$0xff]
        %v994 = vld [vmem:[%s223 + $0x90] sm:$0xff]
        %v995 = vld [vmem:[%s223 + $0x98] sm:$0xff]
        %v996 = vld [vmem:[%s223 + $0xa0] sm:$0xff]
        %v997 = vld [vmem:[%s223 + $0xa8] sm:$0xff]
        %v998 = vld [vmem:[%s223 + $0xb0] sm:$0xff]
        %v999 = vld [vmem:[%s223 + $0xb8] sm:$0xff]
        %v1000 = vld [vmem:[%s223 + $0xc0] sm:$0xff]
        %v1001 = vld [vmem:[%s223 + $0xc8] sm:$0xff]
        %v1002 = vld [vmem:[%s223 + $0xd0] sm:$0xff]
        %v1003 = vld [vmem:[%s223 + $0xd8] sm:$0xff]
        %v1004 = vld [vmem:[%s223 + $0xe0] sm:$0xff]
        %v1005 = vld [vmem:[%s223 + $0xe8] sm:$0xff]
        %v1006 = vld [vmem:[%s223 + $0xf0] sm:$0xff]
        %v1007 = vld [vmem:[%s223 + $0xf8] sm:$0xff]
        %v1008 = vld [vmem:[%s223 + $0x100] sm:$0xff]
        %v1009 = vld [vmem:[%s223 + $0x108] sm:$0xff]
        %v1010 = vld [vmem:[%s223 + $0x110] sm:$0xff]
        %v1011 = vld [vmem:[%s223 + $0x118] sm:$0xff]
        %v1012 = vld [vmem:[%s223 + $0x120] sm:$0xff]
        %v1013 = vld [vmem:[%s223 + $0x128] sm:$0xff]
        %v1014 = vld [vmem:[%s223 + $0x130] sm:$0xff]
        %v1015 = vld [vmem:[%s223 + $0x138] sm:$0xff]
        %v1016 = vld [vmem:[%s223 + $0x140] sm:$0xff]
        %v1017 = vld [vmem:[%s223 + $0x148] sm:$0xff]
        %v1018 = vld [vmem:[%s223 + $0x150] sm:$0xff]
        %v1019 = vld [vmem:[%s223 + $0x158] sm:$0xff]
        %v1020 = vld [vmem:[%s223 + $0x160] sm:$0xff]
        %v1021 = vld [vmem:[%s223 + $0x168] sm:$0xff]
        %v1022 = vld [vmem:[%s223 + $0x170] sm:$0xff]
        %v1023 = vld [vmem:[%s223 + $0x178] sm:$0xff]
        %v1024 = vld [vmem:[%s223 + $0x180] sm:$0xff]
        %v1025 = vld [vmem:[%s223 + $0x188] sm:$0xff]
        %v1026 = vld [vmem:[%s223 + $0x190] sm:$0xff]
        %v1027 = vld [vmem:[%s223 + $0x198] sm:$0xff]
        %v1028 = vld [vmem:[%s223 + $0x1a0] sm:$0xff]
        %v1029 = vld [vmem:[%s223 + $0x1a8] sm:$0xff]
        %v1030 = vld [vmem:[%s223 + $0x1b0] sm:$0xff]
        %v1031 = vld [vmem:[%s223 + $0x1b8] sm:$0xff]
        %v1032 = vld [vmem:[%s223 + $0x1c0] sm:$0xff]
        %v1033 = vld [vmem:[%s223 + $0x1c8] sm:$0xff]
        %v1034 = vld [vmem:[%s223 + $0x1d0] sm:$0xff]
        %v1035 = vld [vmem:[%s223 + $0x1d8] sm:$0xff]
        %v1036 = vld [vmem:[%s223 + $0x1e0] sm:$0xff]
        %v1037 = vld [vmem:[%s223 + $0x1e8] sm:$0xff]
        %v1038 = vld [vmem:[%s223 + $0x1f0] sm:$0xff]
        %v1039 = vld [vmem:[%s223 + $0x1f8] sm:$0xff]
        %v1040 = vld [vmem:[%s223 + $0x200] sm:$0xff]
        %v1041 = vld [vmem:[%s223 + $0x208] sm:$0xff]
        %v1042 = vld [vmem:[%s223 + $0x210] sm:$0xff]
        %v1043 = vld [vmem:[%s223 + $0x218] sm:$0xff]
        %v1044 = vld [vmem:[%s223 + $0x220] sm:$0xff]
        %v1045 = vld [vmem:[%s223 + $0x228] sm:$0xff]
        %v1046 = vld [vmem:[%s223 + $0x230] sm:$0xff]
        %v1047 = vld [vmem:[%s223 + $0x238] sm:$0xff]
        %v1048 = vld [vmem:[%s3] sm:$0xff]
        %v1049 = vld [vmem:[%s3 + $0x8] sm:$0xff]
        %v1050 = vld [vmem:[%s3 + $0x10] sm:$0xff]
        %v1051 = vld [vmem:[%s3 + $0x18] sm:$0xff]
        %v1053 = vsel %vm334, %v976, 0
        %v1056 = vsel %vm334, %v977, 0
        %v1059 = vsel %vm334, %v978, 0
        %v1062 = vsel %vm334, %v979, 0
        %v1065 = vsel %vm334, %v980, 0
        %v1068 = vsel %vm334, %v981, 0
        %v1071 = vsel %vm334, %v982, 0
        %v1074 = vsel %vm334, %v983, 0
        %v1077 = vsel %vm334, %v984, 0
        %v1080 = vsel %vm334, %v985, 0
        %v1083 = vsel %vm334, %v986, 0
        %v1086 = vsel %vm334, %v987, 0
        %v1089 = vsel %vm334, %v988, 0
        %v1092 = vsel %vm334, %v989, 0
        %v1095 = vsel %vm334, %v990, 0
        %v1098 = vsel %vm334, %v991, 0
        %v1101 = vsel %vm334, %v992, 0
        %v1104 = vsel %vm334, %v993, 0
        %v1107 = vsel %vm334, %v994, 0
        %v1110 = vsel %vm334, %v995, 0
        %v1113 = vsel %vm334, %v996, 0
        %v1116 = vsel %vm334, %v997, 0
        %v1119 = vsel %vm334, %v998, 0
        %v1122 = vsel %vm334, %v999, 0
        %v1125 = vsel %vm334, %v1000, 0
        %v1128 = vsel %vm334, %v1001, 0
        %v1131 = vsel %vm334, %v1002, 0
        %v1134 = vsel %vm334, %v1003, 0
        %v1137 = vsel %vm334, %v1004, 0
        %v1140 = vsel %vm334, %v1005, 0
        %v1143 = vsel %vm334, %v1006, 0
        %v1146 = vsel %vm334, %v1007, 0
        %v1149 = vsel %vm334, %v1008, 0
        %v1152 = vsel %vm334, %v1009, 0
        %v1155 = vsel %vm334, %v1010, 0
        %v1158 = vsel %vm334, %v1011, 0
        %v1161 = vsel %vm334, %v1012, 0
        %v1164 = vsel %vm334, %v1013, 0
        %v1167 = vsel %vm334, %v1014, 0
        %v1170 = vsel %vm334, %v1015, 0
        %v1173 = vsel %vm334, %v1016, 0
        %v1176 = vsel %vm334, %v1017, 0
        %v1179 = vsel %vm334, %v1018, 0
        %v1182 = vsel %vm334, %v1019, 0
        %v1185 = vsel %vm334, %v1020, 0
        %v1188 = vsel %vm334, %v1021, 0
        %v1191 = vsel %vm334, %v1022, 0
        %v1194 = vsel %vm334, %v1023, 0
        %v1197 = vsel %vm334, %v1024, 0
        %v1200 = vsel %vm334, %v1025, 0
        %v1203 = vsel %vm334, %v1026, 0
        %v1206 = vsel %vm334, %v1027, 0
        %v1209 = vsel %vm334, %v1028, 0
        %v1212 = vsel %vm334, %v1029, 0
        %v1215 = vsel %vm334, %v1030, 0
        %v1218 = vsel %vm334, %v1031, 0
        %v1221 = vsel %vm334, %v1032, 0
        %v1224 = vsel %vm334, %v1033, 0
        %v1227 = vsel %vm334, %v1034, 0
        %v1230 = vsel %vm334, %v1035, 0
        %v1233 = vsel %vm334, %v1036, 0
        %v1236 = vsel %vm334, %v1037, 0
        %v1239 = vsel %vm334, %v1038, 0
        %v1242 = vsel %vm334, %v1039, 0
        %v1245 = vsel %vm334, %v1040, 0
        %v1248 = vsel %vm334, %v1041, 0
        %v1251 = vsel %vm334, %v1042, 0
        %v1254 = vsel %vm334, %v1043, 0
        %v1257 = vsel %vm334, %v1044, 0
        %v1260 = vsel %vm334, %v1045, 0
        %v1263 = vsel %vm334, %v1046, 0
        %v1266 = vsel %vm334, %v1047, 0
        %1268 = vmatprep.subr.mxu0 0.0
        %1269 = vmatpush1.msra.mxu0 %v1048
        %1270 = vmatprep.subr.mxu0 0.0
        %1271 = vmatpush1.msra.mxu0 %v1049
        %1272 = vmatprep.subr.mxu0 0.0
        %1273 = vmatpush1.msra.mxu0 %v1050
        %1274 = vmatprep.subr.mxu0 0.0
        %1275 = vmatpush1.msra.mxu0 %v1051
        %1276 = vmatprep.subr.mxu0 0.0
        %1277 = vmatpush1.msra.mxu0 0.0
        %1278 = vmatprep.subr.mxu0 0.0
        %1279 = vmatpush1.msra.mxu0 0.0
        %1280 = vmatprep.subr.mxu0 0.0
        %1281 = vmatpush1.msra.mxu0 0.0
        %1282 = vmatprep.subr.mxu0 0.0
        %1283 = vmatpush1.msra.mxu0 0.0
        %1284 = vmatprep.subr.mxu0 0.0
        %1285 = vmatpush1.msra.mxu0 0.0
        %1286 = vmatprep.subr.mxu0 0.0
        %1287 = vmatpush1.msra.mxu0 0.0
        %1288 = vmatprep.subr.mxu0 0.0
        %1289 = vmatpush1.msra.mxu0 0.0
        %1290 = vmatprep.subr.mxu0 0.0
        %1291 = vmatpush1.msra.mxu0 0.0
        %1292 = vmatprep.subr.mxu0 0.0
        %1293 = vmatpush1.msra.mxu0 0.0
        %1294 = vmatprep.subr.mxu0 0.0
        %1295 = vmatpush1.msra.mxu0 0.0
        %1296 = vmatprep.subr.mxu0 0.0
        %1297 = vmatpush1.msra.mxu0 0.0
        %1298 = vmatprep.subr.mxu0 0.0
        %1299 = vmatpush1.msra.mxu0 0.0
        %1300 = vmatprep.subr.mxu0 0.0
        %1301 = vmatpush1.msra.mxu0 0.0
        %1302 = vmatprep.subr.mxu0 0.0
        %1303 = vmatpush1.msra.mxu0 0.0
        %1304 = vmatprep.subr.mxu0 0.0
        %1305 = vmatpush1.msra.mxu0 0.0
        %1306 = vmatprep.subr.mxu0 0.0
        %1307 = vmatpush1.msra.mxu0 0.0
        %1308 = vmatprep.subr.mxu0 0.0
        %1309 = vmatpush1.msra.mxu0 0.0
        %1310 = vmatprep.subr.mxu0 0.0
        %1311 = vmatpush1.msra.mxu0 0.0
        %1312 = vmatprep.subr.mxu0 0.0
        %1313 = vmatpush1.msra.mxu0 0.0
        %1314 = vmatprep.subr.mxu0 0.0
        %1315 = vmatpush1.msra.mxu0 0.0
        %1316 = vmatprep.subr.mxu0 0.0
        %1317 = vmatpush1.msra.mxu0 0.0
        %1318 = vmatprep.subr.mxu0 0.0
        %1319 = vmatpush1.msra.mxu0 0.0
        %1320 = vmatprep.subr.mxu0 0.0
        %1321 = vmatpush1.msra.mxu0 0.0
        %1322 = vmatprep.subr.mxu0 0.0
        %1323 = vmatpush1.msra.mxu0 0.0
        %1324 = vmatprep.subr.mxu0 0.0
        %1325 = vmatpush1.msra.mxu0 0.0
        %1326 = vmatprep.subr.mxu0 0.0
        %1327 = vmatpush1.msra.mxu0 0.0
        %1328 = vmatprep.subr.mxu0 0.0
        %1329 = vmatpush1.msra.mxu0 0.0
        %1330 = vmatprep.subr.mxu0 0.0
        %1331 = vmatpush1.msra.mxu0 0.0
        %1332 = vmatprep.mubr.f32.mxu0 0.0
        %1333 = vmatmul.mubr.f32.gmra.mrb[0].mxu0 %v1053
        %v1334 = vpop.f32.mrb[0].mxu0
        %v1335 = vadd.f32 0.0, %v1334
        %v1336 = vpop.f32.mrb[0].mxu0
        %1337 = vmatprep.mubr.f32.mxu0 0.0
        %1338 = vmatmul.mubr.f32.gmra.mrb[0].mxu0 %v1056
        %v1339 = vpop.f32.mrb[0].mxu0
        %v1340 = vadd.f32 0.0, %v1339
        %v1341 = vpop.f32.mrb[0].mxu0
        %1342 = vmatprep.mubr.f32.mxu0 0.0
        %1343 = vmatmul.mubr.f32.gmra.mrb[0].mxu0 %v1059
        %v1344 = vpop.f32.mrb[0].mxu0
        %v1345 = vadd.f32 0.0, %v1344
        %v1346 = vpop.f32.mrb[0].mxu0
        %1347 = vmatprep.mubr.f32.mxu0 0.0
        %1348 = vmatmul.mubr.f32.gmra.mrb[0].mxu0 %v1062
        %v1349 = vpop.f32.mrb[0].mxu0
        %v1350 = vadd.f32 0.0, %v1349
        %v1351 = vpop.f32.mrb[0].mxu0
        %1352 = vmatprep.mubr.f32.mxu0 0.0
        %1353 = vmatmul.mubr.f32.gmra.mrb[0].mxu0 %v1065
        %v1354 = vpop.f32.mrb[0].mxu0
        %v1355 = vadd.f32 0.0, %v1354
        %v1356 = vpop.f32.mrb[0].mxu0
        %1357 = vmatprep.mubr.f32.mxu0 0.0
        %1358 = vmatmul.mubr.f32.gmra.mrb[0].mxu0 %v1068
        %v1359 = vpop.f32.mrb[0].mxu0
        %v1360 = vadd.f32 0.0, %v1359
        %v1361 = vpop.f32.mrb[0].mxu0
        %1362 = vmatprep.mubr.f32.mxu0 0.0
        %1363 = vmatmul.mubr.f32.gmra.mrb[0].mxu0 %v1071
        %v1364 = vpop.f32.mrb[0].mxu0
        %v1365 = vadd.f32 0.0, %v1364
        %v1366 = vpop.f32.mrb[0].mxu0
        %1367 = vmatprep.mubr.f32.mxu0 0.0
        %1368 = vmatmul.mubr.f32.gmra.mrb[0].mxu0 %v1074
        %v1369 = vpop.f32.mrb[0].mxu0
        %v1370 = vadd.f32 0.0, %v1369
        %v1371 = vpop.f32.mrb[0].mxu0
        %1372 = vmatprep.mubr.f32.mxu0 0.0
        %1373 = vmatmul.mubr.f32.gmra.mrb[0].mxu0 %v1077
        %v1374 = vpop.f32.mrb[0].mxu0
        %v1375 = vadd.f32 0.0, %v1374
        %v1376 = vpop.f32.mrb[0].mxu0
        %1377 = vmatprep.mubr.f32.mxu0 0.0
        %1378 = vmatmul.mubr.f32.gmra.mrb[0].mxu0 %v1080
        %v1379 = vpop.f32.mrb[0].mxu0
        %v1380 = vadd.f32 0.0, %v1379
        %v1381 = vpop.f32.mrb[0].mxu0
        %1382 = vmatprep.mubr.f32.mxu0 0.0
        %1383 = vmatmul.mubr.f32.gmra.mrb[0].mxu0 %v1083
        %v1384 = vpop.f32.mrb[0].mxu0
        %v1385 = vadd.f32 0.0, %v1384
        %v1386 = vpop.f32.mrb[0].mxu0
        %1387 = vmatprep.mubr.f32.mxu0 0.0
        %1388 = vmatmul.mubr.f32.gmra.mrb[0].mxu0 %v1086
        %v1389 = vpop.f32.mrb[0].mxu0
        %v1390 = vadd.f32 0.0, %v1389
        %v1391 = vpop.f32.mrb[0].mxu0
        %1392 = vmatprep.mubr.f32.mxu0 0.0
        %1393 = vmatmul.mubr.f32.gmra.mrb[0].mxu0 %v1089
        %v1394 = vpop.f32.mrb[0].mxu0
        %v1395 = vadd.f32 0.0, %v1394
        %v1396 = vpop.f32.mrb[0].mxu0
        %1397 = vmatprep.mubr.f32.mxu0 0.0
        %1398 = vmatmul.mubr.f32.gmra.mrb[0].mxu0 %v1092
        %v1399 = vpop.f32.mrb[0].mxu0
        %v1400 = vadd.f32 0.0, %v1399
        %v1401 = vpop.f32.mrb[0].mxu0
        %1402 = vmatprep.mubr.f32.mxu0 0.0
        %1403 = vmatmul.mubr.f32.gmra.mrb[0].mxu0 %v1095
        %v1404 = vpop.f32.mrb[0].mxu0
        %v1405 = vadd.f32 0.0, %v1404
        %v1406 = vpop.f32.mrb[0].mxu0
        %1407 = vmatprep.mubr.f32.mxu0 0.0
        %1408 = vmatmul.mubr.f32.gmra.mrb[0].mxu0 %v1098
        %v1409 = vpop.f32.mrb[0].mxu0
        %v1410 = vadd.f32 0.0, %v1409
        %v1411 = vpop.f32.mrb[0].mxu0
        %1412 = vmatprep.mubr.f32.mxu0 0.0
        %1413 = vmatmul.mubr.f32.gmra.mrb[0].mxu0 %v1101
        %v1414 = vpop.f32.mrb[0].mxu0
        %v1415 = vadd.f32 0.0, %v1414
        %v1416 = vpop.f32.mrb[0].mxu0
        %1417 = vmatprep.mubr.f32.mxu0 0.0
        %1418 = vmatmul.mubr.f32.gmra.mrb[0].mxu0 %v1104
        %v1419 = vpop.f32.mrb[0].mxu0
        %v1420 = vadd.f32 0.0, %v1419
        %v1421 = vpop.f32.mrb[0].mxu0
        %1422 = vmatprep.mubr.f32.mxu0 0.0
        %1423 = vmatmul.mubr.f32.gmra.mrb[0].mxu0 %v1107
        %v1424 = vpop.f32.mrb[0].mxu0
        %v1425 = vadd.f32 0.0, %v1424
        %v1426 = vpop.f32.mrb[0].mxu0
        %1427 = vmatprep.mubr.f32.mxu0 0.0
        %1428 = vmatmul.mubr.f32.gmra.mrb[0].mxu0 %v1110
        %v1429 = vpop.f32.mrb[0].mxu0
        %v1430 = vadd.f32 0.0, %v1429
        %v1431 = vpop.f32.mrb[0].mxu0
        %1432 = vmatprep.mubr.f32.mxu0 0.0
        %1433 = vmatmul.mubr.f32.gmra.mrb[0].mxu0 %v1113
        %v1434 = vpop.f32.mrb[0].mxu0
        %v1435 = vadd.f32 0.0, %v1434
        %v1436 = vpop.f32.mrb[0].mxu0
        %1437 = vmatprep.mubr.f32.mxu0 0.0
        %1438 = vmatmul.mubr.f32.gmra.mrb[0].mxu0 %v1116
        %v1439 = vpop.f32.mrb[0].mxu0
        %v1440 = vadd.f32 0.0, %v1439
        %v1441 = vpop.f32.mrb[0].mxu0
        %1442 = vmatprep.mubr.f32.mxu0 0.0
        %1443 = vmatmul.mubr.f32.gmra.mrb[0].mxu0 %v1119
        %v1444 = vpop.f32.mrb[0].mxu0
        %v1445 = vadd.f32 0.0, %v1444
        %v1446 = vpop.f32.mrb[0].mxu0
        %1447 = vmatprep.mubr.f32.mxu0 0.0
        %1448 = vmatmul.mubr.f32.gmra.mrb[0].mxu0 %v1122
        %v1449 = vpop.f32.mrb[0].mxu0
        %v1450 = vadd.f32 0.0, %v1449
        %v1451 = vpop.f32.mrb[0].mxu0
        %1452 = vmatprep.mubr.f32.mxu0 0.0
        %1453 = vmatmul.mubr.f32.gmra.mrb[0].mxu0 %v1125
        %v1454 = vpop.f32.mrb[0].mxu0
        %v1455 = vadd.f32 0.0, %v1454
        %v1456 = vpop.f32.mrb[0].mxu0
        %1457 = vmatprep.mubr.f32.mxu0 0.0
        %1458 = vmatmul.mubr.f32.gmra.mrb[0].mxu0 %v1128
        %v1459 = vpop.f32.mrb[0].mxu0
        %v1460 = vadd.f32 0.0, %v1459
        %v1461 = vpop.f32.mrb[0].mxu0
        %1462 = vmatprep.mubr.f32.mxu0 0.0
        %1463 = vmatmul.mubr.f32.gmra.mrb[0].mxu0 %v1131
        %v1464 = vpop.f32.mrb[0].mxu0
        %v1465 = vadd.f32 0.0, %v1464
        %v1466 = vpop.f32.mrb[0].mxu0
        %1467 = vmatprep.mubr.f32.mxu0 0.0
        %1468 = vmatmul.mubr.f32.gmra.mrb[0].mxu0 %v1134
        %v1469 = vpop.f32.mrb[0].mxu0
        %v1470 = vadd.f32 0.0, %v1469
        %v1471 = vpop.f32.mrb[0].mxu0
        %1472 = vmatprep.mubr.f32.mxu0 0.0
        %1473 = vmatmul.mubr.f32.gmra.mrb[0].mxu0 %v1137
        %v1474 = vpop.f32.mrb[0].mxu0
        %v1475 = vadd.f32 0.0, %v1474
        %v1476 = vpop.f32.mrb[0].mxu0
        %1477 = vmatprep.mubr.f32.mxu0 0.0
        %1478 = vmatmul.mubr.f32.gmra.mrb[0].mxu0 %v1140
        %v1479 = vpop.f32.mrb[0].mxu0
        %v1480 = vadd.f32 0.0, %v1479
        %v1481 = vpop.f32.mrb[0].mxu0
        %1482 = vmatprep.mubr.f32.mxu0 0.0
        %1483 = vmatmul.mubr.f32.gmra.mrb[0].mxu0 %v1143
        %v1484 = vpop.f32.mrb[0].mxu0
        %v1485 = vadd.f32 0.0, %v1484
        %v1486 = vpop.f32.mrb[0].mxu0
        %1487 = vmatprep.mubr.f32.mxu0 0.0
        %1488 = vmatmul.mubr.f32.gmra.mrb[0].mxu0 %v1146
        %v1489 = vpop.f32.mrb[0].mxu0
        %v1490 = vadd.f32 0.0, %v1489
        %v1491 = vpop.f32.mrb[0].mxu0
        %1492 = vmatprep.mubr.f32.mxu0 0.0
        %1493 = vmatmul.mubr.f32.gmra.mrb[0].mxu0 %v1149
        %v1494 = vpop.f32.mrb[0].mxu0
        %v1495 = vadd.f32 0.0, %v1494
        %v1496 = vpop.f32.mrb[0].mxu0
        %1497 = vmatprep.mubr.f32.mxu0 0.0
        %1498 = vmatmul.mubr.f32.gmra.mrb[0].mxu0 %v1152
        %v1499 = vpop.f32.mrb[0].mxu0
        %v1500 = vadd.f32 0.0, %v1499
        %v1501 = vpop.f32.mrb[0].mxu0
        %1502 = vmatprep.mubr.f32.mxu0 0.0
        %1503 = vmatmul.mubr.f32.gmra.mrb[0].mxu0 %v1155
        %v1504 = vpop.f32.mrb[0].mxu0
        %v1505 = vadd.f32 0.0, %v1504
        %v1506 = vpop.f32.mrb[0].mxu0
        %1507 = vmatprep.mubr.f32.mxu0 0.0
        %1508 = vmatmul.mubr.f32.gmra.mrb[0].mxu0 %v1158
        %v1509 = vpop.f32.mrb[0].mxu0
        %v1510 = vadd.f32 0.0, %v1509
        %v1511 = vpop.f32.mrb[0].mxu0
        %1512 = vmatprep.mubr.f32.mxu0 0.0
        %1513 = vmatmul.mubr.f32.gmra.mrb[0].mxu0 %v1161
        %v1514 = vpop.f32.mrb[0].mxu0
        %v1515 = vadd.f32 0.0, %v1514
        %v1516 = vpop.f32.mrb[0].mxu0
        %1517 = vmatprep.mubr.f32.mxu0 0.0
        %1518 = vmatmul.mubr.f32.gmra.mrb[0].mxu0 %v1164
        %v1519 = vpop.f32.mrb[0].mxu0
        %v1520 = vadd.f32 0.0, %v1519
        %v1521 = vpop.f32.mrb[0].mxu0
        %1522 = vmatprep.mubr.f32.mxu0 0.0
        %1523 = vmatmul.mubr.f32.gmra.mrb[0].mxu0 %v1167
        %v1524 = vpop.f32.mrb[0].mxu0
        %v1525 = vadd.f32 0.0, %v1524
        %v1526 = vpop.f32.mrb[0].mxu0
        %1527 = vmatprep.mubr.f32.mxu0 0.0
        %1528 = vmatmul.mubr.f32.gmra.mrb[0].mxu0 %v1170
        %v1529 = vpop.f32.mrb[0].mxu0
        %v1530 = vadd.f32 0.0, %v1529
        %v1531 = vpop.f32.mrb[0].mxu0
        %1532 = vmatprep.mubr.f32.mxu0 0.0
        %1533 = vmatmul.mubr.f32.gmra.mrb[0].mxu0 %v1173
        %v1534 = vpop.f32.mrb[0].mxu0
        %v1535 = vadd.f32 0.0, %v1534
        %v1536 = vpop.f32.mrb[0].mxu0
        %1537 = vmatprep.mubr.f32.mxu0 0.0
        %1538 = vmatmul.mubr.f32.gmra.mrb[0].mxu0 %v1176
        %v1539 = vpop.f32.mrb[0].mxu0
        %v1540 = vadd.f32 0.0, %v1539
        %v1541 = vpop.f32.mrb[0].mxu0
        %1542 = vmatprep.mubr.f32.mxu0 0.0
        %1543 = vmatmul.mubr.f32.gmra.mrb[0].mxu0 %v1179
        %v1544 = vpop.f32.mrb[0].mxu0
        %v1545 = vadd.f32 0.0, %v1544
        %v1546 = vpop.f32.mrb[0].mxu0
        %1547 = vmatprep.mubr.f32.mxu0 0.0
        %1548 = vmatmul.mubr.f32.gmra.mrb[0].mxu0 %v1182
        %v1549 = vpop.f32.mrb[0].mxu0
        %v1550 = vadd.f32 0.0, %v1549
        %v1551 = vpop.f32.mrb[0].mxu0
        %1552 = vmatprep.mubr.f32.mxu0 0.0
        %1553 = vmatmul.mubr.f32.gmra.mrb[0].mxu0 %v1185
        %v1554 = vpop.f32.mrb[0].mxu0
        %v1555 = vadd.f32 0.0, %v1554
        %v1556 = vpop.f32.mrb[0].mxu0
        %1557 = vmatprep.mubr.f32.mxu0 0.0
        %1558 = vmatmul.mubr.f32.gmra.mrb[0].mxu0 %v1188
        %v1559 = vpop.f32.mrb[0].mxu0
        %v1560 = vadd.f32 0.0, %v1559
        %v1561 = vpop.f32.mrb[0].mxu0
        %1562 = vmatprep.mubr.f32.mxu0 0.0
        %1563 = vmatmul.mubr.f32.gmra.mrb[0].mxu0 %v1191
        %v1564 = vpop.f32.mrb[0].mxu0
        %v1565 = vadd.f32 0.0, %v1564
        %v1566 = vpop.f32.mrb[0].mxu0
        %1567 = vmatprep.mubr.f32.mxu0 0.0
        %1568 = vmatmul.mubr.f32.gmra.mrb[0].mxu0 %v1194
        %v1569 = vpop.f32.mrb[0].mxu0
        %v1570 = vadd.f32 0.0, %v1569
        %v1571 = vpop.f32.mrb[0].mxu0
        %1572 = vmatprep.mubr.f32.mxu0 0.0
        %1573 = vmatmul.mubr.f32.gmra.mrb[0].mxu0 %v1197
        %v1574 = vpop.f32.mrb[0].mxu0
        %v1575 = vadd.f32 0.0, %v1574
        %v1576 = vpop.f32.mrb[0].mxu0
        %1577 = vmatprep.mubr.f32.mxu0 0.0
        %1578 = vmatmul.mubr.f32.gmra.mrb[0].mxu0 %v1200
        %v1579 = vpop.f32.mrb[0].mxu0
        %v1580 = vadd.f32 0.0, %v1579
        %v1581 = vpop.f32.mrb[0].mxu0
        %1582 = vmatprep.mubr.f32.mxu0 0.0
        %1583 = vmatmul.mubr.f32.gmra.mrb[0].mxu0 %v1203
        %v1584 = vpop.f32.mrb[0].mxu0
        %v1585 = vadd.f32 0.0, %v1584
        %v1586 = vpop.f32.mrb[0].mxu0
        %1587 = vmatprep.mubr.f32.mxu0 0.0
        %1588 = vmatmul.mubr.f32.gmra.mrb[0].mxu0 %v1206
        %v1589 = vpop.f32.mrb[0].mxu0
        %v1590 = vadd.f32 0.0, %v1589
        %v1591 = vpop.f32.mrb[0].mxu0
        %1592 = vmatprep.mubr.f32.mxu0 0.0
        %1593 = vmatmul.mubr.f32.gmra.mrb[0].mxu0 %v1209
        %v1594 = vpop.f32.mrb[0].mxu0
        %v1595 = vadd.f32 0.0, %v1594
        %v1596 = vpop.f32.mrb[0].mxu0
        %1597 = vmatprep.mubr.f32.mxu0 0.0
        %1598 = vmatmul.mubr.f32.gmra.mrb[0].mxu0 %v1212
        %v1599 = vpop.f32.mrb[0].mxu0
        %v1600 = vadd.f32 0.0, %v1599
        %v1601 = vpop.f32.mrb[0].mxu0
        %1602 = vmatprep.mubr.f32.mxu0 0.0
        %1603 = vmatmul.mubr.f32.gmra.mrb[0].mxu0 %v1215
        %v1604 = vpop.f32.mrb[0].mxu0
        %v1605 = vadd.f32 0.0, %v1604
        %v1606 = vpop.f32.mrb[0].mxu0
        %1607 = vmatprep.mubr.f32.mxu0 0.0
        %1608 = vmatmul.mubr.f32.gmra.mrb[0].mxu0 %v1218
        %v1609 = vpop.f32.mrb[0].mxu0
        %v1610 = vadd.f32 0.0, %v1609
        %v1611 = vpop.f32.mrb[0].mxu0
        %1612 = vmatprep.mubr.f32.mxu0 0.0
        %1613 = vmatmul.mubr.f32.gmra.mrb[0].mxu0 %v1221
        %v1614 = vpop.f32.mrb[0].mxu0
        %v1615 = vadd.f32 0.0, %v1614
        %v1616 = vpop.f32.mrb[0].mxu0
        %1617 = vmatprep.mubr.f32.mxu0 0.0
        %1618 = vmatmul.mubr.f32.gmra.mrb[0].mxu0 %v1224
        %v1619 = vpop.f32.mrb[0].mxu0
        %v1620 = vadd.f32 0.0, %v1619
        %v1621 = vpop.f32.mrb[0].mxu0
        %1622 = vmatprep.mubr.f32.mxu0 0.0
        %1623 = vmatmul.mubr.f32.gmra.mrb[0].mxu0 %v1227
        %v1624 = vpop.f32.mrb[0].mxu0
        %v1625 = vadd.f32 0.0, %v1624
        %v1626 = vpop.f32.mrb[0].mxu0
        %1627 = vmatprep.mubr.f32.mxu0 0.0
        %1628 = vmatmul.mubr.f32.gmra.mrb[0].mxu0 %v1230
        %v1629 = vpop.f32.mrb[0].mxu0
        %v1630 = vadd.f32 0.0, %v1629
        %v1631 = vpop.f32.mrb[0].mxu0
        %1632 = vmatprep.mubr.f32.mxu0 0.0
        %1633 = vmatmul.mubr.f32.gmra.mrb[0].mxu0 %v1233
        %v1634 = vpop.f32.mrb[0].mxu0
        %v1635 = vadd.f32 0.0, %v1634
        %v1636 = vpop.f32.mrb[0].mxu0
        %1637 = vmatprep.mubr.f32.mxu0 0.0
        %1638 = vmatmul.mubr.f32.gmra.mrb[0].mxu0 %v1236
        %v1639 = vpop.f32.mrb[0].mxu0
        %v1640 = vadd.f32 0.0, %v1639
        %v1641 = vpop.f32.mrb[0].mxu0
        %1642 = vmatprep.mubr.f32.mxu0 0.0
        %1643 = vmatmul.mubr.f32.gmra.mrb[0].mxu0 %v1239
        %v1644 = vpop.f32.mrb[0].mxu0
        %v1645 = vadd.f32 0.0, %v1644
        %v1646 = vpop.f32.mrb[0].mxu0
        %1647 = vmatprep.mubr.f32.mxu0 0.0
        %1648 = vmatmul.mubr.f32.gmra.mrb[0].mxu0 %v1242
        %v1649 = vpop.f32.mrb[0].mxu0
        %v1650 = vadd.f32 0.0, %v1649
        %v1651 = vpop.f32.mrb[0].mxu0
        %1652 = vmatprep.mubr.f32.mxu0 0.0
        %1653 = vmatmul.mubr.f32.gmra.mrb[0].mxu0 %v1245
        %v1654 = vpop.f32.mrb[0].mxu0
        %v1655 = vadd.f32 0.0, %v1654
        %v1656 = vpop.f32.mrb[0].mxu0
        %1657 = vmatprep.mubr.f32.mxu0 0.0
        %1658 = vmatmul.mubr.f32.gmra.mrb[0].mxu0 %v1248
        %v1659 = vpop.f32.mrb[0].mxu0
        %v1660 = vadd.f32 0.0, %v1659
        %v1661 = vpop.f32.mrb[0].mxu0
        %1662 = vmatprep.mubr.f32.mxu0 0.0
        %1663 = vmatmul.mubr.f32.gmra.mrb[0].mxu0 %v1251
        %v1664 = vpop.f32.mrb[0].mxu0
        %v1665 = vadd.f32 0.0, %v1664
        %v1666 = vpop.f32.mrb[0].mxu0
        %1667 = vmatprep.mubr.f32.mxu0 0.0
        %1668 = vmatmul.mubr.f32.gmra.mrb[0].mxu0 %v1254
        %v1669 = vpop.f32.mrb[0].mxu0
        %v1670 = vadd.f32 0.0, %v1669
        %v1671 = vpop.f32.mrb[0].mxu0
        %1672 = vmatprep.mubr.f32.mxu0 0.0
        %1673 = vmatmul.mubr.f32.gmra.mrb[0].mxu0 %v1257
        %v1674 = vpop.f32.mrb[0].mxu0
        %v1675 = vadd.f32 0.0, %v1674
        %v1676 = vpop.f32.mrb[0].mxu0
        %1677 = vmatprep.mubr.f32.mxu0 0.0
        %1678 = vmatmul.mubr.f32.gmra.mrb[0].mxu0 %v1260
        %v1679 = vpop.f32.mrb[0].mxu0
        %v1680 = vadd.f32 0.0, %v1679
        %v1681 = vpop.f32.mrb[0].mxu0
        %1682 = vmatprep.mubr.f32.mxu0 0.0
        %1683 = vmatmul.mubr.f32.gmra.mrb[0].mxu0 %v1263
        %v1684 = vpop.f32.mrb[0].mxu0
        %v1685 = vadd.f32 0.0, %v1684
        %v1686 = vpop.f32.mrb[0].mxu0
        %1687 = vmatprep.mubr.f32.mxu0 0.0
        %1688 = vmatmul.mubr.f32.gmra.mrb[0].mxu0 %v1266
        %v1689 = vpop.f32.mrb[0].mxu0
        %v1690 = vadd.f32 0.0, %v1689
        %v1691 = vpop.f32.mrb[0].mxu0
        %1692 = vdwg.mxu0
        %v1693 = vadd.f32 %v618, %v623
        %v1694 = vadd.f32 %v1693, %v628
        %v1695 = vadd.f32 %v1694, %v633
        %v1696 = vadd.f32 %v1695, %v638
        %v1697 = vadd.f32 %v1696, %v643
        %v1698 = vadd.f32 %v1697, %v648
        %v1699 = vadd.f32 %v1698, %v653
        %v1700 = vadd.f32 %v1699, %v658
        %v1701 = vadd.f32 %v1700, %v663
        %v1702 = vadd.f32 %v1701, %v668
        %v1703 = vadd.f32 %v1702, %v673
        %v1704 = vadd.f32 %v1703, %v678
        %v1705 = vadd.f32 %v1704, %v683
        %v1706 = vadd.f32 %v1705, %v688
        %v1707 = vadd.f32 %v1706, %v693
        %v1708 = vadd.f32 %v1707, %v698
        %v1709 = vadd.f32 %v1708, %v703
        %v1710 = vadd.f32 %v1709, %v708
        %v1711 = vadd.f32 %v1710, %v713
        %v1712 = vadd.f32 %v1711, %v718
        %v1713 = vadd.f32 %v1712, %v723
        %v1714 = vadd.f32 %v1713, %v728
        %v1715 = vadd.f32 %v1714, %v733
        %v1716 = vadd.f32 %v1715, %v738
        %v1717 = vadd.f32 %v1716, %v743
        %v1718 = vadd.f32 %v1717, %v748
        %v1719 = vadd.f32 %v1718, %v753
        %v1720 = vadd.f32 %v1719, %v758
        %v1721 = vadd.f32 %v1720, %v763
        %v1722 = vadd.f32 %v1721, %v768
        %v1723 = vadd.f32 %v1722, %v773
        %v1724 = vadd.f32 %v1723, %v778
        %v1725 = vadd.f32 %v1724, %v783
        %v1726 = vadd.f32 %v1725, %v788
        %v1727 = vadd.f32 %v1726, %v793
        %v1728 = vadd.f32 %v1727, %v798
        %v1729 = vadd.f32 %v1728, %v803
        %v1730 = vadd.f32 %v1729, %v808
        %v1731 = vadd.f32 %v1730, %v813
        %v1732 = vadd.f32 %v1731, %v818
        %v1733 = vadd.f32 %v1732, %v823
        %v1734 = vadd.f32 %v1733, %v828
        %v1735 = vadd.f32 %v1734, %v833
        %v1736 = vadd.f32 %v1735, %v838
        %v1737 = vadd.f32 %v1736, %v843
        %v1738 = vadd.f32 %v1737, %v848
        %v1739 = vadd.f32 %v1738, %v853
        %v1740 = vadd.f32 %v1739, %v858
        %v1741 = vadd.f32 %v1740, %v863
        %v1742 = vadd.f32 %v1741, %v868
        %v1743 = vadd.f32 %v1742, %v873
        %v1744 = vadd.f32 %v1743, %v878
        %v1745 = vadd.f32 %v1744, %v883
        %v1746 = vadd.f32 %v1745, %v888
        %v1747 = vadd.f32 %v1746, %v893
        %v1748 = vadd.f32 %v1747, %v898
        %v1749 = vadd.f32 %v1748, %v903
        %v1750 = vadd.f32 %v1749, %v908
        %v1751 = vadd.f32 %v1750, %v913
        %v1752 = vadd.f32 %v1751, %v918
        %v1753 = vadd.f32 %v1752, %v923
        %v1754 = vadd.f32 %v1753, %v928
        %v1755 = vadd.f32 %v1754, %v933
        %v1756 = vadd.f32 %v1755, %v938
        %v1757 = vadd.f32 %v1756, %v943
        %v1758 = vadd.f32 %v1757, %v948
        %v1759 = vadd.f32 %v1758, %v953
        %v1760 = vadd.f32 %v1759, %v958
        %v1761 = vadd.f32 %v1760, %v963
        %v1762 = vadd.f32 %v1761, %v968
        %v1763 = vadd.f32 %v1762, %v973
        %v1764 = vrot.slane %v1763, 4
        %v1765 = vadd.f32 %v1763, %v1764
        %v1766 = vrot.slane %v1765, 2
        %v1767 = vadd.f32 %v1765, %v1766
        %v1768 = vrot.slane %v1767, 1
        %v1769 = vadd.f32 %v1767, %v1768
        %v1770 = vmul.f32 %v618, %v618
        %v1771 = vmul.f32 %v623, %v623
        %v1772 = vmul.f32 %v628, %v628
        %v1773 = vmul.f32 %v633, %v633
        %v1774 = vmul.f32 %v638, %v638
        %v1775 = vmul.f32 %v643, %v643
        %v1776 = vmul.f32 %v648, %v648
        %v1777 = vmul.f32 %v653, %v653
        %v1778 = vmul.f32 %v658, %v658
        %v1779 = vmul.f32 %v663, %v663
        %v1780 = vmul.f32 %v668, %v668
        %v1781 = vmul.f32 %v673, %v673
        %v1782 = vmul.f32 %v678, %v678
        %v1783 = vmul.f32 %v683, %v683
        %v1784 = vmul.f32 %v688, %v688
        %v1785 = vmul.f32 %v693, %v693
        %v1786 = vmul.f32 %v698, %v698
        %v1787 = vmul.f32 %v703, %v703
        %v1788 = vmul.f32 %v708, %v708
        %v1789 = vmul.f32 %v713, %v713
        %v1790 = vmul.f32 %v718, %v718
        %v1791 = vmul.f32 %v723, %v723
        %v1792 = vmul.f32 %v728, %v728
        %v1793 = vmul.f32 %v733, %v733
        %v1794 = vmul.f32 %v738, %v738
        %v1795 = vmul.f32 %v743, %v743
        %v1796 = vmul.f32 %v748, %v748
        %v1797 = vmul.f32 %v753, %v753
        %v1798 = vmul.f32 %v758, %v758
        %v1799 = vmul.f32 %v763, %v763
        %v1800 = vmul.f32 %v768, %v768
        %v1801 = vmul.f32 %v773, %v773
        %v1802 = vmul.f32 %v778, %v778
        %v1803 = vmul.f32 %v783, %v783
        %v1804 = vmul.f32 %v788, %v788
        %v1805 = vmul.f32 %v793, %v793
        %v1806 = vmul.f32 %v798, %v798
        %v1807 = vmul.f32 %v803, %v803
        %v1808 = vmul.f32 %v808, %v808
        %v1809 = vmul.f32 %v813, %v813
        %v1810 = vmul.f32 %v818, %v818
        %v1811 = vmul.f32 %v823, %v823
        %v1812 = vmul.f32 %v828, %v828
        %v1813 = vmul.f32 %v833, %v833
        %v1814 = vmul.f32 %v838, %v838
        %v1815 = vmul.f32 %v843, %v843
        %v1816 = vmul.f32 %v848, %v848
        %v1817 = vmul.f32 %v853, %v853
        %v1818 = vmul.f32 %v858, %v858
        %v1819 = vmul.f32 %v863, %v863
        %v1820 = vmul.f32 %v868, %v868
        %v1821 = vmul.f32 %v873, %v873
        %v1822 = vmul.f32 %v878, %v878
        %v1823 = vmul.f32 %v883, %v883
        %v1824 = vmul.f32 %v888, %v888
        %v1825 = vmul.f32 %v893, %v893
        %v1826 = vmul.f32 %v898, %v898
        %v1827 = vmul.f32 %v903, %v903
        %v1828 = vmul.f32 %v908, %v908
        %v1829 = vmul.f32 %v913, %v913
        %v1830 = vmul.f32 %v918, %v918
        %v1831 = vmul.f32 %v923, %v923
        %v1832 = vmul.f32 %v928, %v928
        %v1833 = vmul.f32 %v933, %v933
        %v1834 = vmul.f32 %v938, %v938
        %v1835 = vmul.f32 %v943, %v943
        %v1836 = vmul.f32 %v948, %v948
        %v1837 = vmul.f32 %v953, %v953
        %v1838 = vmul.f32 %v958, %v958
        %v1839 = vmul.f32 %v963, %v963
        %v1840 = vmul.f32 %v968, %v968
        %v1841 = vmul.f32 %v973, %v973
        %v1842 = vadd.f32 %v1770, %v1771
        %v1843 = vadd.f32 %v1842, %v1772
        %v1844 = vadd.f32 %v1843, %v1773
        %v1845 = vadd.f32 %v1844, %v1774
        %v1846 = vadd.f32 %v1845, %v1775
        %v1847 = vadd.f32 %v1846, %v1776
        %v1848 = vadd.f32 %v1847, %v1777
        %v1849 = vadd.f32 %v1848, %v1778
        %v1850 = vadd.f32 %v1849, %v1779
        %v1851 = vadd.f32 %v1850, %v1780
        %v1852 = vadd.f32 %v1851, %v1781
        %v1853 = vadd.f32 %v1852, %v1782
        %v1854 = vadd.f32 %v1853, %v1783
        %v1855 = vadd.f32 %v1854, %v1784
        %v1856 = vadd.f32 %v1855, %v1785
        %v1857 = vadd.f32 %v1856, %v1786
        %v1858 = vadd.f32 %v1857, %v1787
        %v1859 = vadd.f32 %v1858, %v1788
        %v1860 = vadd.f32 %v1859, %v1789
        %v1861 = vadd.f32 %v1860, %v1790
        %v1862 = vadd.f32 %v1861, %v1791
        %v1863 = vadd.f32 %v1862, %v1792
        %v1864 = vadd.f32 %v1863, %v1793
        %v1865 = vadd.f32 %v1864, %v1794
        %v1866 = vadd.f32 %v1865, %v1795
        %v1867 = vadd.f32 %v1866, %v1796
        %v1868 = vadd.f32 %v1867, %v1797
        %v1869 = vadd.f32 %v1868, %v1798
        %v1870 = vadd.f32 %v1869, %v1799
        %v1871 = vadd.f32 %v1870, %v1800
        %v1872 = vadd.f32 %v1871, %v1801
        %v1873 = vadd.f32 %v1872, %v1802
        %v1874 = vadd.f32 %v1873, %v1803
        %v1875 = vadd.f32 %v1874, %v1804
        %v1876 = vadd.f32 %v1875, %v1805
        %v1877 = vadd.f32 %v1876, %v1806
        %v1878 = vadd.f32 %v1877, %v1807
        %v1879 = vadd.f32 %v1878, %v1808
        %v1880 = vadd.f32 %v1879, %v1809
        %v1881 = vadd.f32 %v1880, %v1810
        %v1882 = vadd.f32 %v1881, %v1811
        %v1883 = vadd.f32 %v1882, %v1812
        %v1884 = vadd.f32 %v1883, %v1813
        %v1885 = vadd.f32 %v1884, %v1814
        %v1886 = vadd.f32 %v1885, %v1815
        %v1887 = vadd.f32 %v1886, %v1816
        %v1888 = vadd.f32 %v1887, %v1817
        %v1889 = vadd.f32 %v1888, %v1818
        %v1890 = vadd.f32 %v1889, %v1819
        %v1891 = vadd.f32 %v1890, %v1820
        %v1892 = vadd.f32 %v1891, %v1821
        %v1893 = vadd.f32 %v1892, %v1822
        %v1894 = vadd.f32 %v1893, %v1823
        %v1895 = vadd.f32 %v1894, %v1824
        %v1896 = vadd.f32 %v1895, %v1825
        %v1897 = vadd.f32 %v1896, %v1826
        %v1898 = vadd.f32 %v1897, %v1827
        %v1899 = vadd.f32 %v1898, %v1828
        %v1900 = vadd.f32 %v1899, %v1829
        %v1901 = vadd.f32 %v1900, %v1830
        %v1902 = vadd.f32 %v1901, %v1831
        %v1903 = vadd.f32 %v1902, %v1832
        %v1904 = vadd.f32 %v1903, %v1833
        %v1905 = vadd.f32 %v1904, %v1834
        %v1906 = vadd.f32 %v1905, %v1835
        %v1907 = vadd.f32 %v1906, %v1836
        %v1908 = vadd.f32 %v1907, %v1837
        %v1909 = vadd.f32 %v1908, %v1838
        %v1910 = vadd.f32 %v1909, %v1839
        %v1911 = vadd.f32 %v1910, %v1840
        %v1912 = vadd.f32 %v1911, %v1841
        %v1913 = vrot.slane %v1912, 4
        %v1914 = vadd.f32 %v1912, %v1913
        %v1915 = vrot.slane %v1914, 2
        %v1916 = vadd.f32 %v1914, %v1915
        %v1917 = vrot.slane %v1916, 1
        %v1918 = vadd.f32 %v1916, %v1917
        %v1919 = vadd.f32 %v1335, %v1340
        %v1920 = vadd.f32 %v1919, %v1345
        %v1921 = vadd.f32 %v1920, %v1350
        %v1922 = vadd.f32 %v1921, %v1355
        %v1923 = vadd.f32 %v1922, %v1360
        %v1924 = vadd.f32 %v1923, %v1365
        %v1925 = vadd.f32 %v1924, %v1370
        %v1926 = vadd.f32 %v1925, %v1375
        %v1927 = vadd.f32 %v1926, %v1380
        %v1928 = vadd.f32 %v1927, %v1385
        %v1929 = vadd.f32 %v1928, %v1390
        %v1930 = vadd.f32 %v1929, %v1395
        %v1931 = vadd.f32 %v1930, %v1400
        %v1932 = vadd.f32 %v1931, %v1405
        %v1933 = vadd.f32 %v1932, %v1410
        %v1934 = vadd.f32 %v1933, %v1415
        %v1935 = vadd.f32 %v1934, %v1420
        %v1936 = vadd.f32 %v1935, %v1425
        %v1937 = vadd.f32 %v1936, %v1430
        %v1938 = vadd.f32 %v1937, %v1435
        %v1939 = vadd.f32 %v1938, %v1440
        %v1940 = vadd.f32 %v1939, %v1445
        %v1941 = vadd.f32 %v1940, %v1450
        %v1942 = vadd.f32 %v1941, %v1455
        %v1943 = vadd.f32 %v1942, %v1460
        %v1944 = vadd.f32 %v1943, %v1465
        %v1945 = vadd.f32 %v1944, %v1470
        %v1946 = vadd.f32 %v1945, %v1475
        %v1947 = vadd.f32 %v1946, %v1480
        %v1948 = vadd.f32 %v1947, %v1485
        %v1949 = vadd.f32 %v1948, %v1490
        %v1950 = vadd.f32 %v1949, %v1495
        %v1951 = vadd.f32 %v1950, %v1500
        %v1952 = vadd.f32 %v1951, %v1505
        %v1953 = vadd.f32 %v1952, %v1510
        %v1954 = vadd.f32 %v1953, %v1515
        %v1955 = vadd.f32 %v1954, %v1520
        %v1956 = vadd.f32 %v1955, %v1525
        %v1957 = vadd.f32 %v1956, %v1530
        %v1958 = vadd.f32 %v1957, %v1535
        %v1959 = vadd.f32 %v1958, %v1540
        %v1960 = vadd.f32 %v1959, %v1545
        %v1961 = vadd.f32 %v1960, %v1550
        %v1962 = vadd.f32 %v1961, %v1555
        %v1963 = vadd.f32 %v1962, %v1560
        %v1964 = vadd.f32 %v1963, %v1565
        %v1965 = vadd.f32 %v1964, %v1570
        %v1966 = vadd.f32 %v1965, %v1575
        %v1967 = vadd.f32 %v1966, %v1580
        %v1968 = vadd.f32 %v1967, %v1585
        %v1969 = vadd.f32 %v1968, %v1590
        %v1970 = vadd.f32 %v1969, %v1595
        %v1971 = vadd.f32 %v1970, %v1600
        %v1972 = vadd.f32 %v1971, %v1605
        %v1973 = vadd.f32 %v1972, %v1610
        %v1974 = vadd.f32 %v1973, %v1615
        %v1975 = vadd.f32 %v1974, %v1620
        %v1976 = vadd.f32 %v1975, %v1625
        %v1977 = vadd.f32 %v1976, %v1630
        %v1978 = vadd.f32 %v1977, %v1635
        %v1979 = vadd.f32 %v1978, %v1640
        %v1980 = vadd.f32 %v1979, %v1645
        %v1981 = vadd.f32 %v1980, %v1650
        %v1982 = vadd.f32 %v1981, %v1655
        %v1983 = vadd.f32 %v1982, %v1660
        %v1984 = vadd.f32 %v1983, %v1665
        %v1985 = vadd.f32 %v1984, %v1670
        %v1986 = vadd.f32 %v1985, %v1675
        %v1987 = vadd.f32 %v1986, %v1680
        %v1988 = vadd.f32 %v1987, %v1685
        %v1989 = vadd.f32 %v1988, %v1690
        %v1990 = vrot.slane %v1989, 4
        %v1991 = vadd.f32 %v1989, %v1990
        %v1992 = vrot.slane %v1991, 2
        %v1993 = vadd.f32 %v1991, %v1992
        %v1994 = vrot.slane %v1993, 1
        %v1995 = vadd.f32 %v1993, %v1994
        %v1996 = vmul.f32 %v1335, %v1335
        %v1997 = vmul.f32 %v1340, %v1340
        %v1998 = vmul.f32 %v1345, %v1345
        %v1999 = vmul.f32 %v1350, %v1350
        %v2000 = vmul.f32 %v1355, %v1355
        %v2001 = vmul.f32 %v1360, %v1360
        %v2002 = vmul.f32 %v1365, %v1365
        %v2003 = vmul.f32 %v1370, %v1370
        %v2004 = vmul.f32 %v1375, %v1375
        %v2005 = vmul.f32 %v1380, %v1380
        %v2006 = vmul.f32 %v1385, %v1385
        %v2007 = vmul.f32 %v1390, %v1390
        %v2008 = vmul.f32 %v1395, %v1395
        %v2009 = vmul.f32 %v1400, %v1400
        %v2010 = vmul.f32 %v1405, %v1405
        %v2011 = vmul.f32 %v1410, %v1410
        %v2012 = vmul.f32 %v1415, %v1415
        %v2013 = vmul.f32 %v1420, %v1420
        %v2014 = vmul.f32 %v1425, %v1425
        %v2015 = vmul.f32 %v1430, %v1430
        %v2016 = vmul.f32 %v1435, %v1435
        %v2017 = vmul.f32 %v1440, %v1440
        %v2018 = vmul.f32 %v1445, %v1445
        %v2019 = vmul.f32 %v1450, %v1450
        %v2020 = vmul.f32 %v1455, %v1455
        %v2021 = vmul.f32 %v1460, %v1460
        %v2022 = vmul.f32 %v1465, %v1465
        %v2023 = vmul.f32 %v1470, %v1470
        %v2024 = vmul.f32 %v1475, %v1475
        %v2025 = vmul.f32 %v1480, %v1480
        %v2026 = vmul.f32 %v1485, %v1485
        %v2027 = vmul.f32 %v1490, %v1490
        %v2028 = vmul.f32 %v1495, %v1495
        %v2029 = vmul.f32 %v1500, %v1500
        %v2030 = vmul.f32 %v1505, %v1505
        %v2031 = vmul.f32 %v1510, %v1510
        %v2032 = vmul.f32 %v1515, %v1515
        %v2033 = vmul.f32 %v1520, %v1520
        %v2034 = vmul.f32 %v1525, %v1525
        %v2035 = vmul.f32 %v1530, %v1530
        %v2036 = vmul.f32 %v1535, %v1535
        %v2037 = vmul.f32 %v1540, %v1540
        %v2038 = vmul.f32 %v1545, %v1545
        %v2039 = vmul.f32 %v1550, %v1550
        %v2040 = vmul.f32 %v1555, %v1555
        %v2041 = vmul.f32 %v1560, %v1560
        %v2042 = vmul.f32 %v1565, %v1565
        %v2043 = vmul.f32 %v1570, %v1570
        %v2044 = vmul.f32 %v1575, %v1575
        %v2045 = vmul.f32 %v1580, %v1580
        %v2046 = vmul.f32 %v1585, %v1585
        %v2047 = vmul.f32 %v1590, %v1590
        %v2048 = vmul.f32 %v1595, %v1595
        %v2049 = vmul.f32 %v1600, %v1600
        %v2050 = vmul.f32 %v1605, %v1605
        %v2051 = vmul.f32 %v1610, %v1610
        %v2052 = vmul.f32 %v1615, %v1615
        %v2053 = vmul.f32 %v1620, %v1620
        %v2054 = vmul.f32 %v1625, %v1625
        %v2055 = vmul.f32 %v1630, %v1630
        %v2056 = vmul.f32 %v1635, %v1635
        %v2057 = vmul.f32 %v1640, %v1640
        %v2058 = vmul.f32 %v1645, %v1645
        %v2059 = vmul.f32 %v1650, %v1650
        %v2060 = vmul.f32 %v1655, %v1655
        %v2061 = vmul.f32 %v1660, %v1660
        %v2062 = vmul.f32 %v1665, %v1665
        %v2063 = vmul.f32 %v1670, %v1670
        %v2064 = vmul.f32 %v1675, %v1675
        %v2065 = vmul.f32 %v1680, %v1680
        %v2066 = vmul.f32 %v1685, %v1685
        %v2067 = vmul.f32 %v1690, %v1690
        %v2068 = vadd.f32 %v1996, %v1997
        %v2069 = vadd.f32 %v2068, %v1998
        %v2070 = vadd.f32 %v2069, %v1999
        %v2071 = vadd.f32 %v2070, %v2000
        %v2072 = vadd.f32 %v2071, %v2001
        %v2073 = vadd.f32 %v2072, %v2002
        %v2074 = vadd.f32 %v2073, %v2003
        %v2075 = vadd.f32 %v2074, %v2004
        %v2076 = vadd.f32 %v2075, %v2005
        %v2077 = vadd.f32 %v2076, %v2006
        %v2078 = vadd.f32 %v2077, %v2007
        %v2079 = vadd.f32 %v2078, %v2008
        %v2080 = vadd.f32 %v2079, %v2009
        %v2081 = vadd.f32 %v2080, %v2010
        %v2082 = vadd.f32 %v2081, %v2011
        %v2083 = vadd.f32 %v2082, %v2012
        %v2084 = vadd.f32 %v2083, %v2013
        %v2085 = vadd.f32 %v2084, %v2014
        %v2086 = vadd.f32 %v2085, %v2015
        %v2087 = vadd.f32 %v2086, %v2016
        %v2088 = vadd.f32 %v2087, %v2017
        %v2089 = vadd.f32 %v2088, %v2018
        %v2090 = vadd.f32 %v2089, %v2019
        %v2091 = vadd.f32 %v2090, %v2020
        %v2092 = vadd.f32 %v2091, %v2021
        %v2093 = vadd.f32 %v2092, %v2022
        %v2094 = vadd.f32 %v2093, %v2023
        %v2095 = vadd.f32 %v2094, %v2024
        %v2096 = vadd.f32 %v2095, %v2025
        %v2097 = vadd.f32 %v2096, %v2026
        %v2098 = vadd.f32 %v2097, %v2027
        %v2099 = vadd.f32 %v2098, %v2028
        %v2100 = vadd.f32 %v2099, %v2029
        %v2101 = vadd.f32 %v2100, %v2030
        %v2102 = vadd.f32 %v2101, %v2031
        %v2103 = vadd.f32 %v2102, %v2032
        %v2104 = vadd.f32 %v2103, %v2033
        %v2105 = vadd.f32 %v2104, %v2034
        %v2106 = vadd.f32 %v2105, %v2035
        %v2107 = vadd.f32 %v2106, %v2036
        %v2108 = vadd.f32 %v2107, %v2037
        %v2109 = vadd.f32 %v2108, %v2038
        %v2110 = vadd.f32 %v2109, %v2039
        %v2111 = vadd.f32 %v2110, %v2040
        %v2112 = vadd.f32 %v2111, %v2041
        %v2113 = vadd.f32 %v2112, %v2042
        %v2114 = vadd.f32 %v2113, %v2043
        %v2115 = vadd.f32 %v2114, %v2044
        %v2116 = vadd.f32 %v2115, %v2045
        %v2117 = vadd.f32 %v2116, %v2046
        %v2118 = vadd.f32 %v2117, %v2047
        %v2119 = vadd.f32 %v2118, %v2048
        %v2120 = vadd.f32 %v2119, %v2049
        %v2121 = vadd.f32 %v2120, %v2050
        %v2122 = vadd.f32 %v2121, %v2051
        %v2123 = vadd.f32 %v2122, %v2052
        %v2124 = vadd.f32 %v2123, %v2053
        %v2125 = vadd.f32 %v2124, %v2054
        %v2126 = vadd.f32 %v2125, %v2055
        %v2127 = vadd.f32 %v2126, %v2056
        %v2128 = vadd.f32 %v2127, %v2057
        %v2129 = vadd.f32 %v2128, %v2058
        %v2130 = vadd.f32 %v2129, %v2059
        %v2131 = vadd.f32 %v2130, %v2060
        %v2132 = vadd.f32 %v2131, %v2061
        %v2133 = vadd.f32 %v2132, %v2062
        %v2134 = vadd.f32 %v2133, %v2063
        %v2135 = vadd.f32 %v2134, %v2064
        %v2136 = vadd.f32 %v2135, %v2065
        %v2137 = vadd.f32 %v2136, %v2066
        %v2138 = vadd.f32 %v2137, %v2067
        %v2139 = vrot.slane %v2138, 4
        %v2140 = vadd.f32 %v2138, %v2139
        %v2141 = vrot.slane %v2140, 2
        %v2142 = vadd.f32 %v2140, %v2141
        %v2143 = vrot.slane %v2142, 1
        %v2144 = vadd.f32 %v2142, %v2143
        %vm2145 = vcmask 1040384
        %v2146 = vsel %vm2145, %v1769, %v1918
        %vm2147 = vcmask 1041408
        %v2148 = vsel %vm2147, %v2146, %v1995
        %vm2149 = vcmask 1042432
        %v2150 = vsel %vm2149, %v2148, %v2144
        %2151 = vst [vmem:[%s257] sm:$0xf] %v2150
        %p2152 = scmp.lt.s32.totalorder %s21, 1
        %s2153 = scalar_select %p2152, %s21, 1
        %s2154 = smul.addr %s2153, 4
        %s2155 = scalar_lea.vmem %s4, %s2154
        // Predicated region
        $region45: #{attention_block_forward.3} parent=35 // pred_check
          %p2156 = pneg %p133
        $region46: #{attention_block_forward.3} parent=35 // pred_check_branch
          %2158 = sbr.rel (%p2156) target = $region48
        $region47: #{attention_block_forward.3} parent=35 // pred_region
          _
        $region48: #{attention_block_forward.3} parent=35 // pred_fallthru
          _
      $region36: #{attention_block_forward.3} parent=5 // pred_fallthru
        _
      %p2159 = scmp.le.s32.totalorder 2, %s16
      // Predicated region
      $region49: #{attention_block_forward.3} parent=5 // pred_check
        %p2160 = pneg %p2159
      $region50: #{attention_block_forward.3} parent=5 // pred_check_branch
        %2162 = sbr.rel (%p2160) target = $region52
      $region51: #{attention_block_forward.3} parent=5 // pred_region
        %s2163 = ssub.s32 %s16, 2
        // Predicated region
        $region53: #{attention_block_forward.3} parent=51 // pred_check
          %p2164 = pneg %p139
        $region54: #{attention_block_forward.3} parent=51 // pred_check_branch
          %2166 = sbr.rel (%p2164) target = $region56
        $region55: #{attention_block_forward.3} parent=51 // pred_region
          %p2167 = scmp.lt.s32.totalorder %s22, 1
          %s2168 = scalar_select %p2167, %s22, 1
          %s2169 = smul.addr %s2168, 4
          %s2170 = scalar_lea.vmem %s4, %s2169
        $region56: #{attention_block_forward.3} parent=51 // pred_fallthru
          _
      $region52: #{attention_block_forward.3} parent=5 // pred_fallthru
        _
    $region6: #{attention_block_forward.3} parent=1 // loop_footer
      %s20 = sadd.s32 1, %s16
    $region7: #{attention_block_forward.3} parent=1 // loop_footer_branch
      %15 = sbr.rel target = $region3
    $region8: #{attention_block_forward.3} parent=1 // loop_exit
      _
    %2171 = vsyncpa [#allocation3], 1
    %s2172 = scalar_lea.sflag [#allocation3], 1
    %2173 = vsyncpa %s2172, 1
    %2174 = vsyncpa [#allocation5], 1
    %s2175 = scalar_lea.sflag [#allocation5], 1
    %2176 = vsyncpa %s2175, 1

// kernel: attention_block_forward.5
$region0: #{attention_block_forward.5}
  #allocation0 [shape = 'u32[]', space=smem, size = 0x4, offset = 0x4, fixed_abs, tag = 'smem constant byte address 0x4 - core index']
  #allocation1 [shape = 'u32[144,128]{1,0:T(1,128)}', space=vmem, size = 0x12000, scoped, tag = 'internal scratch']
  %s0 = inlined_call_operand.vmem [shape: f32[1152,32], index: 0, kind: input, shape index: {}]
  %s1 = inlined_call_operand.vmem [shape: f32[1152,1], index: 1, kind: input, shape index: {}]
  %s2 = inlined_call_operand.vmem [shape: f32[2], index: 2, kind: input, shape index: {}]
  %s3 = inlined_call_operand.hbm [shape: f32[1152,32], index: 3, kind: output, shape index: {}]
  %s4 = sld [smem:[#allocation0]]
  $region49: #{attention_block_forward.5} parent=0
    _
  %s6 = ssub.s32 1, %s4
  %s7 = scalar_select 0, %s6, %s4
  $region1: #{attention_block_forward.5} parent=0
    #allocation2 [shape = 'u8[512]{0}', space=smem, size = 0x200, scoped, tag = 'input window, operand 2, single buffered']
    #allocation3 [shape = 's32[2]{0}', space=sflag, size = 0x8, scoped, tag = 'scoped memory for attention_block_forward.5']
    #allocation4 [shape = 's32[2]{0}', space=sflag, size = 0x8, scoped, tag = 'scoped memory for attention_block_forward.5']
    #allocation5 [shape = 'u8[589824]{0}', space=vmem, size = 0x90000, scoped, tag = 'output window, operand 0']
    %8 = vsyncpa [#allocation4], 0
    %9 = vsyncpa [#allocation3], 0
    %s10 = scalar_lea.sflag [#allocation3], 1
    %11 = vsyncpa %s10, 0
    loop: start=0, step=1, limit=4
    $region2: #{attention_block_forward.5} parent=1 // loop_pre_header
      _
    $region3: #{attention_block_forward.5} parent=1 // loop_header
      %s13 = sphi 0, %s17
      %p14 = scmp.ge.s32.totalorder %s13, 4
      %s23 = sphi 0, %s25
      %s26 = sphi 0, %s23
      %s27 = sphi 0, %s26
      %s43 = sphi 0, %s27
      %s49 = sphi 0, %s51
      %s52 = sphi 0, %s49
      %s53 = sphi 0, %s52
      %s69 = sphi 0, %s53
      %s73 = sphi 0, %s73
      %s75 = sphi 0, %s73
      %s76 = sphi 0, %s75
      %s90 = sphi 0, %s76
      %s96 = sphi 0, %s98
      %s99 = sphi 0, %s96
      %s100 = sphi 0, %s99
      %s116 = sphi 0, %s100
    $region4: #{attention_block_forward.5} parent=1 // loop_header_branch
      %16 = sbr.rel (%p14) target = $region8
    $region5: #{attention_block_forward.5} parent=1 // loop_body
      %s18 = ssub.s32 %s13, 1
      %s19 = ssub.s32 %s13, 2
      %s20 = sadd.s32 %s13, 1
      %s21 = ssub.s32 %s13, %s20
      %p22 = scmp.eq.s32.totalorder %s21, 0
      %s24 = sadd.s32 %s23, 1
      %s25 = scalar_select %p22, %s23, %s24
      %p28 = pneg %p22
      %p29 = scmp.eq.s32.totalorder %s13, 1
      %p30 = por %p28, %p29
      %p31 = scmp.ne.s32.totalorder %s23, %s26
      %p32 = scmp.eq.s32.totalorder %s13, 0
      %p33 = por %p31, %p32
      %p34 = scmp.ne.s32.totalorder %s23, %s26
      %p35 = scmp.eq.s32.totalorder %s18, 1
      %p36 = por %p34, %p35
      %p37 = scmp.ne.s32.totalorder %s26, %s27
      %p38 = scmp.eq.s32.totalorder %s18, 0
      %p39 = por %p37, %p38
      %p40 = scmp.ne.s32.totalorder %s26, %s27
      %p41 = scmp.eq.s32.totalorder %s19, 1
      %p42 = por %p40, %p41
      %p44 = scmp.ne.s32.totalorder %s27, %s43
      %p45 = scmp.eq.s32.totalorder %s19, 0
      %p46 = por %p44, %p45
      %s47 = ssub.s32 %s13, %s20
      %p48 = scmp.eq.s32.totalorder %s47, 0
      %s50 = sadd.s32 %s49, 1
      %s51 = scalar_select %p48, %s49, %s50
      %p54 = pneg %p48
      %p55 = scmp.eq.s32.totalorder %s13, 1
      %p56 = por %p54, %p55
      %p57 = scmp.ne.s32.totalorder %s49, %s52
      %p58 = scmp.eq.s32.totalorder %s13, 0
      %p59 = por %p57, %p58
      %p60 = scmp.ne.s32.totalorder %s49, %s52
      %p61 = scmp.eq.s32.totalorder %s18, 1
      %p62 = por %p60, %p61
      %p63 = scmp.ne.s32.totalorder %s52, %s53
      %p64 = scmp.eq.s32.totalorder %s18, 0
      %p65 = por %p63, %p64
      %p66 = scmp.ne.s32.totalorder %s52, %s53
      %p67 = scmp.eq.s32.totalorder %s19, 1
      %p68 = por %p66, %p67
      %p70 = scmp.ne.s32.totalorder %s53, %s69
      %p71 = scmp.eq.s32.totalorder %s19, 0
      %p72 = por %p70, %p71
      %s74 = sadd.s32 %s73, 1
      %p77 = scmp.eq.s32.totalorder %s13, 1
      %p78 = scmp.ne.s32.totalorder %s73, %s75
      %p79 = scmp.eq.s32.totalorder %s13, 0
      %p80 = por %p78, %p79
      %p81 = scmp.ne.s32.totalorder %s73, %s75
      %p82 = scmp.eq.s32.totalorder %s18, 1
      %p83 = por %p81, %p82
      %p84 = scmp.ne.s32.totalorder %s75, %s76
      %p85 = scmp.eq.s32.totalorder %s18, 0
      %p86 = por %p84, %p85
      %p87 = scmp.ne.s32.totalorder %s75, %s76
      %p88 = scmp.eq.s32.totalorder %s19, 1
      %p89 = por %p87, %p88
      %p91 = scmp.ne.s32.totalorder %s76, %s90
      %p92 = scmp.eq.s32.totalorder %s19, 0
      %p93 = por %p91, %p92
      %s94 = ssub.s32 %s13, %s20
      %p95 = scmp.eq.s32.totalorder %s94, 0
      %s97 = sadd.s32 %s96, 1
      %s98 = scalar_select %p95, %s96, %s97
      %p101 = pneg %p95
      %p102 = scmp.eq.s32.totalorder %s13, 1
      %p103 = por %p101, %p102
      %p104 = scmp.ne.s32.totalorder %s96, %s99
      %p105 = scmp.eq.s32.totalorder %s13, 0
      %p106 = por %p104, %p105
      %p107 = scmp.ne.s32.totalorder %s96, %s99
      %p108 = scmp.eq.s32.totalorder %s18, 1
      %p109 = por %p107, %p108
      %p110 = scmp.ne.s32.totalorder %s99, %s100
      %p111 = scmp.eq.s32.totalorder %s18, 0
      %p112 = por %p110, %p111
      %p113 = scmp.ne.s32.totalorder %s99, %s100
      %p114 = scmp.eq.s32.totalorder %s19, 1
      %p115 = por %p113, %p114
      %p117 = scmp.ne.s32.totalorder %s100, %s116
      %p118 = scmp.eq.s32.totalorder %s19, 0
      %p119 = por %p117, %p118
      %p120 = scmp.le.s32.totalorder 1, %s13
      %p121 = scmp.lt.s32.totalorder %s13, 3
      %p122 = pnand %p120, %p121
      %p123 = pneg %p122
      // Predicated region
      $region9: #{attention_block_forward.5} parent=5 // pred_check
        _
      $region10: #{attention_block_forward.5} parent=5 // pred_check_branch
        %125 = sbr.rel (%p122) target = $region12
      $region11: #{attention_block_forward.5} parent=5 // pred_region
        %s126 = ssub.s32 %s13, 1
        // Predicated region
        $region13: #{attention_block_forward.5} parent=11 // pred_check
          %p127 = pneg %p86
        $region14: #{attention_block_forward.5} parent=11 // pred_check_branch
          %129 = sbr.rel (%p127) target = $region16
        $region15: #{attention_block_forward.5} parent=11 // pred_region
          %s131 = ssub.s32 16, 16
          %132 = vsyncadd [#allocation4], %s131
          %s134 = sshll.u32 %s2, 4
          %s135 = int_to_ptr.vmem [resolvable:$true] %s134
          %137 = dma.vmem_to_smem %s135, 16, [#allocation2], [#allocation4]
        $region16: #{attention_block_forward.5} parent=11 // pred_fallthru
          _
      $region12: #{attention_block_forward.5} parent=5 // pred_fallthru
        _
      %p138 = scmp.lt.s32.totalorder %s13, 2
      // Predicated region
      $region17: #{attention_block_forward.5} parent=5 // pred_check
        %p139 = pneg %p138
      $region18: #{attention_block_forward.5} parent=5 // pred_check_branch
        %141 = sbr.rel (%p139) target = $region20
      $region19: #{attention_block_forward.5} parent=5 // pred_region
        // Predicated region
        $region21: #{attention_block_forward.5} parent=19 // pred_check
          %p142 = pneg %p33
        $region22: #{attention_block_forward.5} parent=19 // pred_check_branch
          %144 = sbr.rel (%p142) target = $region24
        $region23: #{attention_block_forward.5} parent=19 // pred_region
          %s145 = smul.u32 72, %s13
          %p146 = scmp.lt.s32.totalorder %s145, 143
          %s147 = scalar_select %p146, %s145, 143
          %s148 = smul.addr %s147, 8
          %s149 = scalar_lea.vmem %s0, %s148
          %s150 = smul.u32 72, %s13
        $region24: #{attention_block_forward.5} parent=19 // pred_fallthru
          _
        // Predicated region
        $region25: #{attention_block_forward.5} parent=19 // pred_check
          %p151 = pneg %p59
        $region26: #{attention_block_forward.5} parent=19 // pred_check_branch
          %153 = sbr.rel (%p151) target = $region28
        $region27: #{attention_block_forward.5} parent=19 // pred_region
          %s154 = smul.u32 72, %s13
          %p155 = scmp.lt.s32.totalorder %s154, 143
          %s156 = scalar_select %p155, %s154, 143
          %s157 = smul.addr %s156, 8
          %s158 = scalar_lea.vmem %s1, %s157
          %s159 = smul.u32 72, %s13
        $region28: #{attention_block_forward.5} parent=19 // pred_fallthru
          _
      $region20: #{attention_block_forward.5} parent=5 // pred_fallthru
        _
      %p160 = scmp.le.s32.totalorder 1, %s13
      %p161 = scmp.lt.s32.totalorder %s13, 3
      %p162 = pnand %p160, %p161
      %p163 = pneg %p162
      // Predicated region
      $region29: #{attention_block_forward.5} parent=5 // pred_check
        _
      $region30: #{attention_block_forward.5} parent=5 // pred_check_branch
        %165 = sbr.rel (%p162) target = $region32
      $region31: #{attention_block_forward.5} parent=5 // pred_region
        %s166 = ssub.s32 %s13, 1
        // Predicated region
        $region33: #{attention_block_forward.5} parent=31 // pred_check
          %p167 = pneg %p86
        $region34: #{attention_block_forward.5} parent=31 // pred_check_branch
          %169 = sbr.rel (%p167) target = $region36
        $region35: #{attention_block_forward.5} parent=31 // pred_region
          %170 = dma.done [#allocation4], 16
        $region36: #{attention_block_forward.5} parent=31 // pred_fallthru
          _
        %171 = sfence
        %s172 = smul.u32 72, %s18
        %p173 = scmp.lt.s32.totalorder %s172, 143
        %s174 = scalar_select %p173, %s172, 143
        %s175 = smul.addr %s174, 8
        %s176 = scalar_lea.vmem %s0, %s175
        %p177 = pneg %p39
        %p178 = pneg %p36
        %s179 = smul.u32 72, %s18
        %p180 = scmp.lt.s32.totalorder %s179, 143
        %s181 = scalar_select %p180, %s179, 143
        %s182 = smul.addr %s181, 8
        %s183 = scalar_lea.vmem %s1, %s182
        %p184 = pneg %p65
        %p185 = pneg %p62
        %p186 = pneg %p86
        %p187 = pneg %p83
        %p188 = pneg %p112
        %p189 = pneg %p109
        %s190 = sand.u32 %s99, 1
        %s191 = scalar_lea.sflag [#allocation3], %s190
        %s192 = sand.u32 %s99, 1
        %s193 = smul.addr %s192, 576
        %s194 = scalar_lea.vmem [#allocation5], %s193
        %s195 = smul.u32 72, %s18
        %p196 = scmp.lt.s32.totalorder %s195, 143
        %s197 = scalar_select %p196, %s195, 143
        %s198 = smul.addr %s197, 8
        %s199 = scalar_lea.vmem %s0, %s198
        %s200 = smul.u32 72, %s18
        %s201 = smul.u32 72, %s18
        %p202 = scmp.lt.s32.totalorder %s201, 143
        %s203 = scalar_select %p202, %s201, 143
        %s204 = smul.addr %s203, 8
        %s205 = scalar_lea.vmem %s1, %s204
        %s206 = smul.u32 72, %s18
        %s207 = smul.u32 72, %s18
        %v208 = vld [vmem:[%s205] sm:$0xff]
        %v209 = vld [vmem:[%s205 + $0x8] sm:$0xff]
        %v210 = vld [vmem:[%s205 + $0x10] sm:$0xff]
        %v211 = vld [vmem:[%s205 + $0x18] sm:$0xff]
        %v212 = vld [vmem:[%s205 + $0x20] sm:$0xff]
        %v213 = vld [vmem:[%s205 + $0x28] sm:$0xff]
        %v214 = vld [vmem:[%s205 + $0x30] sm:$0xff]
        %v215 = vld [vmem:[%s205 + $0x38] sm:$0xff]
        %v216 = vld [vmem:[%s205 + $0x40] sm:$0xff]
        %v217 = vld [vmem:[%s205 + $0x48] sm:$0xff]
        %v218 = vld [vmem:[%s205 + $0x50] sm:$0xff]
        %v219 = vld [vmem:[%s205 + $0x58] sm:$0xff]
        %v220 = vld [vmem:[%s205 + $0x60] sm:$0xff]
        %v221 = vld [vmem:[%s205 + $0x68] sm:$0xff]
        %v222 = vld [vmem:[%s205 + $0x70] sm:$0xff]
        %v223 = vld [vmem:[%s205 + $0x78] sm:$0xff]
        %v224 = vld [vmem:[%s205 + $0x80] sm:$0xff]
        %v225 = vld [vmem:[%s205 + $0x88] sm:$0xff]
        %v226 = vld [vmem:[%s205 + $0x90] sm:$0xff]
        %v227 = vld [vmem:[%s205 + $0x98] sm:$0xff]
        %v228 = vld [vmem:[%s205 + $0xa0] sm:$0xff]
        %v229 = vld [vmem:[%s205 + $0xa8] sm:$0xff]
        %v230 = vld [vmem:[%s205 + $0xb0] sm:$0xff]
        %v231 = vld [vmem:[%s205 + $0xb8] sm:$0xff]
        %v232 = vld [vmem:[%s205 + $0xc0] sm:$0xff]
        %v233 = vld [vmem:[%s205 + $0xc8] sm:$0xff]
        %v234 = vld [vmem:[%s205 + $0xd0] sm:$0xff]
        %v235 = vld [vmem:[%s205 + $0xd8] sm:$0xff]
        %v236 = vld [vmem:[%s205 + $0xe0] sm:$0xff]
        %v237 = vld [vmem:[%s205 + $0xe8] sm:$0xff]
        %v238 = vld [vmem:[%s205 + $0xf0] sm:$0xff]
        %v239 = vld [vmem:[%s205 + $0xf8] sm:$0xff]
        %v240 = vld [vmem:[%s205 + $0x100] sm:$0xff]
        %v241 = vld [vmem:[%s205 + $0x108] sm:$0xff]
        %v242 = vld [vmem:[%s205 + $0x110] sm:$0xff]
        %v243 = vld [vmem:[%s205 + $0x118] sm:$0xff]
        %v244 = vld [vmem:[%s205 + $0x120] sm:$0xff]
        %v245 = vld [vmem:[%s205 + $0x128] sm:$0xff]
        %v246 = vld [vmem:[%s205 + $0x130] sm:$0xff]
        %v247 = vld [vmem:[%s205 + $0x138] sm:$0xff]
        %v248 = vld [vmem:[%s205 + $0x140] sm:$0xff]
        %v249 = vld [vmem:[%s205 + $0x148] sm:$0xff]
        %v250 = vld [vmem:[%s205 + $0x150] sm:$0xff]
        %v251 = vld [vmem:[%s205 + $0x158] sm:$0xff]
        %v252 = vld [vmem:[%s205 + $0x160] sm:$0xff]
        %v253 = vld [vmem:[%s205 + $0x168] sm:$0xff]
        %v254 = vld [vmem:[%s205 + $0x170] sm:$0xff]
        %v255 = vld [vmem:[%s205 + $0x178] sm:$0xff]
        %v256 = vld [vmem:[%s205 + $0x180] sm:$0xff]
        %v257 = vld [vmem:[%s205 + $0x188] sm:$0xff]
        %v258 = vld [vmem:[%s205 + $0x190] sm:$0xff]
        %v259 = vld [vmem:[%s205 + $0x198] sm:$0xff]
        %v260 = vld [vmem:[%s205 + $0x1a0] sm:$0xff]
        %v261 = vld [vmem:[%s205 + $0x1a8] sm:$0xff]
        %v262 = vld [vmem:[%s205 + $0x1b0] sm:$0xff]
        %v263 = vld [vmem:[%s205 + $0x1b8] sm:$0xff]
        %v264 = vld [vmem:[%s205 + $0x1c0] sm:$0xff]
        %v265 = vld [vmem:[%s205 + $0x1c8] sm:$0xff]
        %v266 = vld [vmem:[%s205 + $0x1d0] sm:$0xff]
        %v267 = vld [vmem:[%s205 + $0x1d8] sm:$0xff]
        %v268 = vld [vmem:[%s205 + $0x1e0] sm:$0xff]
        %v269 = vld [vmem:[%s205 + $0x1e8] sm:$0xff]
        %v270 = vld [vmem:[%s205 + $0x1f0] sm:$0xff]
        %v271 = vld [vmem:[%s205 + $0x1f8] sm:$0xff]
        %v272 = vld [vmem:[%s205 + $0x200] sm:$0xff]
        %v273 = vld [vmem:[%s205 + $0x208] sm:$0xff]
        %v274 = vld [vmem:[%s205 + $0x210] sm:$0xff]
        %v275 = vld [vmem:[%s205 + $0x218] sm:$0xff]
        %v276 = vld [vmem:[%s205 + $0x220] sm:$0xff]
        %v277 = vld [vmem:[%s205 + $0x228] sm:$0xff]
        %v278 = vld [vmem:[%s205 + $0x230] sm:$0xff]
        %v279 = vld [vmem:[%s205 + $0x238] sm:$0xff]
        %s280 = sld [smem:[#allocation2]]
        %v281 = vstv %s280
        %v282 = vmul.f32 %v208, %v281
        %v283 = vmul.f32 %v209, %v281
        %v284 = vmul.f32 %v210, %v281
        %v285 = vmul.f32 %v211, %v281
        %v286 = vmul.f32 %v212, %v281
        %v287 = vmul.f32 %v213, %v281
        %v288 = vmul.f32 %v214, %v281
        %v289 = vmul.f32 %v215, %v281
        %v290 = vmul.f32 %v216, %v281
        %v291 = vmul.f32 %v217, %v281
        %v292 = vmul.f32 %v218, %v281
        %v293 = vmul.f32 %v219, %v281
        %v294 = vmul.f32 %v220, %v281
        %v295 = vmul.f32 %v221, %v281
        %v296 = vmul.f32 %v222, %v281
        %v297 = vmul.f32 %v223, %v281
        %v298 = vmul.f32 %v224, %v281
        %v299 = vmul.f32 %v225, %v281
        %v300 = vmul.f32 %v226, %v281
        %v301 = vmul.f32 %v227, %v281
        %v302 = vmul.f32 %v228, %v281
        %v303 = vmul.f32 %v229, %v281
        %v304 = vmul.f32 %v230, %v281
        %v305 = vmul.f32 %v231, %v281
        %v306 = vmul.f32 %v232, %v281
        %v307 = vmul.f32 %v233, %v281
        %v308 = vmul.f32 %v234, %v281
        %v309 = vmul.f32 %v235, %v281
        %v310 = vmul.f32 %v236, %v281
        %v311 = vmul.f32 %v237, %v281
        %v312 = vmul.f32 %v238, %v281
        %v313 = vmul.f32 %v239, %v281
        %v314 = vmul.f32 %v240, %v281
        %v315 = vmul.f32 %v241, %v281
        %v316 = vmul.f32 %v242, %v281
        %v317 = vmul.f32 %v243, %v281
        %v318 = vmul.f32 %v244, %v281
        %v319 = vmul.f32 %v245, %v281
        %v320 = vmul.f32 %v246, %v281
        %v321 = vmul.f32 %v247, %v281
        %v322 = vmul.f32 %v248, %v281
        %v323 = vmul.f32 %v249, %v281
        %v324 = vmul.f32 %v250, %v281
        %v325 = vmul.f32 %v251, %v281
        %v326 = vmul.f32 %v252, %v281
        %v327 = vmul.f32 %v253, %v281
        %v328 = vmul.f32 %v254, %v281
        %v329 = vmul.f32 %v255, %v281
        %v330 = vmul.f32 %v256, %v281
        %v331 = vmul.f32 %v257, %v281
        %v332 = vmul.f32 %v258, %v281
        %v333 = vmul.f32 %v259, %v281
        %v334 = vmul.f32 %v260, %v281
        %v335 = vmul.f32 %v261, %v281
        %v336 = vmul.f32 %v262, %v281
        %v337 = vmul.f32 %v263, %v281
        %v338 = vmul.f32 %v264, %v281
        %v339 = vmul.f32 %v265, %v281
        %v340 = vmul.f32 %v266, %v281
        %v341 = vmul.f32 %v267, %v281
        %v342 = vmul.f32 %v268, %v281
        %v343 = vmul.f32 %v269, %v281
        %v344 = vmul.f32 %v270, %v281
        %v345 = vmul.f32 %v271, %v281
        %v346 = vmul.f32 %v272, %v281
        %v347 = vmul.f32 %v273, %v281
        %v348 = vmul.f32 %v274, %v281
        %v349 = vmul.f32 %v275, %v281
        %v350 = vmul.f32 %v276, %v281
        %v351 = vmul.f32 %v277, %v281
        %v352 = vmul.f32 %v278, %v281
        %v353 = vmul.f32 %v279, %v281
        %s354 = sld [smem:[#allocation2 + $0x1]]
        %v355 = vstv %s354
        %v356 = vadd.f32 %v282, %v355
        %v357 = vadd.f32 %v283, %v355
        %v358 = vadd.f32 %v284, %v355
        %v359 = vadd.f32 %v285, %v355
        %v360 = vadd.f32 %v286, %v355
        %v361 = vadd.f32 %v287, %v355
        %v362 = vadd.f32 %v288, %v355
        %v363 = vadd.f32 %v289, %v355
        %v364 = vadd.f32 %v290, %v355
        %v365 = vadd.f32 %v291, %v355
        %v366 = vadd.f32 %v292, %v355
        %v367 = vadd.f32 %v293, %v355
        %v368 = vadd.f32 %v294, %v355
        %v369 = vadd.f32 %v295, %v355
        %v370 = vadd.f32 %v296, %v355
        %v371 = vadd.f32 %v297, %v355
        %v372 = vadd.f32 %v298, %v355
        %v373 = vadd.f32 %v299, %v355
        %v374 = vadd.f32 %v300, %v355
        %v375 = vadd.f32 %v301, %v355
        %v376 = vadd.f32 %v302, %v355
        %v377 = vadd.f32 %v303, %v355
        %v378 = vadd.f32 %v304, %v355
        %v379 = vadd.f32 %v305, %v355
        %v380 = vadd.f32 %v306, %v355
        %v381 = vadd.f32 %v307, %v355
        %v382 = vadd.f32 %v308, %v355
        %v383 = vadd.f32 %v309, %v355
        %v384 = vadd.f32 %v310, %v355
        %v385 = vadd.f32 %v311, %v355
        %v386 = vadd.f32 %v312, %v355
        %v387 = vadd.f32 %v313, %v355
        %v388 = vadd.f32 %v314, %v355
        %v389 = vadd.f32 %v315, %v355
        %v390 = vadd.f32 %v316, %v355
        %v391 = vadd.f32 %v317, %v355
        %v392 = vadd.f32 %v318, %v355
        %v393 = vadd.f32 %v319, %v355
        %v394 = vadd.f32 %v320, %v355
        %v395 = vadd.f32 %v321, %v355
        %v396 = vadd.f32 %v322, %v355
        %v397 = vadd.f32 %v323, %v355
        %v398 = vadd.f32 %v324, %v355
        %v399 = vadd.f32 %v325, %v355
        %v400 = vadd.f32 %v326, %v355
        %v401 = vadd.f32 %v327, %v355
        %v402 = vadd.f32 %v328, %v355
        %v403 = vadd.f32 %v329, %v355
        %v404 = vadd.f32 %v330, %v355
        %v405 = vadd.f32 %v331, %v355
        %v406 = vadd.f32 %v332, %v355
        %v407 = vadd.f32 %v333, %v355
        %v408 = vadd.f32 %v334, %v355
        %v409 = vadd.f32 %v335, %v355
        %v410 = vadd.f32 %v336, %v355
        %v411 = vadd.f32 %v337, %v355
        %v412 = vadd.f32 %v338, %v355
        %v413 = vadd.f32 %v339, %v355
        %v414 = vadd.f32 %v340, %v355
        %v415 = vadd.f32 %v341, %v355
        %v416 = vadd.f32 %v342, %v355
        %v417 = vadd.f32 %v343, %v355
        %v418 = vadd.f32 %v344, %v355
        %v419 = vadd.f32 %v345, %v355
        %v420 = vadd.f32 %v346, %v355
        %v421 = vadd.f32 %v347, %v355
        %v422 = vadd.f32 %v348, %v355
        %v423 = vadd.f32 %v349, %v355
        %v424 = vadd.f32 %v350, %v355
        %v425 = vadd.f32 %v351, %v355
        %v426 = vadd.f32 %v352, %v355
        %v427 = vadd.f32 %v353, %v355
        %v428 = vxor.u32 %v356, 2147483648
        %v429 = vxor.u32 %v357, 2147483648
        %v430 = vxor.u32 %v358, 2147483648
        %v431 = vxor.u32 %v359, 2147483648
        %v432 = vxor.u32 %v360, 2147483648
        %v433 = vxor.u32 %v361, 2147483648
        %v434 = vxor.u32 %v362, 2147483648
        %v435 = vxor.u32 %v363, 2147483648
        %v436 = vxor.u32 %v364, 2147483648
        %v437 = vxor.u32 %v365, 2147483648
        %v438 = vxor.u32 %v366, 2147483648
        %v439 = vxor.u32 %v367, 2147483648
        %v440 = vxor.u32 %v368, 2147483648
        %v441 = vxor.u32 %v369, 2147483648
        %v442 = vxor.u32 %v370, 2147483648
        %v443 = vxor.u32 %v371, 2147483648
        %v444 = vxor.u32 %v372, 2147483648
        %v445 = vxor.u32 %v373, 2147483648
        %v446 = vxor.u32 %v374, 2147483648
        %v447 = vxor.u32 %v375, 2147483648
        %v448 = vxor.u32 %v376, 2147483648
        %v449 = vxor.u32 %v377, 2147483648
        %v450 = vxor.u32 %v378, 2147483648
        %v451 = vxor.u32 %v379, 2147483648
        %v452 = vxor.u32 %v380, 2147483648
        %v453 = vxor.u32 %v381, 2147483648
        %v454 = vxor.u32 %v382, 2147483648
        %v455 = vxor.u32 %v383, 2147483648
        %v456 = vxor.u32 %v384, 2147483648
        %v457 = vxor.u32 %v385, 2147483648
        %v458 = vxor.u32 %v386, 2147483648
        %v459 = vxor.u32 %v387, 2147483648
        %v460 = vxor.u32 %v388, 2147483648
        %v461 = vxor.u32 %v389, 2147483648
        %v462 = vxor.u32 %v390, 2147483648
        %v463 = vxor.u32 %v391, 2147483648
        %v464 = vxor.u32 %v392, 2147483648
        %v465 = vxor.u32 %v393, 2147483648
        %v466 = vxor.u32 %v394, 2147483648
        %v467 = vxor.u32 %v395, 2147483648
        %v468 = vxor.u32 %v396, 2147483648
        %v469 = vxor.u32 %v397, 2147483648
        %v470 = vxor.u32 %v398, 2147483648
        %v471 = vxor.u32 %v399, 2147483648
        %v472 = vxor.u32 %v400, 2147483648
        %v473 = vxor.u32 %v401, 2147483648
        %v474 = vxor.u32 %v402, 2147483648
        %v475 = vxor.u32 %v403, 2147483648
        %v476 = vxor.u32 %v404, 2147483648
        %v477 = vxor.u32 %v405, 2147483648
        %v478 = vxor.u32 %v406, 2147483648
        %v479 = vxor.u32 %v407, 2147483648
        %v480 = vxor.u32 %v408, 2147483648
        %v481 = vxor.u32 %v409, 2147483648
        %v482 = vxor.u32 %v410, 2147483648
        %v483 = vxor.u32 %v411, 2147483648
        %v484 = vxor.u32 %v412, 2147483648
        %v485 = vxor.u32 %v413, 2147483648
        %v486 = vxor.u32 %v414, 2147483648
        %v487 = vxor.u32 %v415, 2147483648
        %v488 = vxor.u32 %v416, 2147483648
        %v489 = vxor.u32 %v417, 2147483648
        %v490 = vxor.u32 %v418, 2147483648
        %v491 = vxor.u32 %v419, 2147483648
        %v492 = vxor.u32 %v420, 2147483648
        %v493 = vxor.u32 %v421, 2147483648
        %v494 = vxor.u32 %v422, 2147483648
        %v495 = vxor.u32 %v423, 2147483648
        %v496 = vxor.u32 %v424, 2147483648
        %v497 = vxor.u32 %v425, 2147483648
        %v498 = vxor.u32 %v426, 2147483648
        %v499 = vxor.u32 %v427, 2147483648
        %v500 = vmul.f32 %v428, 1.442695
        %v501 = vpow.pop %v500
        %v502 = vmul.f32 %v429, 1.442695
        %v503 = vpow.pop %v502
        %v504 = vmul.f32 %v430, 1.442695
        %v505 = vpow.pop %v504
        %v506 = vmul.f32 %v431, 1.442695
        %v507 = vpow.pop %v506
        %v508 = vmul.f32 %v432, 1.442695
        %v509 = vpow.pop %v508
        %v510 = vmul.f32 %v433, 1.442695
        %v511 = vpow.pop %v510
        %v512 = vmul.f32 %v434, 1.442695
        %v513 = vpow.pop %v512
        %v514 = vmul.f32 %v435, 1.442695
        %v515 = vpow.pop %v514
        %v516 = vmul.f32 %v436, 1.442695
        %v517 = vpow.pop %v516
        %v518 = vmul.f32 %v437, 1.442695
        %v519 = vpow.pop %v518
        %v520 = vmul.f32 %v438, 1.442695
        %v521 = vpow.pop %v520
        %v522 = vmul.f32 %v439, 1.442695
        %v523 = vpow.pop %v522
        %v524 = vmul.f32 %v440, 1.442695
        %v525 = vpow.pop %v524
        %v526 = vmul.f32 %v441, 1.442695
        %v527 = vpow.pop %v526
        %v528 = vmul.f32 %v442, 1.442695
        %v529 = vpow.pop %v528
        %v530 = vmul.f32 %v443, 1.442695
        %v531 = vpow.pop %v530
        %v532 = vmul.f32 %v444, 1.442695
        %v533 = vpow.pop %v532
        %v534 = vmul.f32 %v445, 1.442695
        %v535 = vpow.pop %v534
        %v536 = vmul.f32 %v446, 1.442695
        %v537 = vpow.pop %v536
        %v538 = vmul.f32 %v447, 1.442695
        %v539 = vpow.pop %v538
        %v540 = vmul.f32 %v448, 1.442695
        %v541 = vpow.pop %v540
        %v542 = vmul.f32 %v449, 1.442695
        %v543 = vpow.pop %v542
        %v544 = vmul.f32 %v450, 1.442695
        %v545 = vpow.pop %v544
        %v546 = vmul.f32 %v451, 1.442695
        %v547 = vpow.pop %v546
        %v548 = vmul.f32 %v452, 1.442695
        %v549 = vpow.pop %v548
        %v550 = vmul.f32 %v453, 1.442695
        %v551 = vpow.pop %v550
        %v552 = vmul.f32 %v454, 1.442695
        %v553 = vpow.pop %v552
        %v554 = vmul.f32 %v455, 1.442695
        %v555 = vpow.pop %v554
        %v556 = vmul.f32 %v456, 1.442695
        %v557 = vpow.pop %v556
        %v558 = vmul.f32 %v457, 1.442695
        %v559 = vpow.pop %v558
        %v560 = vmul.f32 %v458, 1.442695
        %v561 = vpow.pop %v560
        %v562 = vmul.f32 %v459, 1.442695
        %v563 = vpow.pop %v562
        %v564 = vmul.f32 %v460, 1.442695
        %v565 = vpow.pop %v564
        %v566 = vmul.f32 %v461, 1.442695
        %v567 = vpow.pop %v566
        %v568 = vmul.f32 %v462, 1.442695
        %v569 = vpow.pop %v568
        %v570 = vmul.f32 %v463, 1.442695
        %v571 = vpow.pop %v570
        %v572 = vmul.f32 %v464, 1.442695
        %v573 = vpow.pop %v572
        %v574 = vmul.f32 %v465, 1.442695
        %v575 = vpow.pop %v574
        %v576 = vmul.f32 %v466, 1.442695
        %v577 = vpow.pop %v576
        %v578 = vmul.f32 %v467, 1.442695
        %v579 = vpow.pop %v578
        %v580 = vmul.f32 %v468, 1.442695
        %v581 = vpow.pop %v580
        %v582 = vmul.f32 %v469, 1.442695
        %v583 = vpow.pop %v582
        %v584 = vmul.f32 %v470, 1.442695
        %v585 = vpow.pop %v584
        %v586 = vmul.f32 %v471, 1.442695
        %v587 = vpow.pop %v586
        %v588 = vmul.f32 %v472, 1.442695
        %v589 = vpow.pop %v588
        %v590 = vmul.f32 %v473, 1.442695
        %v591 = vpow.pop %v590
        %v592 = vmul.f32 %v474, 1.442695
        %v593 = vpow.pop %v592
        %v594 = vmul.f32 %v475, 1.442695
        %v595 = vpow.pop %v594
        %v596 = vmul.f32 %v476, 1.442695
        %v597 = vpow.pop %v596
        %v598 = vmul.f32 %v477, 1.442695
        %v599 = vpow.pop %v598
        %v600 = vmul.f32 %v478, 1.442695
        %v601 = vpow.pop %v600
        %v602 = vmul.f32 %v479, 1.442695
        %v603 = vpow.pop %v602
        %v604 = vmul.f32 %v480, 1.442695
        %v605 = vpow.pop %v604
        %v606 = vmul.f32 %v481, 1.442695
        %v607 = vpow.pop %v606
        %v608 = vmul.f32 %v482, 1.442695
        %v609 = vpow.pop %v608
        %v610 = vmul.f32 %v483, 1.442695
        %v611 = vpow.pop %v610
        %v612 = vmul.f32 %v484, 1.442695
        %v613 = vpow.pop %v612
        %v614 = vmul.f32 %v485, 1.442695
        %v615 = vpow.pop %v614
        %v616 = vmul.f32 %v486, 1.442695
        %v617 = vpow.pop %v616
        %v618 = vmul.f32 %v487, 1.442695
        %v619 = vpow.pop %v618
        %v620 = vmul.f32 %v488, 1.442695
        %v621 = vpow.pop %v620
        %v622 = vmul.f32 %v489, 1.442695
        %v623 = vpow.pop %v622
        %v624 = vmul.f32 %v490, 1.442695
        %v625 = vpow.pop %v624
        %v626 = vmul.f32 %v491, 1.442695
        %v627 = vpow.pop %v626
        %v628 = vmul.f32 %v492, 1.442695
        %v629 = vpow.pop %v628
        %v630 = vmul.f32 %v493, 1.442695
        %v631 = vpow.pop %v630
        %v632 = vmul.f32 %v494, 1.442695
        %v633 = vpow.pop %v632
        %v634 = vmul.f32 %v495, 1.442695
        %v635 = vpow.pop %v634
        %v636 = vmul.f32 %v496, 1.442695
        %v637 = vpow.pop %v636
        %v638 = vmul.f32 %v497, 1.442695
        %v639 = vpow.pop %v638
        %v640 = vmul.f32 %v498, 1.442695
        %v641 = vpow.pop %v640
        %v642 = vmul.f32 %v499, 1.442695
        %v643 = vpow.pop %v642
        %v644 = vadd.f32 %v501, 1.0
        %v645 = vadd.f32 %v503, 1.0
        %v646 = vadd.f32 %v505, 1.0
        %v647 = vadd.f32 %v507, 1.0
        %v648 = vadd.f32 %v509, 1.0
        %v649 = vadd.f32 %v511, 1.0
        %v650 = vadd.f32 %v513, 1.0
        %v651 = vadd.f32 %v515, 1.0
        %v652 = vadd.f32 %v517, 1.0
        %v653 = vadd.f32 %v519, 1.0
        %v654 = vadd.f32 %v521, 1.0
        %v655 = vadd.f32 %v523, 1.0
        %v656 = vadd.f32 %v525, 1.0
        %v657 = vadd.f32 %v527, 1.0
        %v658 = vadd.f32 %v529, 1.0
        %v659 = vadd.f32 %v531, 1.0
        %v660 = vadd.f32 %v533, 1.0
        %v661 = vadd.f32 %v535, 1.0
        %v662 = vadd.f32 %v537, 1.0
        %v663 = vadd.f32 %v539, 1.0
        %v664 = vadd.f32 %v541, 1.0
        %v665 = vadd.f32 %v543, 1.0
        %v666 = vadd.f32 %v545, 1.0
        %v667 = vadd.f32 %v547, 1.0
        %v668 = vadd.f32 %v549, 1.0
        %v669 = vadd.f32 %v551, 1.0
        %v670 = vadd.f32 %v553, 1.0
        %v671 = vadd.f32 %v555, 1.0
        %v672 = vadd.f32 %v557, 1.0
        %v673 = vadd.f32 %v559, 1.0
        %v674 = vadd.f32 %v561, 1.0
        %v675 = vadd.f32 %v563, 1.0
        %v676 = vadd.f32 %v565, 1.0
        %v677 = vadd.f32 %v567, 1.0
        %v678 = vadd.f32 %v569, 1.0
        %v679 = vadd.f32 %v571, 1.0
        %v680 = vadd.f32 %v573, 1.0
        %v681 = vadd.f32 %v575, 1.0
        %v682 = vadd.f32 %v577, 1.0
        %v683 = vadd.f32 %v579, 1.0
        %v684 = vadd.f32 %v581, 1.0
        %v685 = vadd.f32 %v583, 1.0
        %v686 = vadd.f32 %v585, 1.0
        %v687 = vadd.f32 %v587, 1.0
        %v688 = vadd.f32 %v589, 1.0
        %v689 = vadd.f32 %v591, 1.0
        %v690 = vadd.f32 %v593, 1.0
        %v691 = vadd.f32 %v595, 1.0
        %v692 = vadd.f32 %v597, 1.0
        %v693 = vadd.f32 %v599, 1.0
        %v694 = vadd.f32 %v601, 1.0
        %v695 = vadd.f32 %v603, 1.0
        %v696 = vadd.f32 %v605, 1.0
        %v697 = vadd.f32 %v607, 1.0
        %v698 = vadd.f32 %v609, 1.0
        %v699 = vadd.f32 %v611, 1.0
        %v700 = vadd.f32 %v613, 1.0
        %v701 = vadd.f32 %v615, 1.0
        %v702 = vadd.f32 %v617, 1.0
        %v703 = vadd.f32 %v619, 1.0
        %v704 = vadd.f32 %v621, 1.0
        %v705 = vadd.f32 %v623, 1.0
        %v706 = vadd.f32 %v625, 1.0
        %v707 = vadd.f32 %v627, 1.0
        %v708 = vadd.f32 %v629, 1.0
        %v709 = vadd.f32 %v631, 1.0
        %v710 = vadd.f32 %v633, 1.0
        %v711 = vadd.f32 %v635, 1.0
        %v712 = vadd.f32 %v637, 1.0
        %v713 = vadd.f32 %v639, 1.0
        %v714 = vadd.f32 %v641, 1.0
        %v715 = vadd.f32 %v643, 1.0
        %v716 = vrcp.pop %v644
        %v717 = vmul.f32 1.0, %v716
        %v718 = vrcp.pop %v645
        %v719 = vmul.f32 1.0, %v718
        %v720 = vrcp.pop %v646
        %v721 = vmul.f32 1.0, %v720
        %v722 = vrcp.pop %v647
        %v723 = vmul.f32 1.0, %v722
        %v724 = vrcp.pop %v648
        %v725 = vmul.f32 1.0, %v724
        %v726 = vrcp.pop %v649
        %v727 = vmul.f32 1.0, %v726
        %v728 = vrcp.pop %v650
        %v729 = vmul.f32 1.0, %v728
        %v730 = vrcp.pop %v651
        %v731 = vmul.f32 1.0, %v730
        %v732 = vrcp.pop %v652
        %v733 = vmul.f32 1.0, %v732
        %v734 = vrcp.pop %v653
        %v735 = vmul.f32 1.0, %v734
        %v736 = vrcp.pop %v654
        %v737 = vmul.f32 1.0, %v736
        %v738 = vrcp.pop %v655
        %v739 = vmul.f32 1.0, %v738
        %v740 = vrcp.pop %v656
        %v741 = vmul.f32 1.0, %v740
        %v742 = vrcp.pop %v657
        %v743 = vmul.f32 1.0, %v742
        %v744 = vrcp.pop %v658
        %v745 = vmul.f32 1.0, %v744
        %v746 = vrcp.pop %v659
        %v747 = vmul.f32 1.0, %v746
        %v748 = vrcp.pop %v660
        %v749 = vmul.f32 1.0, %v748
        %v750 = vrcp.pop %v661
        %v751 = vmul.f32 1.0, %v750
        %v752 = vrcp.pop %v662
        %v753 = vmul.f32 1.0, %v752
        %v754 = vrcp.pop %v663
        %v755 = vmul.f32 1.0, %v754
        %v756 = vrcp.pop %v664
        %v757 = vmul.f32 1.0, %v756
        %v758 = vrcp.pop %v665
        %v759 = vmul.f32 1.0, %v758
        %v760 = vrcp.pop %v666
        %v761 = vmul.f32 1.0, %v760
        %v762 = vrcp.pop %v667
        %v763 = vmul.f32 1.0, %v762
        %v764 = vrcp.pop %v668
        %v765 = vmul.f32 1.0, %v764
        %v766 = vrcp.pop %v669
        %v767 = vmul.f32 1.0, %v766
        %v768 = vrcp.pop %v670
        %v769 = vmul.f32 1.0, %v768
        %v770 = vrcp.pop %v671
        %v771 = vmul.f32 1.0, %v770
        %v772 = vrcp.pop %v672
        %v773 = vmul.f32 1.0, %v772
        %v774 = vrcp.pop %v673
        %v775 = vmul.f32 1.0, %v774
        %v776 = vrcp.pop %v674
        %v777 = vmul.f32 1.0, %v776
        %v778 = vrcp.pop %v675
        %v779 = vmul.f32 1.0, %v778
        %v780 = vrcp.pop %v676
        %v781 = vmul.f32 1.0, %v780
        %v782 = vrcp.pop %v677
        %v783 = vmul.f32 1.0, %v782
        %v784 = vrcp.pop %v678
        %v785 = vmul.f32 1.0, %v784
        %v786 = vrcp.pop %v679
        %v787 = vmul.f32 1.0, %v786
        %v788 = vrcp.pop %v680
        %v789 = vmul.f32 1.0, %v788
        %v790 = vrcp.pop %v681
        %v791 = vmul.f32 1.0, %v790
        %v792 = vrcp.pop %v682
        %v793 = vmul.f32 1.0, %v792
        %v794 = vrcp.pop %v683
        %v795 = vmul.f32 1.0, %v794
        %v796 = vrcp.pop %v684
        %v797 = vmul.f32 1.0, %v796
        %v798 = vrcp.pop %v685
        %v799 = vmul.f32 1.0, %v798
        %v800 = vrcp.pop %v686
        %v801 = vmul.f32 1.0, %v800
        %v802 = vrcp.pop %v687
        %v803 = vmul.f32 1.0, %v802
        %v804 = vrcp.pop %v688
        %v805 = vmul.f32 1.0, %v804
        %v806 = vrcp.pop %v689
        %v807 = vmul.f32 1.0, %v806
        %v808 = vrcp.pop %v690
        %v809 = vmul.f32 1.0, %v808
        %v810 = vrcp.pop %v691
        %v811 = vmul.f32 1.0, %v810
        %v812 = vrcp.pop %v692
        %v813 = vmul.f32 1.0, %v812
        %v814 = vrcp.pop %v693
        %v815 = vmul.f32 1.0, %v814
        %v816 = vrcp.pop %v694
        %v817 = vmul.f32 1.0, %v816
        %v818 = vrcp.pop %v695
        %v819 = vmul.f32 1.0, %v818
        %v820 = vrcp.pop %v696
        %v821 = vmul.f32 1.0, %v820
        %v822 = vrcp.pop %v697
        %v823 = vmul.f32 1.0, %v822
        %v824 = vrcp.pop %v698
        %v825 = vmul.f32 1.0, %v824
        %v826 = vrcp.pop %v699
        %v827 = vmul.f32 1.0, %v826
        %v828 = vrcp.pop %v700
        %v829 = vmul.f32 1.0, %v828
        %v830 = vrcp.pop %v701
        %v831 = vmul.f32 1.0, %v830
        %v832 = vrcp.pop %v702
        %v833 = vmul.f32 1.0, %v832
        %v834 = vrcp.pop %v703
        %v835 = vmul.f32 1.0, %v834
        %v836 = vrcp.pop %v704
        %v837 = vmul.f32 1.0, %v836
        %v838 = vrcp.pop %v705
        %v839 = vmul.f32 1.0, %v838
        %v840 = vrcp.pop %v706
        %v841 = vmul.f32 1.0, %v840
        %v842 = vrcp.pop %v707
        %v843 = vmul.f32 1.0, %v842
        %v844 = vrcp.pop %v708
        %v845 = vmul.f32 1.0, %v844
        %v846 = vrcp.pop %v709
        %v847 = vmul.f32 1.0, %v846
        %v848 = vrcp.pop %v710
        %v849 = vmul.f32 1.0, %v848
        %v850 = vrcp.pop %v711
        %v851 = vmul.f32 1.0, %v850
        %v852 = vrcp.pop %v712
        %v853 = vmul.f32 1.0, %v852
        %v854 = vrcp.pop %v713
        %v855 = vmul.f32 1.0, %v854
        %v856 = vrcp.pop %v714
        %v857 = vmul.f32 1.0, %v856
        %v858 = vrcp.pop %v715
        %v859 = vmul.f32 1.0, %v858
        %v860 = vld [vmem:[%s199] sm:$0xff]
        %v861 = vld [vmem:[%s199 + $0x8] sm:$0xff]
        %v862 = vld [vmem:[%s199 + $0x10] sm:$0xff]
        %v863 = vld [vmem:[%s199 + $0x18] sm:$0xff]
        %v864 = vld [vmem:[%s199 + $0x20] sm:$0xff]
        %v865 = vld [vmem:[%s199 + $0x28] sm:$0xff]
        %v866 = vld [vmem:[%s199 + $0x30] sm:$0xff]
        %v867 = vld [vmem:[%s199 + $0x38] sm:$0xff]
        %v868 = vld [vmem:[%s199 + $0x40] sm:$0xff]
        %v869 = vld [vmem:[%s199 + $0x48] sm:$0xff]
        %v870 = vld [vmem:[%s199 + $0x50] sm:$0xff]
        %v871 = vld [vmem:[%s199 + $0x58] sm:$0xff]
        %v872 = vld [vmem:[%s199 + $0x60] sm:$0xff]
        %v873 = vld [vmem:[%s199 + $0x68] sm:$0xff]
        %v874 = vld [vmem:[%s199 + $0x70] sm:$0xff]
        %v875 = vld [vmem:[%s199 + $0x78] sm:$0xff]
        %v876 = vld [vmem:[%s199 + $0x80] sm:$0xff]
        %v877 = vld [vmem:[%s199 + $0x88] sm:$0xff]
        %v878 = vld [vmem:[%s199 + $0x90] sm:$0xff]
        %v879 = vld [vmem:[%s199 + $0x98] sm:$0xff]
        %v880 = vld [vmem:[%s199 + $0xa0] sm:$0xff]
        %v881 = vld [vmem:[%s199 + $0xa8] sm:$0xff]
        %v882 = vld [vmem:[%s199 + $0xb0] sm:$0xff]
        %v883 = vld [vmem:[%s199 + $0xb8] sm:$0xff]
        %v884 = vld [vmem:[%s199 + $0xc0] sm:$0xff]
        %v885 = vld [vmem:[%s199 + $0xc8] sm:$0xff]
        %v886 = vld [vmem:[%s199 + $0xd0] sm:$0xff]
        %v887 = vld [vmem:[%s199 + $0xd8] sm:$0xff]
        %v888 = vld [vmem:[%s199 + $0xe0] sm:$0xff]
        %v889 = vld [vmem:[%s199 + $0xe8] sm:$0xff]
        %v890 = vld [vmem:[%s199 + $0xf0] sm:$0xff]
        %v891 = vld [vmem:[%s199 + $0xf8] sm:$0xff]
        %v892 = vld [vmem:[%s199 + $0x100] sm:$0xff]
        %v893 = vld [vmem:[%s199 + $0x108] sm:$0xff]
        %v894 = vld [vmem:[%s199 + $0x110] sm:$0xff]
        %v895 = vld [vmem:[%s199 + $0x118] sm:$0xff]
        %v896 = vld [vmem:[%s199 + $0x120] sm:$0xff]
        %v897 = vld [vmem:[%s199 + $0x128] sm:$0xff]
        %v898 = vld [vmem:[%s199 + $0x130] sm:$0xff]
        %v899 = vld [vmem:[%s199 + $0x138] sm:$0xff]
        %v900 = vld [vmem:[%s199 + $0x140] sm:$0xff]
        %v901 = vld [vmem:[%s199 + $0x148] sm:$0xff]
        %v902 = vld [vmem:[%s199 + $0x150] sm:$0xff]
        %v903 = vld [vmem:[%s199 + $0x158] sm:$0xff]
        %v904 = vld [vmem:[%s199 + $0x160] sm:$0xff]
        %v905 = vld [vmem:[%s199 + $0x168] sm:$0xff]
        %v906 = vld [vmem:[%s199 + $0x170] sm:$0xff]
        %v907 = vld [vmem:[%s199 + $0x178] sm:$0xff]
        %v908 = vld [vmem:[%s199 + $0x180] sm:$0xff]
        %v909 = vld [vmem:[%s199 + $0x188] sm:$0xff]
        %v910 = vld [vmem:[%s199 + $0x190] sm:$0xff]
        %v911 = vld [vmem:[%s199 + $0x198] sm:$0xff]
        %v912 = vld [vmem:[%s199 + $0x1a0] sm:$0xff]
        %v913 = vld [vmem:[%s199 + $0x1a8] sm:$0xff]
        %v914 = vld [vmem:[%s199 + $0x1b0] sm:$0xff]
        %v915 = vld [vmem:[%s199 + $0x1b8] sm:$0xff]
        %v916 = vld [vmem:[%s199 + $0x1c0] sm:$0xff]
        %v917 = vld [vmem:[%s199 + $0x1c8] sm:$0xff]
        %v918 = vld [vmem:[%s199 + $0x1d0] sm:$0xff]
        %v919 = vld [vmem:[%s199 + $0x1d8] sm:$0xff]
        %v920 = vld [vmem:[%s199 + $0x1e0] sm:$0xff]
        %v921 = vld [vmem:[%s199 + $0x1e8] sm:$0xff]
        %v922 = vld [vmem:[%s199 + $0x1f0] sm:$0xff]
        %v923 = vld [vmem:[%s199 + $0x1f8] sm:$0xff]
        %v924 = vld [vmem:[%s199 + $0x200] sm:$0xff]
        %v925 = vld [vmem:[%s199 + $0x208] sm:$0xff]
        %v926 = vld [vmem:[%s199 + $0x210] sm:$0xff]
        %v927 = vld [vmem:[%s199 + $0x218] sm:$0xff]
        %v928 = vld [vmem:[%s199 + $0x220] sm:$0xff]
        %v929 = vld [vmem:[%s199 + $0x228] sm:$0xff]
        %v930 = vld [vmem:[%s199 + $0x230] sm:$0xff]
        %v931 = vld [vmem:[%s199 + $0x238] sm:$0xff]
        %933 = vset.pattern.permute.xlu0 0
        %934 = vperm.xlu0 %933, %v717
        %v935 = vpop.permute.xlu0 %934
        %938 = vset.pattern.permute.xlu0 0
        %939 = vperm.xlu0 %938, %v719
        %v940 = vpop.permute.xlu0 %939
        %943 = vset.pattern.permute.xlu0 0
        %944 = vperm.xlu0 %943, %v721
        %v945 = vpop.permute.xlu0 %944
        %948 = vset.pattern.permute.xlu0 0
        %949 = vperm.xlu0 %948, %v723
        %v950 = vpop.permute.xlu0 %949
        %953 = vset.pattern.permute.xlu0 0
        %954 = vperm.xlu0 %953, %v725
        %v955 = vpop.permute.xlu0 %954
        %958 = vset.pattern.permute.xlu0 0
        %959 = vperm.xlu0 %958, %v727
        %v960 = vpop.permute.xlu0 %959
        %963 = vset.pattern.permute.xlu0 0
        %964 = vperm.xlu0 %963, %v729
        %v965 = vpop.permute.xlu0 %964
        %968 = vset.pattern.permute.xlu0 0
        %969 = vperm.xlu0 %968, %v731
        %v970 = vpop.permute.xlu0 %969
        %973 = vset.pattern.permute.xlu0 0
        %974 = vperm.xlu0 %973, %v733
        %v975 = vpop.permute.xlu0 %974
        %978 = vset.pattern.permute.xlu0 0
        %979 = vperm.xlu0 %978, %v735
        %v980 = vpop.permute.xlu0 %979
        %983 = vset.pattern.permute.xlu0 0
        %984 = vperm.xlu0 %983, %v737
        %v985 = vpop.permute.xlu0 %984
        %988 = vset.pattern.permute.xlu0 0
        %989 = vperm.xlu0 %988, %v739
        %v990 = vpop.permute.xlu0 %989
        %993 = vset.pattern.permute.xlu0 0
        %994 = vperm.xlu0 %993, %v741
        %v995 = vpop.permute.xlu0 %994
        %998 = vset.pattern.permute.xlu0 0
        %999 = vperm.xlu0 %998, %v743
        %v1000 = vpop.permute.xlu0 %999
        %1003 = vset.pattern.permute.xlu0 0
        %1004 = vperm.xlu0 %1003, %v745
        %v1005 = vpop.permute.xlu0 %1004
        %1008 = vset.pattern.permute.xlu0 0
        %1009 = vperm.xlu0 %1008, %v747
        %v1010 = vpop.permute.xlu0 %1009
        %1013 = vset.pattern.permute.xlu0 0
        %1014 = vperm.xlu0 %1013, %v749
        %v1015 = vpop.permute.xlu0 %1014
        %1018 = vset.pattern.permute.xlu0 0
        %1019 = vperm.xlu0 %1018, %v751
        %v1020 = vpop.permute.xlu0 %1019
        %1023 = vset.pattern.permute.xlu0 0
        %1024 = vperm.xlu0 %1023, %v753
        %v1025 = vpop.permute.xlu0 %1024
        %1028 = vset.pattern.permute.xlu0 0
        %1029 = vperm.xlu0 %1028, %v755
        %v1030 = vpop.permute.xlu0 %1029
        %1033 = vset.pattern.permute.xlu0 0
        %1034 = vperm.xlu0 %1033, %v757
        %v1035 = vpop.permute.xlu0 %1034
        %1038 = vset.pattern.permute.xlu0 0
        %1039 = vperm.xlu0 %1038, %v759
        %v1040 = vpop.permute.xlu0 %1039
        %1043 = vset.pattern.permute.xlu0 0
        %1044 = vperm.xlu0 %1043, %v761
        %v1045 = vpop.permute.xlu0 %1044
        %1048 = vset.pattern.permute.xlu0 0
        %1049 = vperm.xlu0 %1048, %v763
        %v1050 = vpop.permute.xlu0 %1049
        %1053 = vset.pattern.permute.xlu0 0
        %1054 = vperm.xlu0 %1053, %v765
        %v1055 = vpop.permute.xlu0 %1054
        %1058 = vset.pattern.permute.xlu0 0
        %1059 = vperm.xlu0 %1058, %v767
        %v1060 = vpop.permute.xlu0 %1059
        %1063 = vset.pattern.permute.xlu0 0
        %1064 = vperm.xlu0 %1063, %v769
        %v1065 = vpop.permute.xlu0 %1064
        %1068 = vset.pattern.permute.xlu0 0
        %1069 = vperm.xlu0 %1068, %v771
        %v1070 = vpop.permute.xlu0 %1069
        %1073 = vset.pattern.permute.xlu0 0
        %1074 = vperm.xlu0 %1073, %v773
        %v1075 = vpop.permute.xlu0 %1074
        %1078 = vset.pattern.permute.xlu0 0
        %1079 = vperm.xlu0 %1078, %v775
        %v1080 = vpop.permute.xlu0 %1079
        %1083 = vset.pattern.permute.xlu0 0
        %1084 = vperm.xlu0 %1083, %v777
        %v1085 = vpop.permute.xlu0 %1084
        %1088 = vset.pattern.permute.xlu0 0
        %1089 = vperm.xlu0 %1088, %v779
        %v1090 = vpop.permute.xlu0 %1089
        %1093 = vset.pattern.permute.xlu0 0
        %1094 = vperm.xlu0 %1093, %v781
        %v1095 = vpop.permute.xlu0 %1094
        %1098 = vset.pattern.permute.xlu0 0
        %1099 = vperm.xlu0 %1098, %v783
        %v1100 = vpop.permute.xlu0 %1099
        %1103 = vset.pattern.permute.xlu0 0
        %1104 = vperm.xlu0 %1103, %v785
        %v1105 = vpop.permute.xlu0 %1104
        %1108 = vset.pattern.permute.xlu0 0
        %1109 = vperm.xlu0 %1108, %v787
        %v1110 = vpop.permute.xlu0 %1109
        %1113 = vset.pattern.permute.xlu0 0
        %1114 = vperm.xlu0 %1113, %v789
        %v1115 = vpop.permute.xlu0 %1114
        %1118 = vset.pattern.permute.xlu0 0
        %1119 = vperm.xlu0 %1118, %v791
        %v1120 = vpop.permute.xlu0 %1119
        %1123 = vset.pattern.permute.xlu0 0
        %1124 = vperm.xlu0 %1123, %v793
        %v1125 = vpop.permute.xlu0 %1124
        %1128 = vset.pattern.permute.xlu0 0
        %1129 = vperm.xlu0 %1128, %v795
        %v1130 = vpop.permute.xlu0 %1129
        %1133 = vset.pattern.permute.xlu0 0
        %1134 = vperm.xlu0 %1133, %v797
        %v1135 = vpop.permute.xlu0 %1134
        %1138 = vset.pattern.permute.xlu0 0
        %1139 = vperm.xlu0 %1138, %v799
        %v1140 = vpop.permute.xlu0 %1139
        %1143 = vset.pattern.permute.xlu0 0
        %1144 = vperm.xlu0 %1143, %v801
        %v1145 = vpop.permute.xlu0 %1144
        %1148 = vset.pattern.permute.xlu0 0
        %1149 = vperm.xlu0 %1148, %v803
        %v1150 = vpop.permute.xlu0 %1149
        %1153 = vset.pattern.permute.xlu0 0
        %1154 = vperm.xlu0 %1153, %v805
        %v1155 = vpop.permute.xlu0 %1154
        %1158 = vset.pattern.permute.xlu0 0
        %1159 = vperm.xlu0 %1158, %v807
        %v1160 = vpop.permute.xlu0 %1159
        %1163 = vset.pattern.permute.xlu0 0
        %1164 = vperm.xlu0 %1163, %v809
        %v1165 = vpop.permute.xlu0 %1164
        %1168 = vset.pattern.permute.xlu0 0
        %1169 = vperm.xlu0 %1168, %v811
        %v1170 = vpop.permute.xlu0 %1169
        %1173 = vset.pattern.permute.xlu0 0
        %1174 = vperm.xlu0 %1173, %v813
        %v1175 = vpop.permute.xlu0 %1174
        %1178 = vset.pattern.permute.xlu0 0
        %1179 = vperm.xlu0 %1178, %v815
        %v1180 = vpop.permute.xlu0 %1179
        %1183 = vset.pattern.permute.xlu0 0
        %1184 = vperm.xlu0 %1183, %v817
        %v1185 = vpop.permute.xlu0 %1184
        %1188 = vset.pattern.permute.xlu0 0
        %1189 = vperm.xlu0 %1188, %v819
        %v1190 = vpop.permute.xlu0 %1189
        %1193 = vset.pattern.permute.xlu0 0
        %1194 = vperm.xlu0 %1193, %v821
        %v1195 = vpop.permute.xlu0 %1194
        %1198 = vset.pattern.permute.xlu0 0
        %1199 = vperm.xlu0 %1198, %v823
        %v1200 = vpop.permute.xlu0 %1199
        %1203 = vset.pattern.permute.xlu0 0
        %1204 = vperm.xlu0 %1203, %v825
        %v1205 = vpop.permute.xlu0 %1204
        %1208 = vset.pattern.permute.xlu0 0
        %1209 = vperm.xlu0 %1208, %v827
        %v1210 = vpop.permute.xlu0 %1209
        %1213 = vset.pattern.permute.xlu0 0
        %1214 = vperm.xlu0 %1213, %v829
        %v1215 = vpop.permute.xlu0 %1214
        %1218 = vset.pattern.permute.xlu0 0
        %1219 = vperm.xlu0 %1218, %v831
        %v1220 = vpop.permute.xlu0 %1219
        %1223 = vset.pattern.permute.xlu0 0
        %1224 = vperm.xlu0 %1223, %v833
        %v1225 = vpop.permute.xlu0 %1224
        %1228 = vset.pattern.permute.xlu0 0
        %1229 = vperm.xlu0 %1228, %v835
        %v1230 = vpop.permute.xlu0 %1229
        %1233 = vset.pattern.permute.xlu0 0
        %1234 = vperm.xlu0 %1233, %v837
        %v1235 = vpop.permute.xlu0 %1234
        %1238 = vset.pattern.permute.xlu0 0
        %1239 = vperm.xlu0 %1238, %v839
        %v1240 = vpop.permute.xlu0 %1239
        %1243 = vset.pattern.permute.xlu0 0
        %1244 = vperm.xlu0 %1243, %v841
        %v1245 = vpop.permute.xlu0 %1244
        %1248 = vset.pattern.permute.xlu0 0
        %1249 = vperm.xlu0 %1248, %v843
        %v1250 = vpop.permute.xlu0 %1249
        %1253 = vset.pattern.permute.xlu0 0
        %1254 = vperm.xlu0 %1253, %v845
        %v1255 = vpop.permute.xlu0 %1254
        %1258 = vset.pattern.permute.xlu0 0
        %1259 = vperm.xlu0 %1258, %v847
        %v1260 = vpop.permute.xlu0 %1259
        %1263 = vset.pattern.permute.xlu0 0
        %1264 = vperm.xlu0 %1263, %v849
        %v1265 = vpop.permute.xlu0 %1264
        %1268 = vset.pattern.permute.xlu0 0
        %1269 = vperm.xlu0 %1268, %v851
        %v1270 = vpop.permute.xlu0 %1269
        %1273 = vset.pattern.permute.xlu0 0
        %1274 = vperm.xlu0 %1273, %v853
        %v1275 = vpop.permute.xlu0 %1274
        %1278 = vset.pattern.permute.xlu0 0
        %1279 = vperm.xlu0 %1278, %v855
        %v1280 = vpop.permute.xlu0 %1279
        %1283 = vset.pattern.permute.xlu0 0
        %1284 = vperm.xlu0 %1283, %v857
        %v1285 = vpop.permute.xlu0 %1284
        %1288 = vset.pattern.permute.xlu0 0
        %1289 = vperm.xlu0 %1288, %v859
        %v1290 = vpop.permute.xlu0 %1289
        %v1292 = vmul.f32 %v860, %v935
        %v1293 = vmul.f32 %v861, %v940
        %v1294 = vmul.f32 %v862, %v945
        %v1295 = vmul.f32 %v863, %v950
        %v1296 = vmul.f32 %v864, %v955
        %v1297 = vmul.f32 %v865, %v960
        %v1298 = vmul.f32 %v866, %v965
        %v1299 = vmul.f32 %v867, %v970
        %v1300 = vmul.f32 %v868, %v975
        %v1301 = vmul.f32 %v869, %v980
        %v1302 = vmul.f32 %v870, %v985
        %v1303 = vmul.f32 %v871, %v990
        %v1304 = vmul.f32 %v872, %v995
        %v1305 = vmul.f32 %v873, %v1000
        %v1306 = vmul.f32 %v874, %v1005
        %v1307 = vmul.f32 %v875, %v1010
        %v1308 = vmul.f32 %v876, %v1015
        %v1309 = vmul.f32 %v877, %v1020
        %v1310 = vmul.f32 %v878, %v1025
        %v1311 = vmul.f32 %v879, %v1030
        %v1312 = vmul.f32 %v880, %v1035
        %v1313 = vmul.f32 %v881, %v1040
        %v1314 = vmul.f32 %v882, %v1045
        %v1315 = vmul.f32 %v883, %v1050
        %v1316 = vmul.f32 %v884, %v1055
        %v1317 = vmul.f32 %v885, %v1060
        %v1318 = vmul.f32 %v886, %v1065
        %v1319 = vmul.f32 %v887, %v1070
        %v1320 = vmul.f32 %v888, %v1075
        %v1321 = vmul.f32 %v889, %v1080
        %v1322 = vmul.f32 %v890, %v1085
        %v1323 = vmul.f32 %v891, %v1090
        %v1324 = vmul.f32 %v892, %v1095
        %v1325 = vmul.f32 %v893, %v1100
        %v1326 = vmul.f32 %v894, %v1105
        %v1327 = vmul.f32 %v895, %v1110
        %v1328 = vmul.f32 %v896, %v1115
        %v1329 = vmul.f32 %v897, %v1120
        %v1330 = vmul.f32 %v898, %v1125
        %v1331 = vmul.f32 %v899, %v1130
        %v1332 = vmul.f32 %v900, %v1135
        %v1333 = vmul.f32 %v901, %v1140
        %v1334 = vmul.f32 %v902, %v1145
        %v1335 = vmul.f32 %v903, %v1150
        %v1336 = vmul.f32 %v904, %v1155
        %v1337 = vmul.f32 %v905, %v1160
        %v1338 = vmul.f32 %v906, %v1165
        %v1339 = vmul.f32 %v907, %v1170
        %v1340 = vmul.f32 %v908, %v1175
        %v1341 = vmul.f32 %v909, %v1180
        %v1342 = vmul.f32 %v910, %v1185
        %v1343 = vmul.f32 %v911, %v1190
        %v1344 = vmul.f32 %v912, %v1195
        %v1345 = vmul.f32 %v913, %v1200
        %v1346 = vmul.f32 %v914, %v1205
        %v1347 = vmul.f32 %v915, %v1210
        %v1348 = vmul.f32 %v916, %v1215
        %v1349 = vmul.f32 %v917, %v1220
        %v1350 = vmul.f32 %v918, %v1225
        %v1351 = vmul.f32 %v919, %v1230
        %v1352 = vmul.f32 %v920, %v1235
        %v1353 = vmul.f32 %v921, %v1240
        %v1354 = vmul.f32 %v922, %v1245
        %v1355 = vmul.f32 %v923, %v1250
        %v1356 = vmul.f32 %v924, %v1255
        %v1357 = vmul.f32 %v925, %v1260
        %v1358 = vmul.f32 %v926, %v1265
        %v1359 = vmul.f32 %v927, %v1270
        %v1360 = vmul.f32 %v928, %v1275
        %v1361 = vmul.f32 %v929, %v1280
        %v1362 = vmul.f32 %v930, %v1285
        %v1363 = vmul.f32 %v931, %v1290
        %vm1364 = vcmask 261120
        %1365 = vst.msk [vmem:[%s194] sm:$0xff] %vm1364, %v1292
        %1366 = vst.msk [vmem:[%s194 + $0x8] sm:$0xff] %vm1364, %v1293
        %1367 = vst.msk [vmem:[%s194 + $0x10] sm:$0xff] %vm1364, %v1294
        %1368 = vst.msk [vmem:[%s194 + $0x18] sm:$0xff] %vm1364, %v1295
        %1369 = vst.msk [vmem:[%s194 + $0x20] sm:$0xff] %vm1364, %v1296
        %1370 = vst.msk [vmem:[%s194 + $0x28] sm:$0xff] %vm1364, %v1297
        %1371 = vst.msk [vmem:[%s194 + $0x30] sm:$0xff] %vm1364, %v1298
        %1372 = vst.msk [vmem:[%s194 + $0x38] sm:$0xff] %vm1364, %v1299
        %1373 = vst.msk [vmem:[%s194 + $0x40] sm:$0xff] %vm1364, %v1300
        %1374 = vst.msk [vmem:[%s194 + $0x48] sm:$0xff] %vm1364, %v1301
        %1375 = vst.msk [vmem:[%s194 + $0x50] sm:$0xff] %vm1364, %v1302
        %1376 = vst.msk [vmem:[%s194 + $0x58] sm:$0xff] %vm1364, %v1303
        %1377 = vst.msk [vmem:[%s194 + $0x60] sm:$0xff] %vm1364, %v1304
        %1378 = vst.msk [vmem:[%s194 + $0x68] sm:$0xff] %vm1364, %v1305
        %1379 = vst.msk [vmem:[%s194 + $0x70] sm:$0xff] %vm1364, %v1306
        %1380 = vst.msk [vmem:[%s194 + $0x78] sm:$0xff] %vm1364, %v1307
        %1381 = vst.msk [vmem:[%s194 + $0x80] sm:$0xff] %vm1364, %v1308
        %1382 = vst.msk [vmem:[%s194 + $0x88] sm:$0xff] %vm1364, %v1309
        %1383 = vst.msk [vmem:[%s194 + $0x90] sm:$0xff] %vm1364, %v1310
        %1384 = vst.msk [vmem:[%s194 + $0x98] sm:$0xff] %vm1364, %v1311
        %1385 = vst.msk [vmem:[%s194 + $0xa0] sm:$0xff] %vm1364, %v1312
        %1386 = vst.msk [vmem:[%s194 + $0xa8] sm:$0xff] %vm1364, %v1313
        %1387 = vst.msk [vmem:[%s194 + $0xb0] sm:$0xff] %vm1364, %v1314
        %1388 = vst.msk [vmem:[%s194 + $0xb8] sm:$0xff] %vm1364, %v1315
        %1389 = vst.msk [vmem:[%s194 + $0xc0] sm:$0xff] %vm1364, %v1316
        %1390 = vst.msk [vmem:[%s194 + $0xc8] sm:$0xff] %vm1364, %v1317
        %1391 = vst.msk [vmem:[%s194 + $0xd0] sm:$0xff] %vm1364, %v1318
        %1392 = vst.msk [vmem:[%s194 + $0xd8] sm:$0xff] %vm1364, %v1319
        %1393 = vst.msk [vmem:[%s194 + $0xe0] sm:$0xff] %vm1364, %v1320
        %1394 = vst.msk [vmem:[%s194 + $0xe8] sm:$0xff] %vm1364, %v1321
        %1395 = vst.msk [vmem:[%s194 + $0xf0] sm:$0xff] %vm1364, %v1322
        %1396 = vst.msk [vmem:[%s194 + $0xf8] sm:$0xff] %vm1364, %v1323
        %1397 = vst.msk [vmem:[%s194 + $0x100] sm:$0xff] %vm1364, %v1324
        %1398 = vst.msk [vmem:[%s194 + $0x108] sm:$0xff] %vm1364, %v1325
        %1399 = vst.msk [vmem:[%s194 + $0x110] sm:$0xff] %vm1364, %v1326
        %1400 = vst.msk [vmem:[%s194 + $0x118] sm:$0xff] %vm1364, %v1327
        %1401 = vst.msk [vmem:[%s194 + $0x120] sm:$0xff] %vm1364, %v1328
        %1402 = vst.msk [vmem:[%s194 + $0x128] sm:$0xff] %vm1364, %v1329
        %1403 = vst.msk [vmem:[%s194 + $0x130] sm:$0xff] %vm1364, %v1330
        %1404 = vst.msk [vmem:[%s194 + $0x138] sm:$0xff] %vm1364, %v1331
        %1405 = vst.msk [vmem:[%s194 + $0x140] sm:$0xff] %vm1364, %v1332
        %1406 = vst.msk [vmem:[%s194 + $0x148] sm:$0xff] %vm1364, %v1333
        %1407 = vst.msk [vmem:[%s194 + $0x150] sm:$0xff] %vm1364, %v1334
        %1408 = vst.msk [vmem:[%s194 + $0x158] sm:$0xff] %vm1364, %v1335
        %1409 = vst.msk [vmem:[%s194 + $0x160] sm:$0xff] %vm1364, %v1336
        %1410 = vst.msk [vmem:[%s194 + $0x168] sm:$0xff] %vm1364, %v1337
        %1411 = vst.msk [vmem:[%s194 + $0x170] sm:$0xff] %vm1364, %v1338
        %1412 = vst.msk [vmem:[%s194 + $0x178] sm:$0xff] %vm1364, %v1339
        %1413 = vst.msk [vmem:[%s194 + $0x180] sm:$0xff] %vm1364, %v1340
        %1414 = vst.msk [vmem:[%s194 + $0x188] sm:$0xff] %vm1364, %v1341
        %1415 = vst.msk [vmem:[%s194 + $0x190] sm:$0xff] %vm1364, %v1342
        %1416 = vst.msk [vmem:[%s194 + $0x198] sm:$0xff] %vm1364, %v1343
        %1417 = vst.msk [vmem:[%s194 + $0x1a0] sm:$0xff] %vm1364, %v1344
        %1418 = vst.msk [vmem:[%s194 + $0x1a8] sm:$0xff] %vm1364, %v1345
        %1419 = vst.msk [vmem:[%s194 + $0x1b0] sm:$0xff] %vm1364, %v1346
        %1420 = vst.msk [vmem:[%s194 + $0x1b8] sm:$0xff] %vm1364, %v1347
        %1421 = vst.msk [vmem:[%s194 + $0x1c0] sm:$0xff] %vm1364, %v1348
        %1422 = vst.msk [vmem:[%s194 + $0x1c8] sm:$0xff] %vm1364, %v1349
        %1423 = vst.msk [vmem:[%s194 + $0x1d0] sm:$0xff] %vm1364, %v1350
        %1424 = vst.msk [vmem:[%s194 + $0x1d8] sm:$0xff] %vm1364, %v1351
        %1425 = vst.msk [vmem:[%s194 + $0x1e0] sm:$0xff] %vm1364, %v1352
        %1426 = vst.msk [vmem:[%s194 + $0x1e8] sm:$0xff] %vm1364, %v1353
        %1427 = vst.msk [vmem:[%s194 + $0x1f0] sm:$0xff] %vm1364, %v1354
        %1428 = vst.msk [vmem:[%s194 + $0x1f8] sm:$0xff] %vm1364, %v1355
        %1429 = vst.msk [vmem:[%s194 + $0x200] sm:$0xff] %vm1364, %v1356
        %1430 = vst.msk [vmem:[%s194 + $0x208] sm:$0xff] %vm1364, %v1357
        %1431 = vst.msk [vmem:[%s194 + $0x210] sm:$0xff] %vm1364, %v1358
        %1432 = vst.msk [vmem:[%s194 + $0x218] sm:$0xff] %vm1364, %v1359
        %1433 = vst.msk [vmem:[%s194 + $0x220] sm:$0xff] %vm1364, %v1360
        %1434 = vst.msk [vmem:[%s194 + $0x228] sm:$0xff] %vm1364, %v1361
        %1435 = vst.msk [vmem:[%s194 + $0x230] sm:$0xff] %vm1364, %v1362
        %1436 = vst.msk [vmem:[%s194 + $0x238] sm:$0xff] %vm1364, %v1363
        %s1437 = sand.u32 %s99, 1
        %s1438 = scalar_lea.sflag [#allocation3], %s1437
        %s1439 = sand.u32 %s99, 1
        %s1440 = smul.addr %s1439, 576
        %s1441 = scalar_lea.vmem [#allocation5], %s1440
        // Predicated region
        $region37: #{attention_block_forward.5} parent=31 // pred_check
          %p1442 = pneg %p109
        $region38: #{attention_block_forward.5} parent=31 // pred_check_branch
          %1444 = sbr.rel (%p1442) target = $region40
        $region39: #{attention_block_forward.5} parent=31 // pred_region
          %s1445 = smul.u32 72, %s18
          %s1447 = ssub.s32 9216, 9216
          %1448 = vsyncadd %s1438, %s1447
          %s1449 = smul.addr %s1445, 128
          %s1450 = scalar_lea.hbm %s3, %s1449
          %s1451 = sshll.u32 %s1441, 4
          %s1452 = int_to_ptr.vmem [resolvable:$true] %s1451
          %1457 = dma.vmem_to_hbm [thread:$0]  %s1452, 9216, %s1450, %s1438, 128, 128, 8
        $region40: #{attention_block_forward.5} parent=31 // pred_fallthru
          _
      $region32: #{attention_block_forward.5} parent=5 // pred_fallthru
        _
      %p1458 = scmp.le.s32.totalorder 2, %s13
      // Predicated region
      $region41: #{attention_block_forward.5} parent=5 // pred_check
        %p1459 = pneg %p1458
      $region42: #{attention_block_forward.5} parent=5 // pred_check_branch
        %1461 = sbr.rel (%p1459) target = $region44
      $region43: #{attention_block_forward.5} parent=5 // pred_region
        %s1462 = ssub.s32 %s13, 2
        // Predicated region
        $region45: #{attention_block_forward.5} parent=43 // pred_check
          %p1463 = pneg %p115
        $region46: #{attention_block_forward.5} parent=43 // pred_check_branch
          %1465 = sbr.rel (%p1463) target = $region48
        $region47: #{attention_block_forward.5} parent=43 // pred_region
          %s1466 = sand.u32 %s100, 1
          %s1467 = scalar_lea.sflag [#allocation3], %s1466
          %s1468 = sand.u32 %s100, 1
          %s1469 = smul.addr %s1468, 576
          %s1470 = scalar_lea.vmem [#allocation5], %s1469
          %1471 = dma.done %s1467, 9216
        $region48: #{attention_block_forward.5} parent=43 // pred_fallthru
          _
      $region44: #{attention_block_forward.5} parent=5 // pred_fallthru
        _
    $region6: #{attention_block_forward.5} parent=1 // loop_footer
      %s17 = sadd.s32 1, %s13
    $region7: #{attention_block_forward.5} parent=1 // loop_footer_branch
      %12 = sbr.rel target = $region3
    $region8: #{attention_block_forward.5} parent=1 // loop_exit
      _
    %1472 = vsyncpa [#allocation3], 1
    %s1473 = scalar_lea.sflag [#allocation3], 1
    %1474 = vsyncpa %s1473, 1
    %1475 = vsyncpa [#allocation4], 1
    %s1476 = scalar_lea.sflag [#allocation4], 1
    %1477 = vsyncpa %s1476, 1

// kernel: attention_block_forward.4
$region0: #{attention_block_forward.4}
  #allocation0 [shape = 'u32[]', space=smem, size = 0x4, offset = 0x4, fixed_abs, tag = 'smem constant byte address 0x4 - core index']
  #allocation1 [shape = 'u32[144,128]{1,0:T(1,128)}', space=vmem, size = 0x12000, scoped, tag = 'internal scratch']
  %s0 = inlined_call_operand.vmem [shape: f32[1152,32], index: 0, kind: input, shape index: {}]
  %s1 = inlined_call_operand.vmem [shape: f32[1152,32], index: 1, kind: input, shape index: {}]
  %s2 = inlined_call_operand.vmem [shape: f32[32,128], index: 2, kind: input, shape index: {}]
  %s3 = inlined_call_operand.vmem [shape: f32[32,128], index: 3, kind: input, shape index: {}]
  %s4 = inlined_call_operand.vmem [shape: f32[2,128], index: 4, kind: input, shape index: {}]
  %s5 = inlined_call_operand.vmem [shape: f32[1152,1], index: 5, kind: output, shape index: {0}]
  %s6 = inlined_call_operand.vmem [shape: f32[2,2,1], index: 6, kind: output, shape index: {1}]
  %7 = xla_tuple %s5, %s6
  %s8 = sld [smem:[#allocation0]]
  $region61: #{attention_block_forward.4} parent=0
    _
  %s10 = ssub.s32 1, %s8
  %s11 = scalar_select 0, %s10, %s8
  loop: start=0, step=1, limit=4
  $region2: #{attention_block_forward.4} parent=0 // loop_pre_header
    _
  $region3: #{attention_block_forward.4} parent=0 // loop_header
    %s13 = sphi 0, %s17
    %p14 = scmp.ge.s32.totalorder %s13, 4
    %s23 = sphi 0, %s25
    %s26 = sphi 0, %s23
    %s27 = sphi 0, %s26
    %s43 = sphi 0, %s27
    %s49 = sphi 0, %s51
    %s52 = sphi 0, %s49
    %s53 = sphi 0, %s52
    %s69 = sphi 0, %s53
    %s73 = sphi 0, %s73
    %s75 = sphi 0, %s73
    %s76 = sphi 0, %s75
    %s90 = sphi 0, %s76
    %s94 = sphi 0, %s94
    %s96 = sphi 0, %s94
    %s97 = sphi 0, %s96
    %s111 = sphi 0, %s97
    %s115 = sphi 0, %s115
    %s117 = sphi 0, %s115
    %s118 = sphi 0, %s117
    %s132 = sphi 0, %s118
    %s138 = sphi 0, %s140
    %s141 = sphi 0, %s138
    %s142 = sphi 0, %s141
    %s158 = sphi 0, %s142
    %s164 = sphi 0, %s166
    %s167 = sphi 0, %s164
    %s168 = sphi 0, %s167
    %s184 = sphi 0, %s168
  $region4: #{attention_block_forward.4} parent=0 // loop_header_branch
    %16 = sbr.rel (%p14) target = $region8
  $region5: #{attention_block_forward.4} parent=0 // loop_body
    %s18 = ssub.s32 %s13, 1
    %s19 = ssub.s32 %s13, 2
    %s20 = sadd.s32 %s13, 1
    %s21 = ssub.s32 %s13, %s20
    %p22 = scmp.eq.s32.totalorder %s21, 0
    %s24 = sadd.s32 %s23, 1
    %s25 = scalar_select %p22, %s23, %s24
    %p28 = pneg %p22
    %p29 = scmp.eq.s32.totalorder %s13, 1
    %p30 = por %p28, %p29
    %p31 = scmp.ne.s32.totalorder %s23, %s26
    %p32 = scmp.eq.s32.totalorder %s13, 0
    %p33 = por %p31, %p32
    %p34 = scmp.ne.s32.totalorder %s23, %s26
    %p35 = scmp.eq.s32.totalorder %s18, 1
    %p36 = por %p34, %p35
    %p37 = scmp.ne.s32.totalorder %s26, %s27
    %p38 = scmp.eq.s32.totalorder %s18, 0
    %p39 = por %p37, %p38
    %p40 = scmp.ne.s32.totalorder %s26, %s27
    %p41 = scmp.eq.s32.totalorder %s19, 1
    %p42 = por %p40, %p41
    %p44 = scmp.ne.s32.totalorder %s27, %s43
    %p45 = scmp.eq.s32.totalorder %s19, 0
    %p46 = por %p44, %p45
    %s47 = ssub.s32 %s13, %s20
    %p48 = scmp.eq.s32.totalorder %s47, 0
    %s50 = sadd.s32 %s49, 1
    %s51 = scalar_select %p48, %s49, %s50
    %p54 = pneg %p48
    %p55 = scmp.eq.s32.totalorder %s13, 1
    %p56 = por %p54, %p55
    %p57 = scmp.ne.s32.totalorder %s49, %s52
    %p58 = scmp.eq.s32.totalorder %s13, 0
    %p59 = por %p57, %p58
    %p60 = scmp.ne.s32.totalorder %s49, %s52
    %p61 = scmp.eq.s32.totalorder %s18, 1
    %p62 = por %p60, %p61
    %p63 = scmp.ne.s32.totalorder %s52, %s53
    %p64 = scmp.eq.s32.totalorder %s18, 0
    %p65 = por %p63, %p64
    %p66 = scmp.ne.s32.totalorder %s52, %s53
    %p67 = scmp.eq.s32.totalorder %s19, 1
    %p68 = por %p66, %p67
    %p70 = scmp.ne.s32.totalorder %s53, %s69
    %p71 = scmp.eq.s32.totalorder %s19, 0
    %p72 = por %p70, %p71
    %s74 = sadd.s32 %s73, 1
    %p77 = scmp.eq.s32.totalorder %s13, 1
    %p78 = scmp.ne.s32.totalorder %s73, %s75
    %p79 = scmp.eq.s32.totalorder %s13, 0
    %p80 = por %p78, %p79
    %p81 = scmp.ne.s32.totalorder %s73, %s75
    %p82 = scmp.eq.s32.totalorder %s18, 1
    %p83 = por %p81, %p82
    %p84 = scmp.ne.s32.totalorder %s75, %s76
    %p85 = scmp.eq.s32.totalorder %s18, 0
    %p86 = por %p84, %p85
    %p87 = scmp.ne.s32.totalorder %s75, %s76
    %p88 = scmp.eq.s32.totalorder %s19, 1
    %p89 = por %p87, %p88
    %p91 = scmp.ne.s32.totalorder %s76, %s90
    %p92 = scmp.eq.s32.totalorder %s19, 0
    %p93 = por %p91, %p92
    %s95 = sadd.s32 %s94, 1
    %p98 = scmp.eq.s32.totalorder %s13, 1
    %p99 = scmp.ne.s32.totalorder %s94, %s96
    %p100 = scmp.eq.s32.totalorder %s13, 0
    %p101 = por %p99, %p100
    %p102 = scmp.ne.s32.totalorder %s94, %s96
    %p103 = scmp.eq.s32.totalorder %s18, 1
    %p104 = por %p102, %p103
    %p105 = scmp.ne.s32.totalorder %s96, %s97
    %p106 = scmp.eq.s32.totalorder %s18, 0
    %p107 = por %p105, %p106
    %p108 = scmp.ne.s32.totalorder %s96, %s97
    %p109 = scmp.eq.s32.totalorder %s19, 1
    %p110 = por %p108, %p109
    %p112 = scmp.ne.s32.totalorder %s97, %s111
    %p113 = scmp.eq.s32.totalorder %s19, 0
    %p114 = por %p112, %p113
    %s116 = sadd.s32 %s115, 1
    %p119 = scmp.eq.s32.totalorder %s13, 1
    %p120 = scmp.ne.s32.totalorder %s115, %s117
    %p121 = scmp.eq.s32.totalorder %s13, 0
    %p122 = por %p120, %p121
    %p123 = scmp.ne.s32.totalorder %s115, %s117
    %p124 = scmp.eq.s32.totalorder %s18, 1
    %p125 = por %p123, %p124
    %p126 = scmp.ne.s32.totalorder %s117, %s118
    %p127 = scmp.eq.s32.totalorder %s18, 0
    %p128 = por %p126, %p127
    %p129 = scmp.ne.s32.totalorder %s117, %s118
    %p130 = scmp.eq.s32.totalorder %s19, 1
    %p131 = por %p129, %p130
    %p133 = scmp.ne.s32.totalorder %s118, %s132
    %p134 = scmp.eq.s32.totalorder %s19, 0
    %p135 = por %p133, %p134
    %s136 = ssub.s32 %s13, %s20
    %p137 = scmp.eq.s32.totalorder %s136, 0
    %s139 = sadd.s32 %s138, 1
    %s140 = scalar_select %p137, %s138, %s139
    %p143 = pneg %p137
    %p144 = scmp.eq.s32.totalorder %s13, 1
    %p145 = por %p143, %p144
    %p146 = scmp.ne.s32.totalorder %s138, %s141
    %p147 = scmp.eq.s32.totalorder %s13, 0
    %p148 = por %p146, %p147
    %p149 = scmp.ne.s32.totalorder %s138, %s141
    %p150 = scmp.eq.s32.totalorder %s18, 1
    %p151 = por %p149, %p150
    %p152 = scmp.ne.s32.totalorder %s141, %s142
    %p153 = scmp.eq.s32.totalorder %s18, 0
    %p154 = por %p152, %p153
    %p155 = scmp.ne.s32.totalorder %s141, %s142
    %p156 = scmp.eq.s32.totalorder %s19, 1
    %p157 = por %p155, %p156
    %p159 = scmp.ne.s32.totalorder %s142, %s158
    %p160 = scmp.eq.s32.totalorder %s19, 0
    %p161 = por %p159, %p160
    %s162 = ssub.s32 %s13, %s20
    %p163 = scmp.eq.s32.totalorder %s162, 0
    %s165 = sadd.s32 %s164, 1
    %s166 = scalar_select %p163, %s164, %s165
    %p169 = pneg %p163
    %p170 = scmp.eq.s32.totalorder %s13, 1
    %p171 = por %p169, %p170
    %p172 = scmp.ne.s32.totalorder %s164, %s167
    %p173 = scmp.eq.s32.totalorder %s13, 0
    %p174 = por %p172, %p173
    %p175 = scmp.ne.s32.totalorder %s164, %s167
    %p176 = scmp.eq.s32.totalorder %s18, 1
    %p177 = por %p175, %p176
    %p178 = scmp.ne.s32.totalorder %s167, %s168
    %p179 = scmp.eq.s32.totalorder %s18, 0
    %p180 = por %p178, %p179
    %p181 = scmp.ne.s32.totalorder %s167, %s168
    %p182 = scmp.eq.s32.totalorder %s19, 1
    %p183 = por %p181, %p182
    %p185 = scmp.ne.s32.totalorder %s168, %s184
    %p186 = scmp.eq.s32.totalorder %s19, 0
    %p187 = por %p185, %p186
    %p188 = scmp.le.s32.totalorder 1, %s13
    %p189 = scmp.lt.s32.totalorder %s13, 3
    %p190 = pnand %p188, %p189
    %p191 = pneg %p190
    // Predicated region
    $region9: #{attention_block_forward.4} parent=5 // pred_check
      _
    $region10: #{attention_block_forward.4} parent=5 // pred_check_branch
      %193 = sbr.rel (%p190) target = $region12
    $region11: #{attention_block_forward.4} parent=5 // pred_region
      %s194 = ssub.s32 %s13, 1
      // Predicated region
      $region13: #{attention_block_forward.4} parent=11 // pred_check
        %p195 = pneg %p86
      $region14: #{attention_block_forward.4} parent=11 // pred_check_branch
        %197 = sbr.rel (%p195) target = $region16
      $region15: #{attention_block_forward.4} parent=11 // pred_region
        _
      $region16: #{attention_block_forward.4} parent=11 // pred_fallthru
        _
      // Predicated region
      $region17: #{attention_block_forward.4} parent=11 // pred_check
        %p198 = pneg %p107
      $region18: #{attention_block_forward.4} parent=11 // pred_check_branch
        %200 = sbr.rel (%p198) target = $region20
      $region19: #{attention_block_forward.4} parent=11 // pred_region
        _
      $region20: #{attention_block_forward.4} parent=11 // pred_fallthru
        _
      // Predicated region
      $region21: #{attention_block_forward.4} parent=11 // pred_check
        %p201 = pneg %p128
      $region22: #{attention_block_forward.4} parent=11 // pred_check_branch
        %203 = sbr.rel (%p201) target = $region24
      $region23: #{attention_block_forward.4} parent=11 // pred_region
        _
      $region24: #{attention_block_forward.4} parent=11 // pred_fallthru
        _
    $region12: #{attention_block_forward.4} parent=5 // pred_fallthru
      _
    %p204 = scmp.lt.s32.totalorder %s13, 2
    // Predicated region
    $region25: #{attention_block_forward.4} parent=5 // pred_check
      %p205 = pneg %p204
    $region26: #{attention_block_forward.4} parent=5 // pred_check_branch
      %207 = sbr.rel (%p205) target = $region28
    $region27: #{attention_block_forward.4} parent=5 // pred_region
      // Predicated region
      $region29: #{attention_block_forward.4} parent=27 // pred_check
        %p208 = pneg %p33
      $region30: #{attention_block_forward.4} parent=27 // pred_check_branch
        %210 = sbr.rel (%p208) target = $region32
      $region31: #{attention_block_forward.4} parent=27 // pred_region
        %s211 = smul.u32 72, %s13
        %p212 = scmp.lt.s32.totalorder %s211, 143
        %s213 = scalar_select %p212, %s211, 143
        %s214 = smul.addr %s213, 8
        %s215 = scalar_lea.vmem %s0, %s214
        %s216 = smul.u32 72, %s13
      $region32: #{attention_block_forward.4} parent=27 // pred_fallthru
        _
      // Predicated region
      $region33: #{attention_block_forward.4} parent=27 // pred_check
        %p217 = pneg %p59
      $region34: #{attention_block_forward.4} parent=27 // pred_check_branch
        %219 = sbr.rel (%p217) target = $region36
      $region35: #{attention_block_forward.4} parent=27 // pred_region
        %s220 = smul.u32 72, %s13
        %p221 = scmp.lt.s32.totalorder %s220, 143
        %s222 = scalar_select %p221, %s220, 143
        %s223 = smul.addr %s222, 8
        %s224 = scalar_lea.vmem %s1, %s223
        %s225 = smul.u32 72, %s13
      $region36: #{attention_block_forward.4} parent=27 // pred_fallthru
        _
    $region28: #{attention_block_forward.4} parent=5 // pred_fallthru
      _
    %p226 = scmp.le.s32.totalorder 1, %s13
    %p227 = scmp.lt.s32.totalorder %s13, 3
    %p228 = pnand %p226, %p227
    %p229 = pneg %p228
    // Predicated region
    $region37: #{attention_block_forward.4} parent=5 // pred_check
      _
    $region38: #{attention_block_forward.4} parent=5 // pred_check_branch
      %231 = sbr.rel (%p228) target = $region40
    $region39: #{attention_block_forward.4} parent=5 // pred_region
      %s232 = ssub.s32 %s13, 1
      %s233 = smul.u32 72, %s18
      %p234 = scmp.lt.s32.totalorder %s233, 143
      %s235 = scalar_select %p234, %s233, 143
      %s236 = smul.addr %s235, 8
      %s237 = scalar_lea.vmem %s0, %s236
      %p238 = pneg %p39
      %p239 = pneg %p36
      %s240 = smul.u32 72, %s18
      %p241 = scmp.lt.s32.totalorder %s240, 143
      %s242 = scalar_select %p241, %s240, 143
      %s243 = smul.addr %s242, 8
      %s244 = scalar_lea.vmem %s1, %s243
      %p245 = pneg %p65
      %p246 = pneg %p62
      %p247 = pneg %p86
      %p248 = pneg %p83
      %p249 = pneg %p107
      %p250 = pneg %p104
      %p251 = pneg %p128
      %p252 = pneg %p125
      %p253 = pneg %p154
      %p254 = pneg %p151
      %s255 = smul.u32 72, %s18
      %p256 = scmp.lt.s32.totalorder %s255, 143
      %s257 = scalar_select %p256, %s255, 143
      %s258 = smul.addr %s257, 8
      %s259 = scalar_lea.vmem %s5, %s258
      %p260 = pneg %p180
      %p261 = pneg %p177
      %p262 = scmp.lt.s32.totalorder %s18, 1
      %s263 = scalar_select %p262, %s18, 1
      %s264 = smul.addr %s263, 2
      %s265 = scalar_lea.vmem %s6, %s264
      %s266 = smul.u32 72, %s18
      %p267 = scmp.lt.s32.totalorder %s266, 143
      %s268 = scalar_select %p267, %s266, 143
      %s269 = smul.addr %s268, 8
      %s270 = scalar_lea.vmem %s0, %s269
      %s271 = smul.u32 72, %s18
      %s272 = smul.u32 72, %s18
      %p273 = scmp.lt.s32.totalorder %s272, 143
      %s274 = scalar_select %p273, %s272, 143
      %s275 = smul.addr %s274, 8
      %s276 = scalar_lea.vmem %s1, %s275
      %s277 = smul.u32 72, %s18
      %s278 = smul.u32 72, %s18
      %p279 = scmp.lt.s32.totalorder %s278, 143
      %s280 = scalar_select %p279, %s278, 143
      %s281 = smul.addr %s280, 8
      %s282 = scalar_lea.vmem %s5, %s281
      %s283 = smul.u32 72, %s18
      %p284 = scmp.lt.s32.totalorder %s18, 1
      %s285 = scalar_select %p284, %s18, 1
      %s286 = smul.addr %s285, 2
      %s287 = scalar_lea.vmem %s6, %s286
      %v288 = vld [vmem:[%s270] sm:$0xff]
      %v289 = vld [vmem:[%s270 + $0x8] sm:$0xff]
      %v290 = vld [vmem:[%s270 + $0x10] sm:$0xff]
      %v291 = vld [vmem:[%s270 + $0x18] sm:$0xff]
      %v292 = vld [vmem:[%s270 + $0x20] sm:$0xff]
      %v293 = vld [vmem:[%s270 + $0x28] sm:$0xff]
      %v294 = vld [vmem:[%s270 + $0x30] sm:$0xff]
      %v295 = vld [vmem:[%s270 + $0x38] sm:$0xff]
      %v296 = vld [vmem:[%s270 + $0x40] sm:$0xff]
      %v297 = vld [vmem:[%s270 + $0x48] sm:$0xff]
      %v298 = vld [vmem:[%s270 + $0x50] sm:$0xff]
      %v299 = vld [vmem:[%s270 + $0x58] sm:$0xff]
      %v300 = vld [vmem:[%s270 + $0x60] sm:$0xff]
      %v301 = vld [vmem:[%s270 + $0x68] sm:$0xff]
      %v302 = vld [vmem:[%s270 + $0x70] sm:$0xff]
      %v303 = vld [vmem:[%s270 + $0x78] sm:$0xff]
      %v304 = vld [vmem:[%s270 + $0x80] sm:$0xff]
      %v305 = vld [vmem:[%s270 + $0x88] sm:$0xff]
      %v306 = vld [vmem:[%s270 + $0x90] sm:$0xff]
      %v307 = vld [vmem:[%s270 + $0x98] sm:$0xff]
      %v308 = vld [vmem:[%s270 + $0xa0] sm:$0xff]
      %v309 = vld [vmem:[%s270 + $0xa8] sm:$0xff]
      %v310 = vld [vmem:[%s270 + $0xb0] sm:$0xff]
      %v311 = vld [vmem:[%s270 + $0xb8] sm:$0xff]
      %v312 = vld [vmem:[%s270 + $0xc0] sm:$0xff]
      %v313 = vld [vmem:[%s270 + $0xc8] sm:$0xff]
      %v314 = vld [vmem:[%s270 + $0xd0] sm:$0xff]
      %v315 = vld [vmem:[%s270 + $0xd8] sm:$0xff]
      %v316 = vld [vmem:[%s270 + $0xe0] sm:$0xff]
      %v317 = vld [vmem:[%s270 + $0xe8] sm:$0xff]
      %v318 = vld [vmem:[%s270 + $0xf0] sm:$0xff]
      %v319 = vld [vmem:[%s270 + $0xf8] sm:$0xff]
      %v320 = vld [vmem:[%s270 + $0x100] sm:$0xff]
      %v321 = vld [vmem:[%s270 + $0x108] sm:$0xff]
      %v322 = vld [vmem:[%s270 + $0x110] sm:$0xff]
      %v323 = vld [vmem:[%s270 + $0x118] sm:$0xff]
      %v324 = vld [vmem:[%s270 + $0x120] sm:$0xff]
      %v325 = vld [vmem:[%s270 + $0x128] sm:$0xff]
      %v326 = vld [vmem:[%s270 + $0x130] sm:$0xff]
      %v327 = vld [vmem:[%s270 + $0x138] sm:$0xff]
      %v328 = vld [vmem:[%s270 + $0x140] sm:$0xff]
      %v329 = vld [vmem:[%s270 + $0x148] sm:$0xff]
      %v330 = vld [vmem:[%s270 + $0x150] sm:$0xff]
      %v331 = vld [vmem:[%s270 + $0x158] sm:$0xff]
      %v332 = vld [vmem:[%s270 + $0x160] sm:$0xff]
      %v333 = vld [vmem:[%s270 + $0x168] sm:$0xff]
      %v334 = vld [vmem:[%s270 + $0x170] sm:$0xff]
      %v335 = vld [vmem:[%s270 + $0x178] sm:$0xff]
      %v336 = vld [vmem:[%s270 + $0x180] sm:$0xff]
      %v337 = vld [vmem:[%s270 + $0x188] sm:$0xff]
      %v338 = vld [vmem:[%s270 + $0x190] sm:$0xff]
      %v339 = vld [vmem:[%s270 + $0x198] sm:$0xff]
      %v340 = vld [vmem:[%s270 + $0x1a0] sm:$0xff]
      %v341 = vld [vmem:[%s270 + $0x1a8] sm:$0xff]
      %v342 = vld [vmem:[%s270 + $0x1b0] sm:$0xff]
      %v343 = vld [vmem:[%s270 + $0x1b8] sm:$0xff]
      %v344 = vld [vmem:[%s270 + $0x1c0] sm:$0xff]
      %v345 = vld [vmem:[%s270 + $0x1c8] sm:$0xff]
      %v346 = vld [vmem:[%s270 + $0x1d0] sm:$0xff]
      %v347 = vld [vmem:[%s270 + $0x1d8] sm:$0xff]
      %v348 = vld [vmem:[%s270 + $0x1e0] sm:$0xff]
      %v349 = vld [vmem:[%s270 + $0x1e8] sm:$0xff]
      %v350 = vld [vmem:[%s270 + $0x1f0] sm:$0xff]
      %v351 = vld [vmem:[%s270 + $0x1f8] sm:$0xff]
      %v352 = vld [vmem:[%s270 + $0x200] sm:$0xff]
      %v353 = vld [vmem:[%s270 + $0x208] sm:$0xff]
      %v354 = vld [vmem:[%s270 + $0x210] sm:$0xff]
      %v355 = vld [vmem:[%s270 + $0x218] sm:$0xff]
      %v356 = vld [vmem:[%s270 + $0x220] sm:$0xff]
      %v357 = vld [vmem:[%s270 + $0x228] sm:$0xff]
      %v358 = vld [vmem:[%s270 + $0x230] sm:$0xff]
      %v359 = vld [vmem:[%s270 + $0x238] sm:$0xff]
      %v360 = vld [vmem:[%s2] sm:$0xff]
      %v361 = vld [vmem:[%s2 + $0x8] sm:$0xff]
      %v362 = vld [vmem:[%s2 + $0x10] sm:$0xff]
      %v363 = vld [vmem:[%s2 + $0x18] sm:$0xff]
      %v364 = vld [vmem:[%s276] sm:$0xff]
      %v365 = vld [vmem:[%s276 + $0x8] sm:$0xff]
      %v366 = vld [vmem:[%s276 + $0x10] sm:$0xff]
      %v367 = vld [vmem:[%s276 + $0x18] sm:$0xff]
      %v368 = vld [vmem:[%s276 + $0x20] sm:$0xff]
      %v369 = vld [vmem:[%s276 + $0x28] sm:$0xff]
      %v370 = vld [vmem:[%s276 + $0x30] sm:$0xff]
      %v371 = vld [vmem:[%s276 + $0x38] sm:$0xff]
      %v372 = vld [vmem:[%s276 + $0x40] sm:$0xff]
      %v373 = vld [vmem:[%s276 + $0x48] sm:$0xff]
      %v374 = vld [vmem:[%s276 + $0x50] sm:$0xff]
      %v375 = vld [vmem:[%s276 + $0x58] sm:$0xff]
      %v376 = vld [vmem:[%s276 + $0x60] sm:$0xff]
      %v377 = vld [vmem:[%s276 + $0x68] sm:$0xff]
      %v378 = vld [vmem:[%s276 + $0x70] sm:$0xff]
      %v379 = vld [vmem:[%s276 + $0x78] sm:$0xff]
      %v380 = vld [vmem:[%s276 + $0x80] sm:$0xff]
      %v381 = vld [vmem:[%s276 + $0x88] sm:$0xff]
      %v382 = vld [vmem:[%s276 + $0x90] sm:$0xff]
      %v383 = vld [vmem:[%s276 + $0x98] sm:$0xff]
      %v384 = vld [vmem:[%s276 + $0xa0] sm:$0xff]
      %v385 = vld [vmem:[%s276 + $0xa8] sm:$0xff]
      %v386 = vld [vmem:[%s276 + $0xb0] sm:$0xff]
      %v387 = vld [vmem:[%s276 + $0xb8] sm:$0xff]
      %v388 = vld [vmem:[%s276 + $0xc0] sm:$0xff]
      %v389 = vld [vmem:[%s276 + $0xc8] sm:$0xff]
      %v390 = vld [vmem:[%s276 + $0xd0] sm:$0xff]
      %v391 = vld [vmem:[%s276 + $0xd8] sm:$0xff]
      %v392 = vld [vmem:[%s276 + $0xe0] sm:$0xff]
      %v393 = vld [vmem:[%s276 + $0xe8] sm:$0xff]
      %v394 = vld [vmem:[%s276 + $0xf0] sm:$0xff]
      %v395 = vld [vmem:[%s276 + $0xf8] sm:$0xff]
      %v396 = vld [vmem:[%s276 + $0x100] sm:$0xff]
      %v397 = vld [vmem:[%s276 + $0x108] sm:$0xff]
      %v398 = vld [vmem:[%s276 + $0x110] sm:$0xff]
      %v399 = vld [vmem:[%s276 + $0x118] sm:$0xff]
      %v400 = vld [vmem:[%s276 + $0x120] sm:$0xff]
      %v401 = vld [vmem:[%s276 + $0x128] sm:$0xff]
      %v402 = vld [vmem:[%s276 + $0x130] sm:$0xff]
      %v403 = vld [vmem:[%s276 + $0x138] sm:$0xff]
      %v404 = vld [vmem:[%s276 + $0x140] sm:$0xff]
      %v405 = vld [vmem:[%s276 + $0x148] sm:$0xff]
      %v406 = vld [vmem:[%s276 + $0x150] sm:$0xff]
      %v407 = vld [vmem:[%s276 + $0x158] sm:$0xff]
      %v408 = vld [vmem:[%s276 + $0x160] sm:$0xff]
      %v409 = vld [vmem:[%s276 + $0x168] sm:$0xff]
      %v410 = vld [vmem:[%s276 + $0x170] sm:$0xff]
      %v411 = vld [vmem:[%s276 + $0x178] sm:$0xff]
      %v412 = vld [vmem:[%s276 + $0x180] sm:$0xff]
      %v413 = vld [vmem:[%s276 + $0x188] sm:$0xff]
      %v414 = vld [vmem:[%s276 + $0x190] sm:$0xff]
      %v415 = vld [vmem:[%s276 + $0x198] sm:$0xff]
      %v416 = vld [vmem:[%s276 + $0x1a0] sm:$0xff]
      %v417 = vld [vmem:[%s276 + $0x1a8] sm:$0xff]
      %v418 = vld [vmem:[%s276 + $0x1b0] sm:$0xff]
      %v419 = vld [vmem:[%s276 + $0x1b8] sm:$0xff]
      %v420 = vld [vmem:[%s276 + $0x1c0] sm:$0xff]
      %v421 = vld [vmem:[%s276 + $0x1c8] sm:$0xff]
      %v422 = vld [vmem:[%s276 + $0x1d0] sm:$0xff]
      %v423 = vld [vmem:[%s276 + $0x1d8] sm:$0xff]
      %v424 = vld [vmem:[%s276 + $0x1e0] sm:$0xff]
      %v425 = vld [vmem:[%s276 + $0x1e8] sm:$0xff]
      %v426 = vld [vmem:[%s276 + $0x1f0] sm:$0xff]
      %v427 = vld [vmem:[%s276 + $0x1f8] sm:$0xff]
      %v428 = vld [vmem:[%s276 + $0x200] sm:$0xff]
      %v429 = vld [vmem:[%s276 + $0x208] sm:$0xff]
      %v430 = vld [vmem:[%s276 + $0x210] sm:$0xff]
      %v431 = vld [vmem:[%s276 + $0x218] sm:$0xff]
      %v432 = vld [vmem:[%s276 + $0x220] sm:$0xff]
      %v433 = vld [vmem:[%s276 + $0x228] sm:$0xff]
      %v434 = vld [vmem:[%s276 + $0x230] sm:$0xff]
      %v435 = vld [vmem:[%s276 + $0x238] sm:$0xff]
      %v436 = vld [vmem:[%s3] sm:$0xff]
      %v437 = vld [vmem:[%s3 + $0x8] sm:$0xff]
      %v438 = vld [vmem:[%s3 + $0x10] sm:$0xff]
      %v439 = vld [vmem:[%s3 + $0x18] sm:$0xff]
      %vm440 = vcmask 261120
      %v442 = vsel %vm440, %v364, 0
      %v445 = vsel %vm440, %v365, 0
      %v448 = vsel %vm440, %v366, 0
      %v451 = vsel %vm440, %v367, 0
      %v454 = vsel %vm440, %v368, 0
      %v457 = vsel %vm440, %v369, 0
      %v460 = vsel %vm440, %v370, 0
      %v463 = vsel %vm440, %v371, 0
      %v466 = vsel %vm440, %v372, 0
      %v469 = vsel %vm440, %v373, 0
      %v472 = vsel %vm440, %v374, 0
      %v475 = vsel %vm440, %v375, 0
      %v478 = vsel %vm440, %v376, 0
      %v481 = vsel %vm440, %v377, 0
      %v484 = vsel %vm440, %v378, 0
      %v487 = vsel %vm440, %v379, 0
      %v490 = vsel %vm440, %v380, 0
      %v493 = vsel %vm440, %v381, 0
      %v496 = vsel %vm440, %v382, 0
      %v499 = vsel %vm440, %v383, 0
      %v502 = vsel %vm440, %v384, 0
      %v505 = vsel %vm440, %v385, 0
      %v508 = vsel %vm440, %v386, 0
      %v511 = vsel %vm440, %v387, 0
      %v514 = vsel %vm440, %v388, 0
      %v517 = vsel %vm440, %v389, 0
      %v520 = vsel %vm440, %v390, 0
      %v523 = vsel %vm440, %v391, 0
      %v526 = vsel %vm440, %v392, 0
      %v529 = vsel %vm440, %v393, 0
      %v532 = vsel %vm440, %v394, 0
      %v535 = vsel %vm440, %v395, 0
      %v538 = vsel %vm440, %v396, 0
      %v541 = vsel %vm440, %v397, 0
      %v544 = vsel %vm440, %v398, 0
      %v547 = vsel %vm440, %v399, 0
      %v550 = vsel %vm440, %v400, 0
      %v553 = vsel %vm440, %v401, 0
      %v556 = vsel %vm440, %v402, 0
      %v559 = vsel %vm440, %v403, 0
      %v562 = vsel %vm440, %v404, 0
      %v565 = vsel %vm440, %v405, 0
      %v568 = vsel %vm440, %v406, 0
      %v571 = vsel %vm440, %v407, 0
      %v574 = vsel %vm440, %v408, 0
      %v577 = vsel %vm440, %v409, 0
      %v580 = vsel %vm440, %v410, 0
      %v583 = vsel %vm440, %v411, 0
      %v586 = vsel %vm440, %v412, 0
      %v589 = vsel %vm440, %v413, 0
      %v592 = vsel %vm440, %v414, 0
      %v595 = vsel %vm440, %v415, 0
      %v598 = vsel %vm440, %v416, 0
      %v601 = vsel %vm440, %v417, 0
      %v604 = vsel %vm440, %v418, 0
      %v607 = vsel %vm440, %v419, 0
      %v610 = vsel %vm440, %v420, 0
      %v613 = vsel %vm440, %v421, 0
      %v616 = vsel %vm440, %v422, 0
      %v619 = vsel %vm440, %v423, 0
      %v622 = vsel %vm440, %v424, 0
      %v625 = vsel %vm440, %v425, 0
      %v628 = vsel %vm440, %v426, 0
      %v631 = vsel %vm440, %v427, 0
      %v634 = vsel %vm440, %v428, 0
      %v637 = vsel %vm440, %v429, 0
      %v640 = vsel %vm440, %v430, 0
      %v643 = vsel %vm440, %v431, 0
      %v646 = vsel %vm440, %v432, 0
      %v649 = vsel %vm440, %v433, 0
      %v652 = vsel %vm440, %v434, 0
      %v655 = vsel %vm440, %v435, 0
      %657 = vmatprep.subr.mxu0 0.0
      %658 = vmatpush1.msra.mxu0 %v436
      %659 = vmatprep.subr.mxu0 0.0
      %660 = vmatpush1.msra.mxu0 %v437
      %661 = vmatprep.subr.mxu0 0.0
      %662 = vmatpush1.msra.mxu0 %v438
      %663 = vmatprep.subr.mxu0 0.0
      %664 = vmatpush1.msra.mxu0 %v439
      %665 = vmatprep.subr.mxu0 0.0
      %666 = vmatpush1.msra.mxu0 0.0
      %667 = vmatprep.subr.mxu0 0.0
      %668 = vmatpush1.msra.mxu0 0.0
      %669 = vmatprep.subr.mxu0 0.0
      %670 = vmatpush1.msra.mxu0 0.0
      %671 = vmatprep.subr.mxu0 0.0
      %672 = vmatpush1.msra.mxu0 0.0
      %673 = vmatprep.subr.mxu0 0.0
      %674 = vmatpush1.msra.mxu0 0.0
      %675 = vmatprep.subr.mxu0 0.0
      %676 = vmatpush1.msra.mxu0 0.0
      %677 = vmatprep.subr.mxu0 0.0
      %678 = vmatpush1.msra.mxu0 0.0
      %679 = vmatprep.subr.mxu0 0.0
      %680 = vmatpush1.msra.mxu0 0.0
      %681 = vmatprep.subr.mxu0 0.0
      %682 = vmatpush1.msra.mxu0 0.0
      %683 = vmatprep.subr.mxu0 0.0
      %684 = vmatpush1.msra.mxu0 0.0
      %685 = vmatprep.subr.mxu0 0.0
      %686 = vmatpush1.msra.mxu0 0.0
      %687 = vmatprep.subr.mxu0 0.0
      %688 = vmatpush1.msra.mxu0 0.0
      %689 = vmatprep.subr.mxu0 0.0
      %690 = vmatpush1.msra.mxu0 0.0
      %691 = vmatprep.subr.mxu0 0.0
      %692 = vmatpush1.msra.mxu0 0.0
      %693 = vmatprep.subr.mxu0 0.0
      %694 = vmatpush1.msra.mxu0 0.0
      %695 = vmatprep.subr.mxu0 0.0
      %696 = vmatpush1.msra.mxu0 0.0
      %697 = vmatprep.subr.mxu0 0.0
      %698 = vmatpush1.msra.mxu0 0.0
      %699 = vmatprep.subr.mxu0 0.0
      %700 = vmatpush1.msra.mxu0 0.0
      %701 = vmatprep.subr.mxu0 0.0
      %702 = vmatpush1.msra.mxu0 0.0
      %703 = vmatprep.subr.mxu0 0.0
      %704 = vmatpush1.msra.mxu0 0.0
      %705 = vmatprep.subr.mxu0 0.0
      %706 = vmatpush1.msra.mxu0 0.0
      %707 = vmatprep.subr.mxu0 0.0
      %708 = vmatpush1.msra.mxu0 0.0
      %709 = vmatprep.subr.mxu0 0.0
      %710 = vmatpush1.msra.mxu0 0.0
      %711 = vmatprep.subr.mxu0 0.0
      %712 = vmatpush1.msra.mxu0 0.0
      %713 = vmatprep.subr.mxu0 0.0
      %714 = vmatpush1.msra.mxu0 0.0
      %715 = vmatprep.subr.mxu0 0.0
      %716 = vmatpush1.msra.mxu0 0.0
      %717 = vmatprep.subr.mxu0 0.0
      %718 = vmatpush1.msra.mxu0 0.0
      %719 = vmatprep.subr.mxu0 0.0
      %720 = vmatpush1.msra.mxu0 0.0
      %721 = vmatprep.mubr.f32.mxu0 0.0
      %722 = vmatmul.mubr.f32.gmra.mrb[0].mxu0 %v442
      %v723 = vpop.f32.mrb[0].mxu0
      %v724 = vadd.f32 0.0, %v723
      %v725 = vpop.f32.mrb[0].mxu0
      %726 = vmatprep.mubr.f32.mxu0 0.0
      %727 = vmatmul.mubr.f32.gmra.mrb[0].mxu0 %v445
      %v728 = vpop.f32.mrb[0].mxu0
      %v729 = vadd.f32 0.0, %v728
      %v730 = vpop.f32.mrb[0].mxu0
      %731 = vmatprep.mubr.f32.mxu0 0.0
      %732 = vmatmul.mubr.f32.gmra.mrb[0].mxu0 %v448
      %v733 = vpop.f32.mrb[0].mxu0
      %v734 = vadd.f32 0.0, %v733
      %v735 = vpop.f32.mrb[0].mxu0
      %736 = vmatprep.mubr.f32.mxu0 0.0
      %737 = vmatmul.mubr.f32.gmra.mrb[0].mxu0 %v451
      %v738 = vpop.f32.mrb[0].mxu0
      %v739 = vadd.f32 0.0, %v738
      %v740 = vpop.f32.mrb[0].mxu0
      %741 = vmatprep.mubr.f32.mxu0 0.0
      %742 = vmatmul.mubr.f32.gmra.mrb[0].mxu0 %v454
      %v743 = vpop.f32.mrb[0].mxu0
      %v744 = vadd.f32 0.0, %v743
      %v745 = vpop.f32.mrb[0].mxu0
      %746 = vmatprep.mubr.f32.mxu0 0.0
      %747 = vmatmul.mubr.f32.gmra.mrb[0].mxu0 %v457
      %v748 = vpop.f32.mrb[0].mxu0
      %v749 = vadd.f32 0.0, %v748
      %v750 = vpop.f32.mrb[0].mxu0
      %751 = vmatprep.mubr.f32.mxu0 0.0
      %752 = vmatmul.mubr.f32.gmra.mrb[0].mxu0 %v460
      %v753 = vpop.f32.mrb[0].mxu0
      %v754 = vadd.f32 0.0, %v753
      %v755 = vpop.f32.mrb[0].mxu0
      %756 = vmatprep.mubr.f32.mxu0 0.0
      %757 = vmatmul.mubr.f32.gmra.mrb[0].mxu0 %v463
      %v758 = vpop.f32.mrb[0].mxu0
      %v759 = vadd.f32 0.0, %v758
      %v760 = vpop.f32.mrb[0].mxu0
      %761 = vmatprep.mubr.f32.mxu0 0.0
      %762 = vmatmul.mubr.f32.gmra.mrb[0].mxu0 %v466
      %v763 = vpop.f32.mrb[0].mxu0
      %v764 = vadd.f32 0.0, %v763
      %v765 = vpop.f32.mrb[0].mxu0
      %766 = vmatprep.mubr.f32.mxu0 0.0
      %767 = vmatmul.mubr.f32.gmra.mrb[0].mxu0 %v469
      %v768 = vpop.f32.mrb[0].mxu0
      %v769 = vadd.f32 0.0, %v768
      %v770 = vpop.f32.mrb[0].mxu0
      %771 = vmatprep.mubr.f32.mxu0 0.0
      %772 = vmatmul.mubr.f32.gmra.mrb[0].mxu0 %v472
      %v773 = vpop.f32.mrb[0].mxu0
      %v774 = vadd.f32 0.0, %v773
      %v775 = vpop.f32.mrb[0].mxu0
      %776 = vmatprep.mubr.f32.mxu0 0.0
      %777 = vmatmul.mubr.f32.gmra.mrb[0].mxu0 %v475
      %v778 = vpop.f32.mrb[0].mxu0
      %v779 = vadd.f32 0.0, %v778
      %v780 = vpop.f32.mrb[0].mxu0
      %781 = vmatprep.mubr.f32.mxu0 0.0
      %782 = vmatmul.mubr.f32.gmra.mrb[0].mxu0 %v478
      %v783 = vpop.f32.mrb[0].mxu0
      %v784 = vadd.f32 0.0, %v783
      %v785 = vpop.f32.mrb[0].mxu0
      %786 = vmatprep.mubr.f32.mxu0 0.0
      %787 = vmatmul.mubr.f32.gmra.mrb[0].mxu0 %v481
      %v788 = vpop.f32.mrb[0].mxu0
      %v789 = vadd.f32 0.0, %v788
      %v790 = vpop.f32.mrb[0].mxu0
      %791 = vmatprep.mubr.f32.mxu0 0.0
      %792 = vmatmul.mubr.f32.gmra.mrb[0].mxu0 %v484
      %v793 = vpop.f32.mrb[0].mxu0
      %v794 = vadd.f32 0.0, %v793
      %v795 = vpop.f32.mrb[0].mxu0
      %796 = vmatprep.mubr.f32.mxu0 0.0
      %797 = vmatmul.mubr.f32.gmra.mrb[0].mxu0 %v487
      %v798 = vpop.f32.mrb[0].mxu0
      %v799 = vadd.f32 0.0, %v798
      %v800 = vpop.f32.mrb[0].mxu0
      %801 = vmatprep.mubr.f32.mxu0 0.0
      %802 = vmatmul.mubr.f32.gmra.mrb[0].mxu0 %v490
      %v803 = vpop.f32.mrb[0].mxu0
      %v804 = vadd.f32 0.0, %v803
      %v805 = vpop.f32.mrb[0].mxu0
      %806 = vmatprep.mubr.f32.mxu0 0.0
      %807 = vmatmul.mubr.f32.gmra.mrb[0].mxu0 %v493
      %v808 = vpop.f32.mrb[0].mxu0
      %v809 = vadd.f32 0.0, %v808
      %v810 = vpop.f32.mrb[0].mxu0
      %811 = vmatprep.mubr.f32.mxu0 0.0
      %812 = vmatmul.mubr.f32.gmra.mrb[0].mxu0 %v496
      %v813 = vpop.f32.mrb[0].mxu0
      %v814 = vadd.f32 0.0, %v813
      %v815 = vpop.f32.mrb[0].mxu0
      %816 = vmatprep.mubr.f32.mxu0 0.0
      %817 = vmatmul.mubr.f32.gmra.mrb[0].mxu0 %v499
      %v818 = vpop.f32.mrb[0].mxu0
      %v819 = vadd.f32 0.0, %v818
      %v820 = vpop.f32.mrb[0].mxu0
      %821 = vmatprep.mubr.f32.mxu0 0.0
      %822 = vmatmul.mubr.f32.gmra.mrb[0].mxu0 %v502
      %v823 = vpop.f32.mrb[0].mxu0
      %v824 = vadd.f32 0.0, %v823
      %v825 = vpop.f32.mrb[0].mxu0
      %826 = vmatprep.mubr.f32.mxu0 0.0
      %827 = vmatmul.mubr.f32.gmra.mrb[0].mxu0 %v505
      %v828 = vpop.f32.mrb[0].mxu0
      %v829 = vadd.f32 0.0, %v828
      %v830 = vpop.f32.mrb[0].mxu0
      %831 = vmatprep.mubr.f32.mxu0 0.0
      %832 = vmatmul.mubr.f32.gmra.mrb[0].mxu0 %v508
      %v833 = vpop.f32.mrb[0].mxu0
      %v834 = vadd.f32 0.0, %v833
      %v835 = vpop.f32.mrb[0].mxu0
      %836 = vmatprep.mubr.f32.mxu0 0.0
      %837 = vmatmul.mubr.f32.gmra.mrb[0].mxu0 %v511
      %v838 = vpop.f32.mrb[0].mxu0
      %v839 = vadd.f32 0.0, %v838
      %v840 = vpop.f32.mrb[0].mxu0
      %841 = vmatprep.mubr.f32.mxu0 0.0
      %842 = vmatmul.mubr.f32.gmra.mrb[0].mxu0 %v514
      %v843 = vpop.f32.mrb[0].mxu0
      %v844 = vadd.f32 0.0, %v843
      %v845 = vpop.f32.mrb[0].mxu0
      %846 = vmatprep.mubr.f32.mxu0 0.0
      %847 = vmatmul.mubr.f32.gmra.mrb[0].mxu0 %v517
      %v848 = vpop.f32.mrb[0].mxu0
      %v849 = vadd.f32 0.0, %v848
      %v850 = vpop.f32.mrb[0].mxu0
      %851 = vmatprep.mubr.f32.mxu0 0.0
      %852 = vmatmul.mubr.f32.gmra.mrb[0].mxu0 %v520
      %v853 = vpop.f32.mrb[0].mxu0
      %v854 = vadd.f32 0.0, %v853
      %v855 = vpop.f32.mrb[0].mxu0
      %856 = vmatprep.mubr.f32.mxu0 0.0
      %857 = vmatmul.mubr.f32.gmra.mrb[0].mxu0 %v523
      %v858 = vpop.f32.mrb[0].mxu0
      %v859 = vadd.f32 0.0, %v858
      %v860 = vpop.f32.mrb[0].mxu0
      %861 = vmatprep.mubr.f32.mxu0 0.0
      %862 = vmatmul.mubr.f32.gmra.mrb[0].mxu0 %v526
      %v863 = vpop.f32.mrb[0].mxu0
      %v864 = vadd.f32 0.0, %v863
      %v865 = vpop.f32.mrb[0].mxu0
      %866 = vmatprep.mubr.f32.mxu0 0.0
      %867 = vmatmul.mubr.f32.gmra.mrb[0].mxu0 %v529
      %v868 = vpop.f32.mrb[0].mxu0
      %v869 = vadd.f32 0.0, %v868
      %v870 = vpop.f32.mrb[0].mxu0
      %871 = vmatprep.mubr.f32.mxu0 0.0
      %872 = vmatmul.mubr.f32.gmra.mrb[0].mxu0 %v532
      %v873 = vpop.f32.mrb[0].mxu0
      %v874 = vadd.f32 0.0, %v873
      %v875 = vpop.f32.mrb[0].mxu0
      %876 = vmatprep.mubr.f32.mxu0 0.0
      %877 = vmatmul.mubr.f32.gmra.mrb[0].mxu0 %v535
      %v878 = vpop.f32.mrb[0].mxu0
      %v879 = vadd.f32 0.0, %v878
      %v880 = vpop.f32.mrb[0].mxu0
      %881 = vmatprep.mubr.f32.mxu0 0.0
      %882 = vmatmul.mubr.f32.gmra.mrb[0].mxu0 %v538
      %v883 = vpop.f32.mrb[0].mxu0
      %v884 = vadd.f32 0.0, %v883
      %v885 = vpop.f32.mrb[0].mxu0
      %886 = vmatprep.mubr.f32.mxu0 0.0
      %887 = vmatmul.mubr.f32.gmra.mrb[0].mxu0 %v541
      %v888 = vpop.f32.mrb[0].mxu0
      %v889 = vadd.f32 0.0, %v888
      %v890 = vpop.f32.mrb[0].mxu0
      %891 = vmatprep.mubr.f32.mxu0 0.0
      %892 = vmatmul.mubr.f32.gmra.mrb[0].mxu0 %v544
      %v893 = vpop.f32.mrb[0].mxu0
      %v894 = vadd.f32 0.0, %v893
      %v895 = vpop.f32.mrb[0].mxu0
      %896 = vmatprep.mubr.f32.mxu0 0.0
      %897 = vmatmul.mubr.f32.gmra.mrb[0].mxu0 %v547
      %v898 = vpop.f32.mrb[0].mxu0
      %v899 = vadd.f32 0.0, %v898
      %v900 = vpop.f32.mrb[0].mxu0
      %901 = vmatprep.mubr.f32.mxu0 0.0
      %902 = vmatmul.mubr.f32.gmra.mrb[0].mxu0 %v550
      %v903 = vpop.f32.mrb[0].mxu0
      %v904 = vadd.f32 0.0, %v903
      %v905 = vpop.f32.mrb[0].mxu0
      %906 = vmatprep.mubr.f32.mxu0 0.0
      %907 = vmatmul.mubr.f32.gmra.mrb[0].mxu0 %v553
      %v908 = vpop.f32.mrb[0].mxu0
      %v909 = vadd.f32 0.0, %v908
      %v910 = vpop.f32.mrb[0].mxu0
      %911 = vmatprep.mubr.f32.mxu0 0.0
      %912 = vmatmul.mubr.f32.gmra.mrb[0].mxu0 %v556
      %v913 = vpop.f32.mrb[0].mxu0
      %v914 = vadd.f32 0.0, %v913
      %v915 = vpop.f32.mrb[0].mxu0
      %916 = vmatprep.mubr.f32.mxu0 0.0
      %917 = vmatmul.mubr.f32.gmra.mrb[0].mxu0 %v559
      %v918 = vpop.f32.mrb[0].mxu0
      %v919 = vadd.f32 0.0, %v918
      %v920 = vpop.f32.mrb[0].mxu0
      %921 = vmatprep.mubr.f32.mxu0 0.0
      %922 = vmatmul.mubr.f32.gmra.mrb[0].mxu0 %v562
      %v923 = vpop.f32.mrb[0].mxu0
      %v924 = vadd.f32 0.0, %v923
      %v925 = vpop.f32.mrb[0].mxu0
      %926 = vmatprep.mubr.f32.mxu0 0.0
      %927 = vmatmul.mubr.f32.gmra.mrb[0].mxu0 %v565
      %v928 = vpop.f32.mrb[0].mxu0
      %v929 = vadd.f32 0.0, %v928
      %v930 = vpop.f32.mrb[0].mxu0
      %931 = vmatprep.mubr.f32.mxu0 0.0
      %932 = vmatmul.mubr.f32.gmra.mrb[0].mxu0 %v568
      %v933 = vpop.f32.mrb[0].mxu0
      %v934 = vadd.f32 0.0, %v933
      %v935 = vpop.f32.mrb[0].mxu0
      %936 = vmatprep.mubr.f32.mxu0 0.0
      %937 = vmatmul.mubr.f32.gmra.mrb[0].mxu0 %v571
      %v938 = vpop.f32.mrb[0].mxu0
      %v939 = vadd.f32 0.0, %v938
      %v940 = vpop.f32.mrb[0].mxu0
      %941 = vmatprep.mubr.f32.mxu0 0.0
      %942 = vmatmul.mubr.f32.gmra.mrb[0].mxu0 %v574
      %v943 = vpop.f32.mrb[0].mxu0
      %v944 = vadd.f32 0.0, %v943
      %v945 = vpop.f32.mrb[0].mxu0
      %946 = vmatprep.mubr.f32.mxu0 0.0
      %947 = vmatmul.mubr.f32.gmra.mrb[0].mxu0 %v577
      %v948 = vpop.f32.mrb[0].mxu0
      %v949 = vadd.f32 0.0, %v948
      %v950 = vpop.f32.mrb[0].mxu0
      %951 = vmatprep.mubr.f32.mxu0 0.0
      %952 = vmatmul.mubr.f32.gmra.mrb[0].mxu0 %v580
      %v953 = vpop.f32.mrb[0].mxu0
      %v954 = vadd.f32 0.0, %v953
      %v955 = vpop.f32.mrb[0].mxu0
      %956 = vmatprep.mubr.f32.mxu0 0.0
      %957 = vmatmul.mubr.f32.gmra.mrb[0].mxu0 %v583
      %v958 = vpop.f32.mrb[0].mxu0
      %v959 = vadd.f32 0.0, %v958
      %v960 = vpop.f32.mrb[0].mxu0
      %961 = vmatprep.mubr.f32.mxu0 0.0
      %962 = vmatmul.mubr.f32.gmra.mrb[0].mxu0 %v586
      %v963 = vpop.f32.mrb[0].mxu0
      %v964 = vadd.f32 0.0, %v963
      %v965 = vpop.f32.mrb[0].mxu0
      %966 = vmatprep.mubr.f32.mxu0 0.0
      %967 = vmatmul.mubr.f32.gmra.mrb[0].mxu0 %v589
      %v968 = vpop.f32.mrb[0].mxu0
      %v969 = vadd.f32 0.0, %v968
      %v970 = vpop.f32.mrb[0].mxu0
      %971 = vmatprep.mubr.f32.mxu0 0.0
      %972 = vmatmul.mubr.f32.gmra.mrb[0].mxu0 %v592
      %v973 = vpop.f32.mrb[0].mxu0
      %v974 = vadd.f32 0.0, %v973
      %v975 = vpop.f32.mrb[0].mxu0
      %976 = vmatprep.mubr.f32.mxu0 0.0
      %977 = vmatmul.mubr.f32.gmra.mrb[0].mxu0 %v595
      %v978 = vpop.f32.mrb[0].mxu0
      %v979 = vadd.f32 0.0, %v978
      %v980 = vpop.f32.mrb[0].mxu0
      %981 = vmatprep.mubr.f32.mxu0 0.0
      %982 = vmatmul.mubr.f32.gmra.mrb[0].mxu0 %v598
      %v983 = vpop.f32.mrb[0].mxu0
      %v984 = vadd.f32 0.0, %v983
      %v985 = vpop.f32.mrb[0].mxu0
      %986 = vmatprep.mubr.f32.mxu0 0.0
      %987 = vmatmul.mubr.f32.gmra.mrb[0].mxu0 %v601
      %v988 = vpop.f32.mrb[0].mxu0
      %v989 = vadd.f32 0.0, %v988
      %v990 = vpop.f32.mrb[0].mxu0
      %991 = vmatprep.mubr.f32.mxu0 0.0
      %992 = vmatmul.mubr.f32.gmra.mrb[0].mxu0 %v604
      %v993 = vpop.f32.mrb[0].mxu0
      %v994 = vadd.f32 0.0, %v993
      %v995 = vpop.f32.mrb[0].mxu0
      %996 = vmatprep.mubr.f32.mxu0 0.0
      %997 = vmatmul.mubr.f32.gmra.mrb[0].mxu0 %v607
      %v998 = vpop.f32.mrb[0].mxu0
      %v999 = vadd.f32 0.0, %v998
      %v1000 = vpop.f32.mrb[0].mxu0
      %1001 = vmatprep.mubr.f32.mxu0 0.0
      %1002 = vmatmul.mubr.f32.gmra.mrb[0].mxu0 %v610
      %v1003 = vpop.f32.mrb[0].mxu0
      %v1004 = vadd.f32 0.0, %v1003
      %v1005 = vpop.f32.mrb[0].mxu0
      %1006 = vmatprep.mubr.f32.mxu0 0.0
      %1007 = vmatmul.mubr.f32.gmra.mrb[0].mxu0 %v613
      %v1008 = vpop.f32.mrb[0].mxu0
      %v1009 = vadd.f32 0.0, %v1008
      %v1010 = vpop.f32.mrb[0].mxu0
      %1011 = vmatprep.mubr.f32.mxu0 0.0
      %1012 = vmatmul.mubr.f32.gmra.mrb[0].mxu0 %v616
      %v1013 = vpop.f32.mrb[0].mxu0
      %v1014 = vadd.f32 0.0, %v1013
      %v1015 = vpop.f32.mrb[0].mxu0
      %1016 = vmatprep.mubr.f32.mxu0 0.0
      %1017 = vmatmul.mubr.f32.gmra.mrb[0].mxu0 %v619
      %v1018 = vpop.f32.mrb[0].mxu0
      %v1019 = vadd.f32 0.0, %v1018
      %v1020 = vpop.f32.mrb[0].mxu0
      %1021 = vmatprep.mubr.f32.mxu0 0.0
      %1022 = vmatmul.mubr.f32.gmra.mrb[0].mxu0 %v622
      %v1023 = vpop.f32.mrb[0].mxu0
      %v1024 = vadd.f32 0.0, %v1023
      %v1025 = vpop.f32.mrb[0].mxu0
      %1026 = vmatprep.mubr.f32.mxu0 0.0
      %1027 = vmatmul.mubr.f32.gmra.mrb[0].mxu0 %v625
      %v1028 = vpop.f32.mrb[0].mxu0
      %v1029 = vadd.f32 0.0, %v1028
      %v1030 = vpop.f32.mrb[0].mxu0
      %1031 = vmatprep.mubr.f32.mxu0 0.0
      %1032 = vmatmul.mubr.f32.gmra.mrb[0].mxu0 %v628
      %v1033 = vpop.f32.mrb[0].mxu0
      %v1034 = vadd.f32 0.0, %v1033
      %v1035 = vpop.f32.mrb[0].mxu0
      %1036 = vmatprep.mubr.f32.mxu0 0.0
      %1037 = vmatmul.mubr.f32.gmra.mrb[0].mxu0 %v631
      %v1038 = vpop.f32.mrb[0].mxu0
      %v1039 = vadd.f32 0.0, %v1038
      %v1040 = vpop.f32.mrb[0].mxu0
      %1041 = vmatprep.mubr.f32.mxu0 0.0
      %1042 = vmatmul.mubr.f32.gmra.mrb[0].mxu0 %v634
      %v1043 = vpop.f32.mrb[0].mxu0
      %v1044 = vadd.f32 0.0, %v1043
      %v1045 = vpop.f32.mrb[0].mxu0
      %1046 = vmatprep.mubr.f32.mxu0 0.0
      %1047 = vmatmul.mubr.f32.gmra.mrb[0].mxu0 %v637
      %v1048 = vpop.f32.mrb[0].mxu0
      %v1049 = vadd.f32 0.0, %v1048
      %v1050 = vpop.f32.mrb[0].mxu0
      %1051 = vmatprep.mubr.f32.mxu0 0.0
      %1052 = vmatmul.mubr.f32.gmra.mrb[0].mxu0 %v640
      %v1053 = vpop.f32.mrb[0].mxu0
      %v1054 = vadd.f32 0.0, %v1053
      %v1055 = vpop.f32.mrb[0].mxu0
      %1056 = vmatprep.mubr.f32.mxu0 0.0
      %1057 = vmatmul.mubr.f32.gmra.mrb[0].mxu0 %v643
      %v1058 = vpop.f32.mrb[0].mxu0
      %v1059 = vadd.f32 0.0, %v1058
      %v1060 = vpop.f32.mrb[0].mxu0
      %1061 = vmatprep.mubr.f32.mxu0 0.0
      %1062 = vmatmul.mubr.f32.gmra.mrb[0].mxu0 %v646
      %v1063 = vpop.f32.mrb[0].mxu0
      %v1064 = vadd.f32 0.0, %v1063
      %v1065 = vpop.f32.mrb[0].mxu0
      %1066 = vmatprep.mubr.f32.mxu0 0.0
      %1067 = vmatmul.mubr.f32.gmra.mrb[0].mxu0 %v649
      %v1068 = vpop.f32.mrb[0].mxu0
      %v1069 = vadd.f32 0.0, %v1068
      %v1070 = vpop.f32.mrb[0].mxu0
      %1071 = vmatprep.mubr.f32.mxu0 0.0
      %1072 = vmatmul.mubr.f32.gmra.mrb[0].mxu0 %v652
      %v1073 = vpop.f32.mrb[0].mxu0
      %v1074 = vadd.f32 0.0, %v1073
      %v1075 = vpop.f32.mrb[0].mxu0
      %1076 = vmatprep.mubr.f32.mxu0 0.0
      %1077 = vmatmul.mubr.f32.gmra.mrb[0].mxu0 %v655
      %v1078 = vpop.f32.mrb[0].mxu0
      %v1079 = vadd.f32 0.0, %v1078
      %v1080 = vpop.f32.mrb[0].mxu0
      %1081 = vdwg.mxu0
      %v1083 = vsel %vm440, %v288, 0
      %v1086 = vsel %vm440, %v289, 0
      %v1089 = vsel %vm440, %v290, 0
      %v1092 = vsel %vm440, %v291, 0
      %v1095 = vsel %vm440, %v292, 0
      %v1098 = vsel %vm440, %v293, 0
      %v1101 = vsel %vm440, %v294, 0
      %v1104 = vsel %vm440, %v295, 0
      %v1107 = vsel %vm440, %v296, 0
      %v1110 = vsel %vm440, %v297, 0
      %v1113 = vsel %vm440, %v298, 0
      %v1116 = vsel %vm440, %v299, 0
      %v1119 = vsel %vm440, %v300, 0
      %v1122 = vsel %vm440, %v301, 0
      %v1125 = vsel %vm440, %v302, 0
      %v1128 = vsel %vm440, %v303, 0
      %v1131 = vsel %vm440, %v304, 0
      %v1134 = vsel %vm440, %v305, 0
      %v1137 = vsel %vm440, %v306, 0
      %v1140 = vsel %vm440, %v307, 0
      %v1143 = vsel %vm440, %v308, 0
      %v1146 = vsel %vm440, %v309, 0
      %v1149 = vsel %vm440, %v310, 0
      %v1152 = vsel %vm440, %v311, 0
      %v1155 = vsel %vm440, %v312, 0
      %v1158 = vsel %vm440, %v313, 0
      %v1161 = vsel %vm440, %v314, 0
      %v1164 = vsel %vm440, %v315, 0
      %v1167 = vsel %vm440, %v316, 0
      %v1170 = vsel %vm440, %v317, 0
      %v1173 = vsel %vm440, %v318, 0
      %v1176 = vsel %vm440, %v319, 0
      %v1179 = vsel %vm440, %v320, 0
      %v1182 = vsel %vm440, %v321, 0
      %v1185 = vsel %vm440, %v322, 0
      %v1188 = vsel %vm440, %v323, 0
      %v1191 = vsel %vm440, %v324, 0
      %v1194 = vsel %vm440, %v325, 0
      %v1197 = vsel %vm440, %v326, 0
      %v1200 = vsel %vm440, %v327, 0
      %v1203 = vsel %vm440, %v328, 0
      %v1206 = vsel %vm440, %v329, 0
      %v1209 = vsel %vm440, %v330, 0
      %v1212 = vsel %vm440, %v331, 0
      %v1215 = vsel %vm440, %v332, 0
      %v1218 = vsel %vm440, %v333, 0
      %v1221 = vsel %vm440, %v334, 0
      %v1224 = vsel %vm440, %v335, 0
      %v1227 = vsel %vm440, %v336, 0
      %v1230 = vsel %vm440, %v337, 0
      %v1233 = vsel %vm440, %v338, 0
      %v1236 = vsel %vm440, %v339, 0
      %v1239 = vsel %vm440, %v340, 0
      %v1242 = vsel %vm440, %v341, 0
      %v1245 = vsel %vm440, %v342, 0
      %v1248 = vsel %vm440, %v343, 0
      %v1251 = vsel %vm440, %v344, 0
      %v1254 = vsel %vm440, %v345, 0
      %v1257 = vsel %vm440, %v346, 0
      %v1260 = vsel %vm440, %v347, 0
      %v1263 = vsel %vm440, %v348, 0
      %v1266 = vsel %vm440, %v349, 0
      %v1269 = vsel %vm440, %v350, 0
      %v1272 = vsel %vm440, %v351, 0
      %v1275 = vsel %vm440, %v352, 0
      %v1278 = vsel %vm440, %v353, 0
      %v1281 = vsel %vm440, %v354, 0
      %v1284 = vsel %vm440, %v355, 0
      %v1287 = vsel %vm440, %v356, 0
      %v1290 = vsel %vm440, %v357, 0
      %v1293 = vsel %vm440, %v358, 0
      %v1296 = vsel %vm440, %v359, 0
      %1298 = vmatprep.subr.mxu0 0.0
      %1299 = vmatpush1.msra.mxu0 %v360
      %1300 = vmatprep.subr.mxu0 0.0
      %1301 = vmatpush1.msra.mxu0 %v361
      %1302 = vmatprep.subr.mxu0 0.0
      %1303 = vmatpush1.msra.mxu0 %v362
      %1304 = vmatprep.subr.mxu0 0.0
      %1305 = vmatpush1.msra.mxu0 %v363
      %1306 = vmatprep.subr.mxu0 0.0
      %1307 = vmatpush1.msra.mxu0 0.0
      %1308 = vmatprep.subr.mxu0 0.0
      %1309 = vmatpush1.msra.mxu0 0.0
      %1310 = vmatprep.subr.mxu0 0.0
      %1311 = vmatpush1.msra.mxu0 0.0
      %1312 = vmatprep.subr.mxu0 0.0
      %1313 = vmatpush1.msra.mxu0 0.0
      %1314 = vmatprep.subr.mxu0 0.0
      %1315 = vmatpush1.msra.mxu0 0.0
      %1316 = vmatprep.subr.mxu0 0.0
      %1317 = vmatpush1.msra.mxu0 0.0
      %1318 = vmatprep.subr.mxu0 0.0
      %1319 = vmatpush1.msra.mxu0 0.0
      %1320 = vmatprep.subr.mxu0 0.0
      %1321 = vmatpush1.msra.mxu0 0.0
      %1322 = vmatprep.subr.mxu0 0.0
      %1323 = vmatpush1.msra.mxu0 0.0
      %1324 = vmatprep.subr.mxu0 0.0
      %1325 = vmatpush1.msra.mxu0 0.0
      %1326 = vmatprep.subr.mxu0 0.0
      %1327 = vmatpush1.msra.mxu0 0.0
      %1328 = vmatprep.subr.mxu0 0.0
      %1329 = vmatpush1.msra.mxu0 0.0
      %1330 = vmatprep.subr.mxu0 0.0
      %1331 = vmatpush1.msra.mxu0 0.0
      %1332 = vmatprep.subr.mxu0 0.0
      %1333 = vmatpush1.msra.mxu0 0.0
      %1334 = vmatprep.subr.mxu0 0.0
      %1335 = vmatpush1.msra.mxu0 0.0
      %1336 = vmatprep.subr.mxu0 0.0
      %1337 = vmatpush1.msra.mxu0 0.0
      %1338 = vmatprep.subr.mxu0 0.0
      %1339 = vmatpush1.msra.mxu0 0.0
      %1340 = vmatprep.subr.mxu0 0.0
      %1341 = vmatpush1.msra.mxu0 0.0
      %1342 = vmatprep.subr.mxu0 0.0
      %1343 = vmatpush1.msra.mxu0 0.0
      %1344 = vmatprep.subr.mxu0 0.0
      %1345 = vmatpush1.msra.mxu0 0.0
      %1346 = vmatprep.subr.mxu0 0.0
      %1347 = vmatpush1.msra.mxu0 0.0
      %1348 = vmatprep.subr.mxu0 0.0
      %1349 = vmatpush1.msra.mxu0 0.0
      %1350 = vmatprep.subr.mxu0 0.0
      %1351 = vmatpush1.msra.mxu0 0.0
      %1352 = vmatprep.subr.mxu0 0.0
      %1353 = vmatpush1.msra.mxu0 0.0
      %1354 = vmatprep.subr.mxu0 0.0
      %1355 = vmatpush1.msra.mxu0 0.0
      %1356 = vmatprep.subr.mxu0 0.0
      %1357 = vmatpush1.msra.mxu0 0.0
      %1358 = vmatprep.subr.mxu0 0.0
      %1359 = vmatpush1.msra.mxu0 0.0
      %1360 = vmatprep.subr.mxu0 0.0
      %1361 = vmatpush1.msra.mxu0 0.0
      %1362 = vmatprep.mubr.f32.mxu0 0.0
      %1363 = vmatmul.mubr.f32.gmra.mrb[0].mxu0 %v1083
      %v1364 = vpop.f32.mrb[0].mxu0
      %v1365 = vadd.f32 %v724, %v1364
      %v1366 = vpop.f32.mrb[0].mxu0
      %1367 = vmatprep.mubr.f32.mxu0 0.0
      %1368 = vmatmul.mubr.f32.gmra.mrb[0].mxu0 %v1086
      %v1369 = vpop.f32.mrb[0].mxu0
      %v1370 = vadd.f32 %v729, %v1369
      %v1371 = vpop.f32.mrb[0].mxu0
      %1372 = vmatprep.mubr.f32.mxu0 0.0
      %1373 = vmatmul.mubr.f32.gmra.mrb[0].mxu0 %v1089
      %v1374 = vpop.f32.mrb[0].mxu0
      %v1375 = vadd.f32 %v734, %v1374
      %v1376 = vpop.f32.mrb[0].mxu0
      %1377 = vmatprep.mubr.f32.mxu0 0.0
      %1378 = vmatmul.mubr.f32.gmra.mrb[0].mxu0 %v1092
      %v1379 = vpop.f32.mrb[0].mxu0
      %v1380 = vadd.f32 %v739, %v1379
      %v1381 = vpop.f32.mrb[0].mxu0
      %1382 = vmatprep.mubr.f32.mxu0 0.0
      %1383 = vmatmul.mubr.f32.gmra.mrb[0].mxu0 %v1095
      %v1384 = vpop.f32.mrb[0].mxu0
      %v1385 = vadd.f32 %v744, %v1384
      %v1386 = vpop.f32.mrb[0].mxu0
      %1387 = vmatprep.mubr.f32.mxu0 0.0
      %1388 = vmatmul.mubr.f32.gmra.mrb[0].mxu0 %v1098
      %v1389 = vpop.f32.mrb[0].mxu0
      %v1390 = vadd.f32 %v749, %v1389
      %v1391 = vpop.f32.mrb[0].mxu0
      %1392 = vmatprep.mubr.f32.mxu0 0.0
      %1393 = vmatmul.mubr.f32.gmra.mrb[0].mxu0 %v1101
      %v1394 = vpop.f32.mrb[0].mxu0
      %v1395 = vadd.f32 %v754, %v1394
      %v1396 = vpop.f32.mrb[0].mxu0
      %1397 = vmatprep.mubr.f32.mxu0 0.0
      %1398 = vmatmul.mubr.f32.gmra.mrb[0].mxu0 %v1104
      %v1399 = vpop.f32.mrb[0].mxu0
      %v1400 = vadd.f32 %v759, %v1399
      %v1401 = vpop.f32.mrb[0].mxu0
      %1402 = vmatprep.mubr.f32.mxu0 0.0
      %1403 = vmatmul.mubr.f32.gmra.mrb[0].mxu0 %v1107
      %v1404 = vpop.f32.mrb[0].mxu0
      %v1405 = vadd.f32 %v764, %v1404
      %v1406 = vpop.f32.mrb[0].mxu0
      %1407 = vmatprep.mubr.f32.mxu0 0.0
      %1408 = vmatmul.mubr.f32.gmra.mrb[0].mxu0 %v1110
      %v1409 = vpop.f32.mrb[0].mxu0
      %v1410 = vadd.f32 %v769, %v1409
      %v1411 = vpop.f32.mrb[0].mxu0
      %1412 = vmatprep.mubr.f32.mxu0 0.0
      %1413 = vmatmul.mubr.f32.gmra.mrb[0].mxu0 %v1113
      %v1414 = vpop.f32.mrb[0].mxu0
      %v1415 = vadd.f32 %v774, %v1414
      %v1416 = vpop.f32.mrb[0].mxu0
      %1417 = vmatprep.mubr.f32.mxu0 0.0
      %1418 = vmatmul.mubr.f32.gmra.mrb[0].mxu0 %v1116
      %v1419 = vpop.f32.mrb[0].mxu0
      %v1420 = vadd.f32 %v779, %v1419
      %v1421 = vpop.f32.mrb[0].mxu0
      %1422 = vmatprep.mubr.f32.mxu0 0.0
      %1423 = vmatmul.mubr.f32.gmra.mrb[0].mxu0 %v1119
      %v1424 = vpop.f32.mrb[0].mxu0
      %v1425 = vadd.f32 %v784, %v1424
      %v1426 = vpop.f32.mrb[0].mxu0
      %1427 = vmatprep.mubr.f32.mxu0 0.0
      %1428 = vmatmul.mubr.f32.gmra.mrb[0].mxu0 %v1122
      %v1429 = vpop.f32.mrb[0].mxu0
      %v1430 = vadd.f32 %v789, %v1429
      %v1431 = vpop.f32.mrb[0].mxu0
      %1432 = vmatprep.mubr.f32.mxu0 0.0
      %1433 = vmatmul.mubr.f32.gmra.mrb[0].mxu0 %v1125
      %v1434 = vpop.f32.mrb[0].mxu0
      %v1435 = vadd.f32 %v794, %v1434
      %v1436 = vpop.f32.mrb[0].mxu0
      %1437 = vmatprep.mubr.f32.mxu0 0.0
      %1438 = vmatmul.mubr.f32.gmra.mrb[0].mxu0 %v1128
      %v1439 = vpop.f32.mrb[0].mxu0
      %v1440 = vadd.f32 %v799, %v1439
      %v1441 = vpop.f32.mrb[0].mxu0
      %1442 = vmatprep.mubr.f32.mxu0 0.0
      %1443 = vmatmul.mubr.f32.gmra.mrb[0].mxu0 %v1131
      %v1444 = vpop.f32.mrb[0].mxu0
      %v1445 = vadd.f32 %v804, %v1444
      %v1446 = vpop.f32.mrb[0].mxu0
      %1447 = vmatprep.mubr.f32.mxu0 0.0
      %1448 = vmatmul.mubr.f32.gmra.mrb[0].mxu0 %v1134
      %v1449 = vpop.f32.mrb[0].mxu0
      %v1450 = vadd.f32 %v809, %v1449
      %v1451 = vpop.f32.mrb[0].mxu0
      %1452 = vmatprep.mubr.f32.mxu0 0.0
      %1453 = vmatmul.mubr.f32.gmra.mrb[0].mxu0 %v1137
      %v1454 = vpop.f32.mrb[0].mxu0
      %v1455 = vadd.f32 %v814, %v1454
      %v1456 = vpop.f32.mrb[0].mxu0
      %1457 = vmatprep.mubr.f32.mxu0 0.0
      %1458 = vmatmul.mubr.f32.gmra.mrb[0].mxu0 %v1140
      %v1459 = vpop.f32.mrb[0].mxu0
      %v1460 = vadd.f32 %v819, %v1459
      %v1461 = vpop.f32.mrb[0].mxu0
      %1462 = vmatprep.mubr.f32.mxu0 0.0
      %1463 = vmatmul.mubr.f32.gmra.mrb[0].mxu0 %v1143
      %v1464 = vpop.f32.mrb[0].mxu0
      %v1465 = vadd.f32 %v824, %v1464
      %v1466 = vpop.f32.mrb[0].mxu0
      %1467 = vmatprep.mubr.f32.mxu0 0.0
      %1468 = vmatmul.mubr.f32.gmra.mrb[0].mxu0 %v1146
      %v1469 = vpop.f32.mrb[0].mxu0
      %v1470 = vadd.f32 %v829, %v1469
      %v1471 = vpop.f32.mrb[0].mxu0
      %1472 = vmatprep.mubr.f32.mxu0 0.0
      %1473 = vmatmul.mubr.f32.gmra.mrb[0].mxu0 %v1149
      %v1474 = vpop.f32.mrb[0].mxu0
      %v1475 = vadd.f32 %v834, %v1474
      %v1476 = vpop.f32.mrb[0].mxu0
      %1477 = vmatprep.mubr.f32.mxu0 0.0
      %1478 = vmatmul.mubr.f32.gmra.mrb[0].mxu0 %v1152
      %v1479 = vpop.f32.mrb[0].mxu0
      %v1480 = vadd.f32 %v839, %v1479
      %v1481 = vpop.f32.mrb[0].mxu0
      %1482 = vmatprep.mubr.f32.mxu0 0.0
      %1483 = vmatmul.mubr.f32.gmra.mrb[0].mxu0 %v1155
      %v1484 = vpop.f32.mrb[0].mxu0
      %v1485 = vadd.f32 %v844, %v1484
      %v1486 = vpop.f32.mrb[0].mxu0
      %1487 = vmatprep.mubr.f32.mxu0 0.0
      %1488 = vmatmul.mubr.f32.gmra.mrb[0].mxu0 %v1158
      %v1489 = vpop.f32.mrb[0].mxu0
      %v1490 = vadd.f32 %v849, %v1489
      %v1491 = vpop.f32.mrb[0].mxu0
      %1492 = vmatprep.mubr.f32.mxu0 0.0
      %1493 = vmatmul.mubr.f32.gmra.mrb[0].mxu0 %v1161
      %v1494 = vpop.f32.mrb[0].mxu0
      %v1495 = vadd.f32 %v854, %v1494
      %v1496 = vpop.f32.mrb[0].mxu0
      %1497 = vmatprep.mubr.f32.mxu0 0.0
      %1498 = vmatmul.mubr.f32.gmra.mrb[0].mxu0 %v1164
      %v1499 = vpop.f32.mrb[0].mxu0
      %v1500 = vadd.f32 %v859, %v1499
      %v1501 = vpop.f32.mrb[0].mxu0
      %1502 = vmatprep.mubr.f32.mxu0 0.0
      %1503 = vmatmul.mubr.f32.gmra.mrb[0].mxu0 %v1167
      %v1504 = vpop.f32.mrb[0].mxu0
      %v1505 = vadd.f32 %v864, %v1504
      %v1506 = vpop.f32.mrb[0].mxu0
      %1507 = vmatprep.mubr.f32.mxu0 0.0
      %1508 = vmatmul.mubr.f32.gmra.mrb[0].mxu0 %v1170
      %v1509 = vpop.f32.mrb[0].mxu0
      %v1510 = vadd.f32 %v869, %v1509
      %v1511 = vpop.f32.mrb[0].mxu0
      %1512 = vmatprep.mubr.f32.mxu0 0.0
      %1513 = vmatmul.mubr.f32.gmra.mrb[0].mxu0 %v1173
      %v1514 = vpop.f32.mrb[0].mxu0
      %v1515 = vadd.f32 %v874, %v1514
      %v1516 = vpop.f32.mrb[0].mxu0
      %1517 = vmatprep.mubr.f32.mxu0 0.0
      %1518 = vmatmul.mubr.f32.gmra.mrb[0].mxu0 %v1176
      %v1519 = vpop.f32.mrb[0].mxu0
      %v1520 = vadd.f32 %v879, %v1519
      %v1521 = vpop.f32.mrb[0].mxu0
      %1522 = vmatprep.mubr.f32.mxu0 0.0
      %1523 = vmatmul.mubr.f32.gmra.mrb[0].mxu0 %v1179
      %v1524 = vpop.f32.mrb[0].mxu0
      %v1525 = vadd.f32 %v884, %v1524
      %v1526 = vpop.f32.mrb[0].mxu0
      %1527 = vmatprep.mubr.f32.mxu0 0.0
      %1528 = vmatmul.mubr.f32.gmra.mrb[0].mxu0 %v1182
      %v1529 = vpop.f32.mrb[0].mxu0
      %v1530 = vadd.f32 %v889, %v1529
      %v1531 = vpop.f32.mrb[0].mxu0
      %1532 = vmatprep.mubr.f32.mxu0 0.0
      %1533 = vmatmul.mubr.f32.gmra.mrb[0].mxu0 %v1185
      %v1534 = vpop.f32.mrb[0].mxu0
      %v1535 = vadd.f32 %v894, %v1534
      %v1536 = vpop.f32.mrb[0].mxu0
      %1537 = vmatprep.mubr.f32.mxu0 0.0
      %1538 = vmatmul.mubr.f32.gmra.mrb[0].mxu0 %v1188
      %v1539 = vpop.f32.mrb[0].mxu0
      %v1540 = vadd.f32 %v899, %v1539
      %v1541 = vpop.f32.mrb[0].mxu0
      %1542 = vmatprep.mubr.f32.mxu0 0.0
      %1543 = vmatmul.mubr.f32.gmra.mrb[0].mxu0 %v1191
      %v1544 = vpop.f32.mrb[0].mxu0
      %v1545 = vadd.f32 %v904, %v1544
      %v1546 = vpop.f32.mrb[0].mxu0
      %1547 = vmatprep.mubr.f32.mxu0 0.0
      %1548 = vmatmul.mubr.f32.gmra.mrb[0].mxu0 %v1194
      %v1549 = vpop.f32.mrb[0].mxu0
      %v1550 = vadd.f32 %v909, %v1549
      %v1551 = vpop.f32.mrb[0].mxu0
      %1552 = vmatprep.mubr.f32.mxu0 0.0
      %1553 = vmatmul.mubr.f32.gmra.mrb[0].mxu0 %v1197
      %v1554 = vpop.f32.mrb[0].mxu0
      %v1555 = vadd.f32 %v914, %v1554
      %v1556 = vpop.f32.mrb[0].mxu0
      %1557 = vmatprep.mubr.f32.mxu0 0.0
      %1558 = vmatmul.mubr.f32.gmra.mrb[0].mxu0 %v1200
      %v1559 = vpop.f32.mrb[0].mxu0
      %v1560 = vadd.f32 %v919, %v1559
      %v1561 = vpop.f32.mrb[0].mxu0
      %1562 = vmatprep.mubr.f32.mxu0 0.0
      %1563 = vmatmul.mubr.f32.gmra.mrb[0].mxu0 %v1203
      %v1564 = vpop.f32.mrb[0].mxu0
      %v1565 = vadd.f32 %v924, %v1564
      %v1566 = vpop.f32.mrb[0].mxu0
      %1567 = vmatprep.mubr.f32.mxu0 0.0
      %1568 = vmatmul.mubr.f32.gmra.mrb[0].mxu0 %v1206
      %v1569 = vpop.f32.mrb[0].mxu0
      %v1570 = vadd.f32 %v929, %v1569
      %v1571 = vpop.f32.mrb[0].mxu0
      %1572 = vmatprep.mubr.f32.mxu0 0.0
      %1573 = vmatmul.mubr.f32.gmra.mrb[0].mxu0 %v1209
      %v1574 = vpop.f32.mrb[0].mxu0
      %v1575 = vadd.f32 %v934, %v1574
      %v1576 = vpop.f32.mrb[0].mxu0
      %1577 = vmatprep.mubr.f32.mxu0 0.0
      %1578 = vmatmul.mubr.f32.gmra.mrb[0].mxu0 %v1212
      %v1579 = vpop.f32.mrb[0].mxu0
      %v1580 = vadd.f32 %v939, %v1579
      %v1581 = vpop.f32.mrb[0].mxu0
      %1582 = vmatprep.mubr.f32.mxu0 0.0
      %1583 = vmatmul.mubr.f32.gmra.mrb[0].mxu0 %v1215
      %v1584 = vpop.f32.mrb[0].mxu0
      %v1585 = vadd.f32 %v944, %v1584
      %v1586 = vpop.f32.mrb[0].mxu0
      %1587 = vmatprep.mubr.f32.mxu0 0.0
      %1588 = vmatmul.mubr.f32.gmra.mrb[0].mxu0 %v1218
      %v1589 = vpop.f32.mrb[0].mxu0
      %v1590 = vadd.f32 %v949, %v1589
      %v1591 = vpop.f32.mrb[0].mxu0
      %1592 = vmatprep.mubr.f32.mxu0 0.0
      %1593 = vmatmul.mubr.f32.gmra.mrb[0].mxu0 %v1221
      %v1594 = vpop.f32.mrb[0].mxu0
      %v1595 = vadd.f32 %v954, %v1594
      %v1596 = vpop.f32.mrb[0].mxu0
      %1597 = vmatprep.mubr.f32.mxu0 0.0
      %1598 = vmatmul.mubr.f32.gmra.mrb[0].mxu0 %v1224
      %v1599 = vpop.f32.mrb[0].mxu0
      %v1600 = vadd.f32 %v959, %v1599
      %v1601 = vpop.f32.mrb[0].mxu0
      %1602 = vmatprep.mubr.f32.mxu0 0.0
      %1603 = vmatmul.mubr.f32.gmra.mrb[0].mxu0 %v1227
      %v1604 = vpop.f32.mrb[0].mxu0
      %v1605 = vadd.f32 %v964, %v1604
      %v1606 = vpop.f32.mrb[0].mxu0
      %1607 = vmatprep.mubr.f32.mxu0 0.0
      %1608 = vmatmul.mubr.f32.gmra.mrb[0].mxu0 %v1230
      %v1609 = vpop.f32.mrb[0].mxu0
      %v1610 = vadd.f32 %v969, %v1609
      %v1611 = vpop.f32.mrb[0].mxu0
      %1612 = vmatprep.mubr.f32.mxu0 0.0
      %1613 = vmatmul.mubr.f32.gmra.mrb[0].mxu0 %v1233
      %v1614 = vpop.f32.mrb[0].mxu0
      %v1615 = vadd.f32 %v974, %v1614
      %v1616 = vpop.f32.mrb[0].mxu0
      %1617 = vmatprep.mubr.f32.mxu0 0.0
      %1618 = vmatmul.mubr.f32.gmra.mrb[0].mxu0 %v1236
      %v1619 = vpop.f32.mrb[0].mxu0
      %v1620 = vadd.f32 %v979, %v1619
      %v1621 = vpop.f32.mrb[0].mxu0
      %1622 = vmatprep.mubr.f32.mxu0 0.0
      %1623 = vmatmul.mubr.f32.gmra.mrb[0].mxu0 %v1239
      %v1624 = vpop.f32.mrb[0].mxu0
      %v1625 = vadd.f32 %v984, %v1624
      %v1626 = vpop.f32.mrb[0].mxu0
      %1627 = vmatprep.mubr.f32.mxu0 0.0
      %1628 = vmatmul.mubr.f32.gmra.mrb[0].mxu0 %v1242
      %v1629 = vpop.f32.mrb[0].mxu0
      %v1630 = vadd.f32 %v989, %v1629
      %v1631 = vpop.f32.mrb[0].mxu0
      %1632 = vmatprep.mubr.f32.mxu0 0.0
      %1633 = vmatmul.mubr.f32.gmra.mrb[0].mxu0 %v1245
      %v1634 = vpop.f32.mrb[0].mxu0
      %v1635 = vadd.f32 %v994, %v1634
      %v1636 = vpop.f32.mrb[0].mxu0
      %1637 = vmatprep.mubr.f32.mxu0 0.0
      %1638 = vmatmul.mubr.f32.gmra.mrb[0].mxu0 %v1248
      %v1639 = vpop.f32.mrb[0].mxu0
      %v1640 = vadd.f32 %v999, %v1639
      %v1641 = vpop.f32.mrb[0].mxu0
      %1642 = vmatprep.mubr.f32.mxu0 0.0
      %1643 = vmatmul.mubr.f32.gmra.mrb[0].mxu0 %v1251
      %v1644 = vpop.f32.mrb[0].mxu0
      %v1645 = vadd.f32 %v1004, %v1644
      %v1646 = vpop.f32.mrb[0].mxu0
      %1647 = vmatprep.mubr.f32.mxu0 0.0
      %1648 = vmatmul.mubr.f32.gmra.mrb[0].mxu0 %v1254
      %v1649 = vpop.f32.mrb[0].mxu0
      %v1650 = vadd.f32 %v1009, %v1649
      %v1651 = vpop.f32.mrb[0].mxu0
      %1652 = vmatprep.mubr.f32.mxu0 0.0
      %1653 = vmatmul.mubr.f32.gmra.mrb[0].mxu0 %v1257
      %v1654 = vpop.f32.mrb[0].mxu0
      %v1655 = vadd.f32 %v1014, %v1654
      %v1656 = vpop.f32.mrb[0].mxu0
      %1657 = vmatprep.mubr.f32.mxu0 0.0
      %1658 = vmatmul.mubr.f32.gmra.mrb[0].mxu0 %v1260
      %v1659 = vpop.f32.mrb[0].mxu0
      %v1660 = vadd.f32 %v1019, %v1659
      %v1661 = vpop.f32.mrb[0].mxu0
      %1662 = vmatprep.mubr.f32.mxu0 0.0
      %1663 = vmatmul.mubr.f32.gmra.mrb[0].mxu0 %v1263
      %v1664 = vpop.f32.mrb[0].mxu0
      %v1665 = vadd.f32 %v1024, %v1664
      %v1666 = vpop.f32.mrb[0].mxu0
      %1667 = vmatprep.mubr.f32.mxu0 0.0
      %1668 = vmatmul.mubr.f32.gmra.mrb[0].mxu0 %v1266
      %v1669 = vpop.f32.mrb[0].mxu0
      %v1670 = vadd.f32 %v1029, %v1669
      %v1671 = vpop.f32.mrb[0].mxu0
      %1672 = vmatprep.mubr.f32.mxu0 0.0
      %1673 = vmatmul.mubr.f32.gmra.mrb[0].mxu0 %v1269
      %v1674 = vpop.f32.mrb[0].mxu0
      %v1675 = vadd.f32 %v1034, %v1674
      %v1676 = vpop.f32.mrb[0].mxu0
      %1677 = vmatprep.mubr.f32.mxu0 0.0
      %1678 = vmatmul.mubr.f32.gmra.mrb[0].mxu0 %v1272
      %v1679 = vpop.f32.mrb[0].mxu0
      %v1680 = vadd.f32 %v1039, %v1679
      %v1681 = vpop.f32.mrb[0].mxu0
      %1682 = vmatprep.mubr.f32.mxu0 0.0
      %1683 = vmatmul.mubr.f32.gmra.mrb[0].mxu0 %v1275
      %v1684 = vpop.f32.mrb[0].mxu0
      %v1685 = vadd.f32 %v1044, %v1684
      %v1686 = vpop.f32.mrb[0].mxu0
      %1687 = vmatprep.mubr.f32.mxu0 0.0
      %1688 = vmatmul.mubr.f32.gmra.mrb[0].mxu0 %v1278
      %v1689 = vpop.f32.mrb[0].mxu0
      %v1690 = vadd.f32 %v1049, %v1689
      %v1691 = vpop.f32.mrb[0].mxu0
      %1692 = vmatprep.mubr.f32.mxu0 0.0
      %1693 = vmatmul.mubr.f32.gmra.mrb[0].mxu0 %v1281
      %v1694 = vpop.f32.mrb[0].mxu0
      %v1695 = vadd.f32 %v1054, %v1694
      %v1696 = vpop.f32.mrb[0].mxu0
      %1697 = vmatprep.mubr.f32.mxu0 0.0
      %1698 = vmatmul.mubr.f32.gmra.mrb[0].mxu0 %v1284
      %v1699 = vpop.f32.mrb[0].mxu0
      %v1700 = vadd.f32 %v1059, %v1699
      %v1701 = vpop.f32.mrb[0].mxu0
      %1702 = vmatprep.mubr.f32.mxu0 0.0
      %1703 = vmatmul.mubr.f32.gmra.mrb[0].mxu0 %v1287
      %v1704 = vpop.f32.mrb[0].mxu0
      %v1705 = vadd.f32 %v1064, %v1704
      %v1706 = vpop.f32.mrb[0].mxu0
      %1707 = vmatprep.mubr.f32.mxu0 0.0
      %1708 = vmatmul.mubr.f32.gmra.mrb[0].mxu0 %v1290
      %v1709 = vpop.f32.mrb[0].mxu0
      %v1710 = vadd.f32 %v1069, %v1709
      %v1711 = vpop.f32.mrb[0].mxu0
      %1712 = vmatprep.mubr.f32.mxu0 0.0
      %1713 = vmatmul.mubr.f32.gmra.mrb[0].mxu0 %v1293
      %v1714 = vpop.f32.mrb[0].mxu0
      %v1715 = vadd.f32 %v1074, %v1714
      %v1716 = vpop.f32.mrb[0].mxu0
      %1717 = vmatprep.mubr.f32.mxu0 0.0
      %1718 = vmatmul.mubr.f32.gmra.mrb[0].mxu0 %v1296
      %v1719 = vpop.f32.mrb[0].mxu0
      %v1720 = vadd.f32 %v1079, %v1719
      %v1721 = vpop.f32.mrb[0].mxu0
      %1722 = vdwg.mxu0
      %v1723 = vld [vmem:[%s4] sm:$0x1]
      %v1724 = vlaneseq
      %v1725 = vshrl.u32 %v1724, 7
      %v1726 = vsub.s32 0, %v1725
      %v1727 = vrot.slane %v1723, %v1726
      %v1728 = vadd.f32 %v1365, %v1727
      %v1729 = vadd.f32 %v1370, %v1727
      %v1730 = vadd.f32 %v1375, %v1727
      %v1731 = vadd.f32 %v1380, %v1727
      %v1732 = vadd.f32 %v1385, %v1727
      %v1733 = vadd.f32 %v1390, %v1727
      %v1734 = vadd.f32 %v1395, %v1727
      %v1735 = vadd.f32 %v1400, %v1727
      %v1736 = vadd.f32 %v1405, %v1727
      %v1737 = vadd.f32 %v1410, %v1727
      %v1738 = vadd.f32 %v1415, %v1727
      %v1739 = vadd.f32 %v1420, %v1727
      %v1740 = vadd.f32 %v1425, %v1727
      %v1741 = vadd.f32 %v1430, %v1727
      %v1742 = vadd.f32 %v1435, %v1727
      %v1743 = vadd.f32 %v1440, %v1727
      %v1744 = vadd.f32 %v1445, %v1727
      %v1745 = vadd.f32 %v1450, %v1727
      %v1746 = vadd.f32 %v1455, %v1727
      %v1747 = vadd.f32 %v1460, %v1727
      %v1748 = vadd.f32 %v1465, %v1727
      %v1749 = vadd.f32 %v1470, %v1727
      %v1750 = vadd.f32 %v1475, %v1727
      %v1751 = vadd.f32 %v1480, %v1727
      %v1752 = vadd.f32 %v1485, %v1727
      %v1753 = vadd.f32 %v1490, %v1727
      %v1754 = vadd.f32 %v1495, %v1727
      %v1755 = vadd.f32 %v1500, %v1727
      %v1756 = vadd.f32 %v1505, %v1727
      %v1757 = vadd.f32 %v1510, %v1727
      %v1758 = vadd.f32 %v1515, %v1727
      %v1759 = vadd.f32 %v1520, %v1727
      %v1760 = vadd.f32 %v1525, %v1727
      %v1761 = vadd.f32 %v1530, %v1727
      %v1762 = vadd.f32 %v1535, %v1727
      %v1763 = vadd.f32 %v1540, %v1727
      %v1764 = vadd.f32 %v1545, %v1727
      %v1765 = vadd.f32 %v1550, %v1727
      %v1766 = vadd.f32 %v1555, %v1727
      %v1767 = vadd.f32 %v1560, %v1727
      %v1768 = vadd.f32 %v1565, %v1727
      %v1769 = vadd.f32 %v1570, %v1727
      %v1770 = vadd.f32 %v1575, %v1727
      %v1771 = vadd.f32 %v1580, %v1727
      %v1772 = vadd.f32 %v1585, %v1727
      %v1773 = vadd.f32 %v1590, %v1727
      %v1774 = vadd.f32 %v1595, %v1727
      %v1775 = vadd.f32 %v1600, %v1727
      %v1776 = vadd.f32 %v1605, %v1727
      %v1777 = vadd.f32 %v1610, %v1727
      %v1778 = vadd.f32 %v1615, %v1727
      %v1779 = vadd.f32 %v1620, %v1727
      %v1780 = vadd.f32 %v1625, %v1727
      %v1781 = vadd.f32 %v1630, %v1727
      %v1782 = vadd.f32 %v1635, %v1727
      %v1783 = vadd.f32 %v1640, %v1727
      %v1784 = vadd.f32 %v1645, %v1727
      %v1785 = vadd.f32 %v1650, %v1727
      %v1786 = vadd.f32 %v1655, %v1727
      %v1787 = vadd.f32 %v1660, %v1727
      %v1788 = vadd.f32 %v1665, %v1727
      %v1789 = vadd.f32 %v1670, %v1727
      %v1790 = vadd.f32 %v1675, %v1727
      %v1791 = vadd.f32 %v1680, %v1727
      %v1792 = vadd.f32 %v1685, %v1727
      %v1793 = vadd.f32 %v1690, %v1727
      %v1794 = vadd.f32 %v1695, %v1727
      %v1795 = vadd.f32 %v1700, %v1727
      %v1796 = vadd.f32 %v1705, %v1727
      %v1797 = vadd.f32 %v1710, %v1727
      %v1798 = vadd.f32 %v1715, %v1727
      %v1799 = vadd.f32 %v1720, %v1727
      %v1800 = vmax.f32 %v1728, 0.0
      %v1801 = vmax.f32 %v1729, 0.0
      %v1802 = vmax.f32 %v1730, 0.0
      %v1803 = vmax.f32 %v1731, 0.0
      %v1804 = vmax.f32 %v1732, 0.0
      %v1805 = vmax.f32 %v1733, 0.0
      %v1806 = vmax.f32 %v1734, 0.0
      %v1807 = vmax.f32 %v1735, 0.0
      %v1808 = vmax.f32 %v1736, 0.0
      %v1809 = vmax.f32 %v1737, 0.0
      %v1810 = vmax.f32 %v1738, 0.0
      %v1811 = vmax.f32 %v1739, 0.0
      %v1812 = vmax.f32 %v1740, 0.0
      %v1813 = vmax.f32 %v1741, 0.0
      %v1814 = vmax.f32 %v1742, 0.0
      %v1815 = vmax.f32 %v1743, 0.0
      %v1816 = vmax.f32 %v1744, 0.0
      %v1817 = vmax.f32 %v1745, 0.0
      %v1818 = vmax.f32 %v1746, 0.0
      %v1819 = vmax.f32 %v1747, 0.0
      %v1820 = vmax.f32 %v1748, 0.0
      %v1821 = vmax.f32 %v1749, 0.0
      %v1822 = vmax.f32 %v1750, 0.0
      %v1823 = vmax.f32 %v1751, 0.0
      %v1824 = vmax.f32 %v1752, 0.0
      %v1825 = vmax.f32 %v1753, 0.0
      %v1826 = vmax.f32 %v1754, 0.0
      %v1827 = vmax.f32 %v1755, 0.0
      %v1828 = vmax.f32 %v1756, 0.0
      %v1829 = vmax.f32 %v1757, 0.0
      %v1830 = vmax.f32 %v1758, 0.0
      %v1831 = vmax.f32 %v1759, 0.0
      %v1832 = vmax.f32 %v1760, 0.0
      %v1833 = vmax.f32 %v1761, 0.0
      %v1834 = vmax.f32 %v1762, 0.0
      %v1835 = vmax.f32 %v1763, 0.0
      %v1836 = vmax.f32 %v1764, 0.0
      %v1837 = vmax.f32 %v1765, 0.0
      %v1838 = vmax.f32 %v1766, 0.0
      %v1839 = vmax.f32 %v1767, 0.0
      %v1840 = vmax.f32 %v1768, 0.0
      %v1841 = vmax.f32 %v1769, 0.0
      %v1842 = vmax.f32 %v1770, 0.0
      %v1843 = vmax.f32 %v1771, 0.0
      %v1844 = vmax.f32 %v1772, 0.0
      %v1845 = vmax.f32 %v1773, 0.0
      %v1846 = vmax.f32 %v1774, 0.0
      %v1847 = vmax.f32 %v1775, 0.0
      %v1848 = vmax.f32 %v1776, 0.0
      %v1849 = vmax.f32 %v1777, 0.0
      %v1850 = vmax.f32 %v1778, 0.0
      %v1851 = vmax.f32 %v1779, 0.0
      %v1852 = vmax.f32 %v1780, 0.0
      %v1853 = vmax.f32 %v1781, 0.0
      %v1854 = vmax.f32 %v1782, 0.0
      %v1855 = vmax.f32 %v1783, 0.0
      %v1856 = vmax.f32 %v1784, 0.0
      %v1857 = vmax.f32 %v1785, 0.0
      %v1858 = vmax.f32 %v1786, 0.0
      %v1859 = vmax.f32 %v1787, 0.0
      %v1860 = vmax.f32 %v1788, 0.0
      %v1861 = vmax.f32 %v1789, 0.0
      %v1862 = vmax.f32 %v1790, 0.0
      %v1863 = vmax.f32 %v1791, 0.0
      %v1864 = vmax.f32 %v1792, 0.0
      %v1865 = vmax.f32 %v1793, 0.0
      %v1866 = vmax.f32 %v1794, 0.0
      %v1867 = vmax.f32 %v1795, 0.0
      %v1868 = vmax.f32 %v1796, 0.0
      %v1869 = vmax.f32 %v1797, 0.0
      %v1870 = vmax.f32 %v1798, 0.0
      %v1871 = vmax.f32 %v1799, 0.0
      %v1872 = vld [vmem:[%s4 + $0x1] sm:$0x1]
      %v1873 = vlaneseq
      %v1874 = vshrl.u32 %v1873, 7
      %v1875 = vsub.s32 0, %v1874
      %v1876 = vrot.slane %v1872, %v1875
      %v1877 = vmul.f32 %v1800, %v1876
      %v1878 = vmul.f32 %v1801, %v1876
      %v1879 = vmul.f32 %v1802, %v1876
      %v1880 = vmul.f32 %v1803, %v1876
      %v1881 = vmul.f32 %v1804, %v1876
      %v1882 = vmul.f32 %v1805, %v1876
      %v1883 = vmul.f32 %v1806, %v1876
      %v1884 = vmul.f32 %v1807, %v1876
      %v1885 = vmul.f32 %v1808, %v1876
      %v1886 = vmul.f32 %v1809, %v1876
      %v1887 = vmul.f32 %v1810, %v1876
      %v1888 = vmul.f32 %v1811, %v1876
      %v1889 = vmul.f32 %v1812, %v1876
      %v1890 = vmul.f32 %v1813, %v1876
      %v1891 = vmul.f32 %v1814, %v1876
      %v1892 = vmul.f32 %v1815, %v1876
      %v1893 = vmul.f32 %v1816, %v1876
      %v1894 = vmul.f32 %v1817, %v1876
      %v1895 = vmul.f32 %v1818, %v1876
      %v1896 = vmul.f32 %v1819, %v1876
      %v1897 = vmul.f32 %v1820, %v1876
      %v1898 = vmul.f32 %v1821, %v1876
      %v1899 = vmul.f32 %v1822, %v1876
      %v1900 = vmul.f32 %v1823, %v1876
      %v1901 = vmul.f32 %v1824, %v1876
      %v1902 = vmul.f32 %v1825, %v1876
      %v1903 = vmul.f32 %v1826, %v1876
      %v1904 = vmul.f32 %v1827, %v1876
      %v1905 = vmul.f32 %v1828, %v1876
      %v1906 = vmul.f32 %v1829, %v1876
      %v1907 = vmul.f32 %v1830, %v1876
      %v1908 = vmul.f32 %v1831, %v1876
      %v1909 = vmul.f32 %v1832, %v1876
      %v1910 = vmul.f32 %v1833, %v1876
      %v1911 = vmul.f32 %v1834, %v1876
      %v1912 = vmul.f32 %v1835, %v1876
      %v1913 = vmul.f32 %v1836, %v1876
      %v1914 = vmul.f32 %v1837, %v1876
      %v1915 = vmul.f32 %v1838, %v1876
      %v1916 = vmul.f32 %v1839, %v1876
      %v1917 = vmul.f32 %v1840, %v1876
      %v1918 = vmul.f32 %v1841, %v1876
      %v1919 = vmul.f32 %v1842, %v1876
      %v1920 = vmul.f32 %v1843, %v1876
      %v1921 = vmul.f32 %v1844, %v1876
      %v1922 = vmul.f32 %v1845, %v1876
      %v1923 = vmul.f32 %v1846, %v1876
      %v1924 = vmul.f32 %v1847, %v1876
      %v1925 = vmul.f32 %v1848, %v1876
      %v1926 = vmul.f32 %v1849, %v1876
      %v1927 = vmul.f32 %v1850, %v1876
      %v1928 = vmul.f32 %v1851, %v1876
      %v1929 = vmul.f32 %v1852, %v1876
      %v1930 = vmul.f32 %v1853, %v1876
      %v1931 = vmul.f32 %v1854, %v1876
      %v1932 = vmul.f32 %v1855, %v1876
      %v1933 = vmul.f32 %v1856, %v1876
      %v1934 = vmul.f32 %v1857, %v1876
      %v1935 = vmul.f32 %v1858, %v1876
      %v1936 = vmul.f32 %v1859, %v1876
      %v1937 = vmul.f32 %v1860, %v1876
      %v1938 = vmul.f32 %v1861, %v1876
      %v1939 = vmul.f32 %v1862, %v1876
      %v1940 = vmul.f32 %v1863, %v1876
      %v1941 = vmul.f32 %v1864, %v1876
      %v1942 = vmul.f32 %v1865, %v1876
      %v1943 = vmul.f32 %v1866, %v1876
      %v1944 = vmul.f32 %v1867, %v1876
      %v1945 = vmul.f32 %v1868, %v1876
      %v1946 = vmul.f32 %v1869, %v1876
      %v1947 = vmul.f32 %v1870, %v1876
      %v1948 = vmul.f32 %v1871, %v1876
      %1949 = vadd.xlane.f32.xlu0 %v1877
      %v1950 = vpop.xlane.xlu0 %1949
      %1951 = vadd.xlane.f32.xlu0 %v1878
      %v1952 = vpop.xlane.xlu0 %1951
      %1953 = vadd.xlane.f32.xlu0 %v1879
      %v1954 = vpop.xlane.xlu0 %1953
      %1955 = vadd.xlane.f32.xlu0 %v1880
      %v1956 = vpop.xlane.xlu0 %1955
      %1957 = vadd.xlane.f32.xlu0 %v1881
      %v1958 = vpop.xlane.xlu0 %1957
      %1959 = vadd.xlane.f32.xlu0 %v1882
      %v1960 = vpop.xlane.xlu0 %1959
      %1961 = vadd.xlane.f32.xlu0 %v1883
      %v1962 = vpop.xlane.xlu0 %1961
      %1963 = vadd.xlane.f32.xlu0 %v1884
      %v1964 = vpop.xlane.xlu0 %1963
      %1965 = vadd.xlane.f32.xlu0 %v1885
      %v1966 = vpop.xlane.xlu0 %1965
      %1967 = vadd.xlane.f32.xlu0 %v1886
      %v1968 = vpop.xlane.xlu0 %1967
      %1969 = vadd.xlane.f32.xlu0 %v1887
      %v1970 = vpop.xlane.xlu0 %1969
      %1971 = vadd.xlane.f32.xlu0 %v1888
      %v1972 = vpop.xlane.xlu0 %1971
      %1973 = vadd.xlane.f32.xlu0 %v1889
      %v1974 = vpop.xlane.xlu0 %1973
      %1975 = vadd.xlane.f32.xlu0 %v1890
      %v1976 = vpop.xlane.xlu0 %1975
      %1977 = vadd.xlane.f32.xlu0 %v1891
      %v1978 = vpop.xlane.xlu0 %1977
      %1979 = vadd.xlane.f32.xlu0 %v1892
      %v1980 = vpop.xlane.xlu0 %1979
      %1981 = vadd.xlane.f32.xlu0 %v1893
      %v1982 = vpop.xlane.xlu0 %1981
      %1983 = vadd.xlane.f32.xlu0 %v1894
      %v1984 = vpop.xlane.xlu0 %1983
      %1985 = vadd.xlane.f32.xlu0 %v1895
      %v1986 = vpop.xlane.xlu0 %1985
      %1987 = vadd.xlane.f32.xlu0 %v1896
      %v1988 = vpop.xlane.xlu0 %1987
      %1989 = vadd.xlane.f32.xlu0 %v1897
      %v1990 = vpop.xlane.xlu0 %1989
      %1991 = vadd.xlane.f32.xlu0 %v1898
      %v1992 = vpop.xlane.xlu0 %1991
      %1993 = vadd.xlane.f32.xlu0 %v1899
      %v1994 = vpop.xlane.xlu0 %1993
      %1995 = vadd.xlane.f32.xlu0 %v1900
      %v1996 = vpop.xlane.xlu0 %1995
      %1997 = vadd.xlane.f32.xlu0 %v1901
      %v1998 = vpop.xlane.xlu0 %1997
      %1999 = vadd.xlane.f32.xlu0 %v1902
      %v2000 = vpop.xlane.xlu0 %1999
      %2001 = vadd.xlane.f32.xlu0 %v1903
      %v2002 = vpop.xlane.xlu0 %2001
      %2003 = vadd.xlane.f32.xlu0 %v1904
      %v2004 = vpop.xlane.xlu0 %2003
      %2005 = vadd.xlane.f32.xlu0 %v1905
      %v2006 = vpop.xlane.xlu0 %2005
      %2007 = vadd.xlane.f32.xlu0 %v1906
      %v2008 = vpop.xlane.xlu0 %2007
      %2009 = vadd.xlane.f32.xlu0 %v1907
      %v2010 = vpop.xlane.xlu0 %2009
      %2011 = vadd.xlane.f32.xlu0 %v1908
      %v2012 = vpop.xlane.xlu0 %2011
      %2013 = vadd.xlane.f32.xlu0 %v1909
      %v2014 = vpop.xlane.xlu0 %2013
      %2015 = vadd.xlane.f32.xlu0 %v1910
      %v2016 = vpop.xlane.xlu0 %2015
      %2017 = vadd.xlane.f32.xlu0 %v1911
      %v2018 = vpop.xlane.xlu0 %2017
      %2019 = vadd.xlane.f32.xlu0 %v1912
      %v2020 = vpop.xlane.xlu0 %2019
      %2021 = vadd.xlane.f32.xlu0 %v1913
      %v2022 = vpop.xlane.xlu0 %2021
      %2023 = vadd.xlane.f32.xlu0 %v1914
      %v2024 = vpop.xlane.xlu0 %2023
      %2025 = vadd.xlane.f32.xlu0 %v1915
      %v2026 = vpop.xlane.xlu0 %2025
      %2027 = vadd.xlane.f32.xlu0 %v1916
      %v2028 = vpop.xlane.xlu0 %2027
      %2029 = vadd.xlane.f32.xlu0 %v1917
      %v2030 = vpop.xlane.xlu0 %2029
      %2031 = vadd.xlane.f32.xlu0 %v1918
      %v2032 = vpop.xlane.xlu0 %2031
      %2033 = vadd.xlane.f32.xlu0 %v1919
      %v2034 = vpop.xlane.xlu0 %2033
      %2035 = vadd.xlane.f32.xlu0 %v1920
      %v2036 = vpop.xlane.xlu0 %2035
      %2037 = vadd.xlane.f32.xlu0 %v1921
      %v2038 = vpop.xlane.xlu0 %2037
      %2039 = vadd.xlane.f32.xlu0 %v1922
      %v2040 = vpop.xlane.xlu0 %2039
      %2041 = vadd.xlane.f32.xlu0 %v1923
      %v2042 = vpop.xlane.xlu0 %2041
      %2043 = vadd.xlane.f32.xlu0 %v1924
      %v2044 = vpop.xlane.xlu0 %2043
      %2045 = vadd.xlane.f32.xlu0 %v1925
      %v2046 = vpop.xlane.xlu0 %2045
      %2047 = vadd.xlane.f32.xlu0 %v1926
      %v2048 = vpop.xlane.xlu0 %2047
      %2049 = vadd.xlane.f32.xlu0 %v1927
      %v2050 = vpop.xlane.xlu0 %2049
      %2051 = vadd.xlane.f32.xlu0 %v1928
      %v2052 = vpop.xlane.xlu0 %2051
      %2053 = vadd.xlane.f32.xlu0 %v1929
      %v2054 = vpop.xlane.xlu0 %2053
      %2055 = vadd.xlane.f32.xlu0 %v1930
      %v2056 = vpop.xlane.xlu0 %2055
      %2057 = vadd.xlane.f32.xlu0 %v1931
      %v2058 = vpop.xlane.xlu0 %2057
      %2059 = vadd.xlane.f32.xlu0 %v1932
      %v2060 = vpop.xlane.xlu0 %2059
      %2061 = vadd.xlane.f32.xlu0 %v1933
      %v2062 = vpop.xlane.xlu0 %2061
      %2063 = vadd.xlane.f32.xlu0 %v1934
      %v2064 = vpop.xlane.xlu0 %2063
      %2065 = vadd.xlane.f32.xlu0 %v1935
      %v2066 = vpop.xlane.xlu0 %2065
      %2067 = vadd.xlane.f32.xlu0 %v1936
      %v2068 = vpop.xlane.xlu0 %2067
      %2069 = vadd.xlane.f32.xlu0 %v1937
      %v2070 = vpop.xlane.xlu0 %2069
      %2071 = vadd.xlane.f32.xlu0 %v1938
      %v2072 = vpop.xlane.xlu0 %2071
      %2073 = vadd.xlane.f32.xlu0 %v1939
      %v2074 = vpop.xlane.xlu0 %2073
      %2075 = vadd.xlane.f32.xlu0 %v1940
      %v2076 = vpop.xlane.xlu0 %2075
      %2077 = vadd.xlane.f32.xlu0 %v1941
      %v2078 = vpop.xlane.xlu0 %2077
      %2079 = vadd.xlane.f32.xlu0 %v1942
      %v2080 = vpop.xlane.xlu0 %2079
      %2081 = vadd.xlane.f32.xlu0 %v1943
      %v2082 = vpop.xlane.xlu0 %2081
      %2083 = vadd.xlane.f32.xlu0 %v1944
      %v2084 = vpop.xlane.xlu0 %2083
      %2085 = vadd.xlane.f32.xlu0 %v1945
      %v2086 = vpop.xlane.xlu0 %2085
      %2087 = vadd.xlane.f32.xlu0 %v1946
      %v2088 = vpop.xlane.xlu0 %2087
      %2089 = vadd.xlane.f32.xlu0 %v1947
      %v2090 = vpop.xlane.xlu0 %2089
      %2091 = vadd.xlane.f32.xlu0 %v1948
      %v2092 = vpop.xlane.xlu0 %2091
      %vm2093 = vcmask 7168
      %2094 = vst.msk [vmem:[%s282] sm:$0xff] %vm2093, %v1950
      %2095 = vst.msk [vmem:[%s282 + $0x8] sm:$0xff] %vm2093, %v1952
      %2096 = vst.msk [vmem:[%s282 + $0x10] sm:$0xff] %vm2093, %v1954
      %2097 = vst.msk [vmem:[%s282 + $0x18] sm:$0xff] %vm2093, %v1956
      %2098 = vst.msk [vmem:[%s282 + $0x20] sm:$0xff] %vm2093, %v1958
      %2099 = vst.msk [vmem:[%s282 + $0x28] sm:$0xff] %vm2093, %v1960
      %2100 = vst.msk [vmem:[%s282 + $0x30] sm:$0xff] %vm2093, %v1962
      %2101 = vst.msk [vmem:[%s282 + $0x38] sm:$0xff] %vm2093, %v1964
      %2102 = vst.msk [vmem:[%s282 + $0x40] sm:$0xff] %vm2093, %v1966
      %2103 = vst.msk [vmem:[%s282 + $0x48] sm:$0xff] %vm2093, %v1968
      %2104 = vst.msk [vmem:[%s282 + $0x50] sm:$0xff] %vm2093, %v1970
      %2105 = vst.msk [vmem:[%s282 + $0x58] sm:$0xff] %vm2093, %v1972
      %2106 = vst.msk [vmem:[%s282 + $0x60] sm:$0xff] %vm2093, %v1974
      %2107 = vst.msk [vmem:[%s282 + $0x68] sm:$0xff] %vm2093, %v1976
      %2108 = vst.msk [vmem:[%s282 + $0x70] sm:$0xff] %vm2093, %v1978
      %2109 = vst.msk [vmem:[%s282 + $0x78] sm:$0xff] %vm2093, %v1980
      %2110 = vst.msk [vmem:[%s282 + $0x80] sm:$0xff] %vm2093, %v1982
      %2111 = vst.msk [vmem:[%s282 + $0x88] sm:$0xff] %vm2093, %v1984
      %2112 = vst.msk [vmem:[%s282 + $0x90] sm:$0xff] %vm2093, %v1986
      %2113 = vst.msk [vmem:[%s282 + $0x98] sm:$0xff] %vm2093, %v1988
      %2114 = vst.msk [vmem:[%s282 + $0xa0] sm:$0xff] %vm2093, %v1990
      %2115 = vst.msk [vmem:[%s282 + $0xa8] sm:$0xff] %vm2093, %v1992
      %2116 = vst.msk [vmem:[%s282 + $0xb0] sm:$0xff] %vm2093, %v1994
      %2117 = vst.msk [vmem:[%s282 + $0xb8] sm:$0xff] %vm2093, %v1996
      %2118 = vst.msk [vmem:[%s282 + $0xc0] sm:$0xff] %vm2093, %v1998
      %2119 = vst.msk [vmem:[%s282 + $0xc8] sm:$0xff] %vm2093, %v2000
      %2120 = vst.msk [vmem:[%s282 + $0xd0] sm:$0xff] %vm2093, %v2002
      %2121 = vst.msk [vmem:[%s282 + $0xd8] sm:$0xff] %vm2093, %v2004
      %2122 = vst.msk [vmem:[%s282 + $0xe0] sm:$0xff] %vm2093, %v2006
      %2123 = vst.msk [vmem:[%s282 + $0xe8] sm:$0xff] %vm2093, %v2008
      %2124 = vst.msk [vmem:[%s282 + $0xf0] sm:$0xff] %vm2093, %v2010
      %2125 = vst.msk [vmem:[%s282 + $0xf8] sm:$0xff] %vm2093, %v2012
      %2126 = vst.msk [vmem:[%s282 + $0x100] sm:$0xff] %vm2093, %v2014
      %2127 = vst.msk [vmem:[%s282 + $0x108] sm:$0xff] %vm2093, %v2016
      %2128 = vst.msk [vmem:[%s282 + $0x110] sm:$0xff] %vm2093, %v2018
      %2129 = vst.msk [vmem:[%s282 + $0x118] sm:$0xff] %vm2093, %v2020
      %2130 = vst.msk [vmem:[%s282 + $0x120] sm:$0xff] %vm2093, %v2022
      %2131 = vst.msk [vmem:[%s282 + $0x128] sm:$0xff] %vm2093, %v2024
      %2132 = vst.msk [vmem:[%s282 + $0x130] sm:$0xff] %vm2093, %v2026
      %2133 = vst.msk [vmem:[%s282 + $0x138] sm:$0xff] %vm2093, %v2028
      %2134 = vst.msk [vmem:[%s282 + $0x140] sm:$0xff] %vm2093, %v2030
      %2135 = vst.msk [vmem:[%s282 + $0x148] sm:$0xff] %vm2093, %v2032
      %2136 = vst.msk [vmem:[%s282 + $0x150] sm:$0xff] %vm2093, %v2034
      %2137 = vst.msk [vmem:[%s282 + $0x158] sm:$0xff] %vm2093, %v2036
      %2138 = vst.msk [vmem:[%s282 + $0x160] sm:$0xff] %vm2093, %v2038
      %2139 = vst.msk [vmem:[%s282 + $0x168] sm:$0xff] %vm2093, %v2040
      %2140 = vst.msk [vmem:[%s282 + $0x170] sm:$0xff] %vm2093, %v2042
      %2141 = vst.msk [vmem:[%s282 + $0x178] sm:$0xff] %vm2093, %v2044
      %2142 = vst.msk [vmem:[%s282 + $0x180] sm:$0xff] %vm2093, %v2046
      %2143 = vst.msk [vmem:[%s282 + $0x188] sm:$0xff] %vm2093, %v2048
      %2144 = vst.msk [vmem:[%s282 + $0x190] sm:$0xff] %vm2093, %v2050
      %2145 = vst.msk [vmem:[%s282 + $0x198] sm:$0xff] %vm2093, %v2052
      %2146 = vst.msk [vmem:[%s282 + $0x1a0] sm:$0xff] %vm2093, %v2054
      %2147 = vst.msk [vmem:[%s282 + $0x1a8] sm:$0xff] %vm2093, %v2056
      %2148 = vst.msk [vmem:[%s282 + $0x1b0] sm:$0xff] %vm2093, %v2058
      %2149 = vst.msk [vmem:[%s282 + $0x1b8] sm:$0xff] %vm2093, %v2060
      %2150 = vst.msk [vmem:[%s282 + $0x1c0] sm:$0xff] %vm2093, %v2062
      %2151 = vst.msk [vmem:[%s282 + $0x1c8] sm:$0xff] %vm2093, %v2064
      %2152 = vst.msk [vmem:[%s282 + $0x1d0] sm:$0xff] %vm2093, %v2066
      %2153 = vst.msk [vmem:[%s282 + $0x1d8] sm:$0xff] %vm2093, %v2068
      %2154 = vst.msk [vmem:[%s282 + $0x1e0] sm:$0xff] %vm2093, %v2070
      %2155 = vst.msk [vmem:[%s282 + $0x1e8] sm:$0xff] %vm2093, %v2072
      %2156 = vst.msk [vmem:[%s282 + $0x1f0] sm:$0xff] %vm2093, %v2074
      %2157 = vst.msk [vmem:[%s282 + $0x1f8] sm:$0xff] %vm2093, %v2076
      %2158 = vst.msk [vmem:[%s282 + $0x200] sm:$0xff] %vm2093, %v2078
      %2159 = vst.msk [vmem:[%s282 + $0x208] sm:$0xff] %vm2093, %v2080
      %2160 = vst.msk [vmem:[%s282 + $0x210] sm:$0xff] %vm2093, %v2082
      %2161 = vst.msk [vmem:[%s282 + $0x218] sm:$0xff] %vm2093, %v2084
      %2162 = vst.msk [vmem:[%s282 + $0x220] sm:$0xff] %vm2093, %v2086
      %2163 = vst.msk [vmem:[%s282 + $0x228] sm:$0xff] %vm2093, %v2088
      %2164 = vst.msk [vmem:[%s282 + $0x230] sm:$0xff] %vm2093, %v2090
      %2165 = vst.msk [vmem:[%s282 + $0x238] sm:$0xff] %vm2093, %v2092
      %v2166 = vadd.f32 %v1950, %v1952
      %v2167 = vadd.f32 %v2166, %v1954
      %v2168 = vadd.f32 %v2167, %v1956
      %v2169 = vadd.f32 %v2168, %v1958
      %v2170 = vadd.f32 %v2169, %v1960
      %v2171 = vadd.f32 %v2170, %v1962
      %v2172 = vadd.f32 %v2171, %v1964
      %v2173 = vadd.f32 %v2172, %v1966
      %v2174 = vadd.f32 %v2173, %v1968
      %v2175 = vadd.f32 %v2174, %v1970
      %v2176 = vadd.f32 %v2175, %v1972
      %v2177 = vadd.f32 %v2176, %v1974
      %v2178 = vadd.f32 %v2177, %v1976
      %v2179 = vadd.f32 %v2178, %v1978
      %v2180 = vadd.f32 %v2179, %v1980
      %v2181 = vadd.f32 %v2180, %v1982
      %v2182 = vadd.f32 %v2181, %v1984
      %v2183 = vadd.f32 %v2182, %v1986
      %v2184 = vadd.f32 %v2183, %v1988
      %v2185 = vadd.f32 %v2184, %v1990
      %v2186 = vadd.f32 %v2185, %v1992
      %v2187 = vadd.f32 %v2186, %v1994
      %v2188 = vadd.f32 %v2187, %v1996
      %v2189 = vadd.f32 %v2188, %v1998
      %v2190 = vadd.f32 %v2189, %v2000
      %v2191 = vadd.f32 %v2190, %v2002
      %v2192 = vadd.f32 %v2191, %v2004
      %v2193 = vadd.f32 %v2192, %v2006
      %v2194 = vadd.f32 %v2193, %v2008
      %v2195 = vadd.f32 %v2194, %v2010
      %v2196 = vadd.f32 %v2195, %v2012
      %v2197 = vadd.f32 %v2196, %v2014
      %v2198 = vadd.f32 %v2197, %v2016
      %v2199 = vadd.f32 %v2198, %v2018
      %v2200 = vadd.f32 %v2199, %v2020
      %v2201 = vadd.f32 %v2200, %v2022
      %v2202 = vadd.f32 %v2201, %v2024
      %v2203 = vadd.f32 %v2202, %v2026
      %v2204 = vadd.f32 %v2203, %v2028
      %v2205 = vadd.f32 %v2204, %v2030
      %v2206 = vadd.f32 %v2205, %v2032
      %v2207 = vadd.f32 %v2206, %v2034
      %v2208 = vadd.f32 %v2207, %v2036
      %v2209 = vadd.f32 %v2208, %v2038
      %v2210 = vadd.f32 %v2209, %v2040
      %v2211 = vadd.f32 %v2210, %v2042
      %v2212 = vadd.f32 %v2211, %v2044
      %v2213 = vadd.f32 %v2212, %v2046
      %v2214 = vadd.f32 %v2213, %v2048
      %v2215 = vadd.f32 %v2214, %v2050
      %v2216 = vadd.f32 %v2215, %v2052
      %v2217 = vadd.f32 %v2216, %v2054
      %v2218 = vadd.f32 %v2217, %v2056
      %v2219 = vadd.f32 %v2218, %v2058
      %v2220 = vadd.f32 %v2219, %v2060
      %v2221 = vadd.f32 %v2220, %v2062
      %v2222 = vadd.f32 %v2221, %v2064
      %v2223 = vadd.f32 %v2222, %v2066
      %v2224 = vadd.f32 %v2223, %v2068
      %v2225 = vadd.f32 %v2224, %v2070
      %v2226 = vadd.f32 %v2225, %v2072
      %v2227 = vadd.f32 %v2226, %v2074
      %v2228 = vadd.f32 %v2227, %v2076
      %v2229 = vadd.f32 %v2228, %v2078
      %v2230 = vadd.f32 %v2229, %v2080
      %v2231 = vadd.f32 %v2230, %v2082
      %v2232 = vadd.f32 %v2231, %v2084
      %v2233 = vadd.f32 %v2232, %v2086
      %v2234 = vadd.f32 %v2233, %v2088
      %v2235 = vadd.f32 %v2234, %v2090
      %v2236 = vadd.f32 %v2235, %v2092
      %v2237 = vrot.slane %v2236, 4
      %v2238 = vadd.f32 %v2236, %v2237
      %v2239 = vrot.slane %v2238, 2
      %v2240 = vadd.f32 %v2238, %v2239
      %v2241 = vrot.slane %v2240, 1
      %v2242 = vadd.f32 %v2240, %v2241
      %v2243 = vmul.f32 %v1950, %v1950
      %v2244 = vmul.f32 %v1952, %v1952
      %v2245 = vmul.f32 %v1954, %v1954
      %v2246 = vmul.f32 %v1956, %v1956
      %v2247 = vmul.f32 %v1958, %v1958
      %v2248 = vmul.f32 %v1960, %v1960
      %v2249 = vmul.f32 %v1962, %v1962
      %v2250 = vmul.f32 %v1964, %v1964
      %v2251 = vmul.f32 %v1966, %v1966
      %v2252 = vmul.f32 %v1968, %v1968
      %v2253 = vmul.f32 %v1970, %v1970
      %v2254 = vmul.f32 %v1972, %v1972
      %v2255 = vmul.f32 %v1974, %v1974
      %v2256 = vmul.f32 %v1976, %v1976
      %v2257 = vmul.f32 %v1978, %v1978
      %v2258 = vmul.f32 %v1980, %v1980
      %v2259 = vmul.f32 %v1982, %v1982
      %v2260 = vmul.f32 %v1984, %v1984
      %v2261 = vmul.f32 %v1986, %v1986
      %v2262 = vmul.f32 %v1988, %v1988
      %v2263 = vmul.f32 %v1990, %v1990
      %v2264 = vmul.f32 %v1992, %v1992
      %v2265 = vmul.f32 %v1994, %v1994
      %v2266 = vmul.f32 %v1996, %v1996
      %v2267 = vmul.f32 %v1998, %v1998
      %v2268 = vmul.f32 %v2000, %v2000
      %v2269 = vmul.f32 %v2002, %v2002
      %v2270 = vmul.f32 %v2004, %v2004
      %v2271 = vmul.f32 %v2006, %v2006
      %v2272 = vmul.f32 %v2008, %v2008
      %v2273 = vmul.f32 %v2010, %v2010
      %v2274 = vmul.f32 %v2012, %v2012
      %v2275 = vmul.f32 %v2014, %v2014
      %v2276 = vmul.f32 %v2016, %v2016
      %v2277 = vmul.f32 %v2018, %v2018
      %v2278 = vmul.f32 %v2020, %v2020
      %v2279 = vmul.f32 %v2022, %v2022
      %v2280 = vmul.f32 %v2024, %v2024
      %v2281 = vmul.f32 %v2026, %v2026
      %v2282 = vmul.f32 %v2028, %v2028
      %v2283 = vmul.f32 %v2030, %v2030
      %v2284 = vmul.f32 %v2032, %v2032
      %v2285 = vmul.f32 %v2034, %v2034
      %v2286 = vmul.f32 %v2036, %v2036
      %v2287 = vmul.f32 %v2038, %v2038
      %v2288 = vmul.f32 %v2040, %v2040
      %v2289 = vmul.f32 %v2042, %v2042
      %v2290 = vmul.f32 %v2044, %v2044
      %v2291 = vmul.f32 %v2046, %v2046
      %v2292 = vmul.f32 %v2048, %v2048
      %v2293 = vmul.f32 %v2050, %v2050
      %v2294 = vmul.f32 %v2052, %v2052
      %v2295 = vmul.f32 %v2054, %v2054
      %v2296 = vmul.f32 %v2056, %v2056
      %v2297 = vmul.f32 %v2058, %v2058
      %v2298 = vmul.f32 %v2060, %v2060
      %v2299 = vmul.f32 %v2062, %v2062
      %v2300 = vmul.f32 %v2064, %v2064
      %v2301 = vmul.f32 %v2066, %v2066
      %v2302 = vmul.f32 %v2068, %v2068
      %v2303 = vmul.f32 %v2070, %v2070
      %v2304 = vmul.f32 %v2072, %v2072
      %v2305 = vmul.f32 %v2074, %v2074
      %v2306 = vmul.f32 %v2076, %v2076
      %v2307 = vmul.f32 %v2078, %v2078
      %v2308 = vmul.f32 %v2080, %v2080
      %v2309 = vmul.f32 %v2082, %v2082
      %v2310 = vmul.f32 %v2084, %v2084
      %v2311 = vmul.f32 %v2086, %v2086
      %v2312 = vmul.f32 %v2088, %v2088
      %v2313 = vmul.f32 %v2090, %v2090
      %v2314 = vmul.f32 %v2092, %v2092
      %v2315 = vadd.f32 %v2243, %v2244
      %v2316 = vadd.f32 %v2315, %v2245
      %v2317 = vadd.f32 %v2316, %v2246
      %v2318 = vadd.f32 %v2317, %v2247
      %v2319 = vadd.f32 %v2318, %v2248
      %v2320 = vadd.f32 %v2319, %v2249
      %v2321 = vadd.f32 %v2320, %v2250
      %v2322 = vadd.f32 %v2321, %v2251
      %v2323 = vadd.f32 %v2322, %v2252
      %v2324 = vadd.f32 %v2323, %v2253
      %v2325 = vadd.f32 %v2324, %v2254
      %v2326 = vadd.f32 %v2325, %v2255
      %v2327 = vadd.f32 %v2326, %v2256
      %v2328 = vadd.f32 %v2327, %v2257
      %v2329 = vadd.f32 %v2328, %v2258
      %v2330 = vadd.f32 %v2329, %v2259
      %v2331 = vadd.f32 %v2330, %v2260
      %v2332 = vadd.f32 %v2331, %v2261
      %v2333 = vadd.f32 %v2332, %v2262
      %v2334 = vadd.f32 %v2333, %v2263
      %v2335 = vadd.f32 %v2334, %v2264
      %v2336 = vadd.f32 %v2335, %v2265
      %v2337 = vadd.f32 %v2336, %v2266
      %v2338 = vadd.f32 %v2337, %v2267
      %v2339 = vadd.f32 %v2338, %v2268
      %v2340 = vadd.f32 %v2339, %v2269
      %v2341 = vadd.f32 %v2340, %v2270
      %v2342 = vadd.f32 %v2341, %v2271
      %v2343 = vadd.f32 %v2342, %v2272
      %v2344 = vadd.f32 %v2343, %v2273
      %v2345 = vadd.f32 %v2344, %v2274
      %v2346 = vadd.f32 %v2345, %v2275
      %v2347 = vadd.f32 %v2346, %v2276
      %v2348 = vadd.f32 %v2347, %v2277
      %v2349 = vadd.f32 %v2348, %v2278
      %v2350 = vadd.f32 %v2349, %v2279
      %v2351 = vadd.f32 %v2350, %v2280
      %v2352 = vadd.f32 %v2351, %v2281
      %v2353 = vadd.f32 %v2352, %v2282
      %v2354 = vadd.f32 %v2353, %v2283
      %v2355 = vadd.f32 %v2354, %v2284
      %v2356 = vadd.f32 %v2355, %v2285
      %v2357 = vadd.f32 %v2356, %v2286
      %v2358 = vadd.f32 %v2357, %v2287
      %v2359 = vadd.f32 %v2358, %v2288
      %v2360 = vadd.f32 %v2359, %v2289
      %v2361 = vadd.f32 %v2360, %v2290
      %v2362 = vadd.f32 %v2361, %v2291
      %v2363 = vadd.f32 %v2362, %v2292
      %v2364 = vadd.f32 %v2363, %v2293
      %v2365 = vadd.f32 %v2364, %v2294
      %v2366 = vadd.f32 %v2365, %v2295
      %v2367 = vadd.f32 %v2366, %v2296
      %v2368 = vadd.f32 %v2367, %v2297
      %v2369 = vadd.f32 %v2368, %v2298
      %v2370 = vadd.f32 %v2369, %v2299
      %v2371 = vadd.f32 %v2370, %v2300
      %v2372 = vadd.f32 %v2371, %v2301
      %v2373 = vadd.f32 %v2372, %v2302
      %v2374 = vadd.f32 %v2373, %v2303
      %v2375 = vadd.f32 %v2374, %v2304
      %v2376 = vadd.f32 %v2375, %v2305
      %v2377 = vadd.f32 %v2376, %v2306
      %v2378 = vadd.f32 %v2377, %v2307
      %v2379 = vadd.f32 %v2378, %v2308
      %v2380 = vadd.f32 %v2379, %v2309
      %v2381 = vadd.f32 %v2380, %v2310
      %v2382 = vadd.f32 %v2381, %v2311
      %v2383 = vadd.f32 %v2382, %v2312
      %v2384 = vadd.f32 %v2383, %v2313
      %v2385 = vadd.f32 %v2384, %v2314
      %v2386 = vrot.slane %v2385, 4
      %v2387 = vadd.f32 %v2385, %v2386
      %v2388 = vrot.slane %v2387, 2
      %v2389 = vadd.f32 %v2387, %v2388
      %v2390 = vrot.slane %v2389, 1
      %v2391 = vadd.f32 %v2389, %v2390
      %vm2392 = vcmask 1040384
      %v2393 = vsel %vm2392, %v2242, %v2391
      %vm2394 = vcmask 1024
      %2395 = vst.msk [vmem:[%s287] sm:$0x3] %vm2394, %v2393
      %s2396 = smul.u32 72, %s18
      %p2397 = scmp.lt.s32.totalorder %s2396, 143
      %s2398 = scalar_select %p2397, %s2396, 143
      %s2399 = smul.addr %s2398, 8
      %s2400 = scalar_lea.vmem %s5, %s2399
      %p2401 = scmp.lt.s32.totalorder %s18, 1
      %s2402 = scalar_select %p2401, %s18, 1
      %s2403 = smul.addr %s2402, 2
      %s2404 = scalar_lea.vmem %s6, %s2403
      // Predicated region
      $region41: #{attention_block_forward.4} parent=39 // pred_check
        %p2405 = pneg %p151
      $region42: #{attention_block_forward.4} parent=39 // pred_check_branch
        %2407 = sbr.rel (%p2405) target = $region44
      $region43: #{attention_block_forward.4} parent=39 // pred_region
        %s2408 = smul.u32 72, %s18
      $region44: #{attention_block_forward.4} parent=39 // pred_fallthru
        _
      // Predicated region
      $region45: #{attention_block_forward.4} parent=39 // pred_check
        %p2409 = pneg %p177
      $region46: #{attention_block_forward.4} parent=39 // pred_check_branch
        %2411 = sbr.rel (%p2409) target = $region48
      $region47: #{attention_block_forward.4} parent=39 // pred_region
        _
      $region48: #{attention_block_forward.4} parent=39 // pred_fallthru
        _
    $region40: #{attention_block_forward.4} parent=5 // pred_fallthru
      _
    %p2412 = scmp.le.s32.totalorder 2, %s13
    // Predicated region
    $region49: #{attention_block_forward.4} parent=5 // pred_check
      %p2413 = pneg %p2412
    $region50: #{attention_block_forward.4} parent=5 // pred_check_branch
      %2415 = sbr.rel (%p2413) target = $region52
    $region51: #{attention_block_forward.4} parent=5 // pred_region
      %s2416 = ssub.s32 %s13, 2
      // Predicated region
      $region53: #{attention_block_forward.4} parent=51 // pred_check
        %p2417 = pneg %p157
      $region54: #{attention_block_forward.4} parent=51 // pred_check_branch
        %2419 = sbr.rel (%p2417) target = $region56
      $region55: #{attention_block_forward.4} parent=51 // pred_region
        %s2420 = smul.u32 72, %s19
        %p2421 = scmp.lt.s32.totalorder %s2420, 143
        %s2422 = scalar_select %p2421, %s2420, 143
        %s2423 = smul.addr %s2422, 8
        %s2424 = scalar_lea.vmem %s5, %s2423
      $region56: #{attention_block_forward.4} parent=51 // pred_fallthru
        _
      // Predicated region
      $region57: #{attention_block_forward.4} parent=51 // pred_check
        %p2425 = pneg %p183
      $region58: #{attention_block_forward.4} parent=51 // pred_check_branch
        %2427 = sbr.rel (%p2425) target = $region60
      $region59: #{attention_block_forward.4} parent=51 // pred_region
        %p2428 = scmp.lt.s32.totalorder %s19, 1
        %s2429 = scalar_select %p2428, %s19, 1
        %s2430 = smul.addr %s2429, 2
        %s2431 = scalar_lea.vmem %s6, %s2430
      $region60: #{attention_block_forward.4} parent=51 // pred_fallthru
        _
    $region52: #{attention_block_forward.4} parent=5 // pred_fallthru
      _
  $region6: #{attention_block_forward.4} parent=0 // loop_footer
    %s17 = sadd.s32 1, %s13
  $region7: #{attention_block_forward.4} parent=0 // loop_footer_branch
    %12 = sbr.rel target = $region3
  $region8: #{attention_block_forward.4} parent=0 // loop_exit
    _

</llo_original>
